<compile_context>
chip_gen: v7x
topology: tpu7x:2x2x1
jax: 0.10.0
libtpu: 0.0.40
codegen_flags: <defaults>
</compile_context>

<pallas_src>
import jax
import jax.numpy as jnp
from jax.experimental import pallas as pl
from jax.experimental.pallas import tpu as pltpu


def _linear_kernel(x_ref, w_ref, o_ref):
    # x_ref: (M, K) f32 activations  -> cast to bf16 in-kernel (hides under DMA)
    # w_ref: (K, N_blk) bf16 weight tile, already in [C_in, C_out] layout
    # o_ref: (M, N_blk) output tile
    x_bf16 = x_ref[...].astype(jnp.bfloat16)
    acc = jnp.dot(x_bf16, w_ref[...], preferred_element_type=jnp.float32)
    o_ref[...] = acc.astype(o_ref.dtype)


def convert_linear_weight(weight_out_in):
    """One-time parameter conversion: PyTorch Linear weight [C_out, C_in] ->
    [C_in, C_out] bf16.  Do this once when loading params, never per call."""
    return jnp.asarray(weight_out_in).T.astype(jnp.bfloat16)


def _default_n_blocks():
    """Shard the C_out axis across TensorCores only where it helps (v7x: 2 TCs)."""
    try:
        kind = jax.devices()[0].device_kind.lower()
    except Exception:
        return 1
    if "v7" in kind or "tpu7" in kind:
        return 2
    return 1  # v5e / v6e: single TensorCore -> single block (no grid overhead)


def linear_no_bias(x, w_kn, *, n_blocks=None, out_dtype=jnp.float32):
    """x: [B, H, W, C_in] float32; w_kn: [C_in, C_out] bf16 (pre-converted)."""
    B, H, W, C_in = x.shape
    K, C_out = w_kn.shape
    assert K == C_in, "weight must be pre-transposed to [C_in, C_out]"
    M = B * H * W

    if n_blocks is None:
        n_blocks = _default_n_blocks()
    if C_out % n_blocks != 0 or (C_out // n_blocks) % 128 != 0:
        n_blocks = 1
    n_blk = C_out // n_blocks

    # Free reshape (no transpose); dtype untouched -- the bf16 cast is in-kernel.
    x2d = x.reshape(M, C_in)

    out_bytes = M * C_out * jnp.dtype(out_dtype).itemsize
    bytes_accessed = M * C_in * 4 + C_out * C_in * 2 + out_bytes

    out2d = pl.pallas_call(
        _linear_kernel,
        out_shape=jax.ShapeDtypeStruct((M, C_out), out_dtype),
        grid=(n_blocks,),
        in_specs=[
            pl.BlockSpec((M, C_in), lambda j: (0, 0)),      # full activations each block
            pl.BlockSpec((C_in, n_blk), lambda j: (0, j)),  # weight split along C_out
        ],
        out_specs=pl.BlockSpec((M, n_blk), lambda j: (0, j)),
        compiler_params=pltpu.CompilerParams(
            dimension_semantics=("parallel",),
        ),
        cost_estimate=pl.CostEstimate(
            flops=2 * M * C_in * C_out,
            bytes_accessed=int(bytes_accessed),
            transcendentals=0,
        ),
    )(x2d, w_kn)

    return out2d.reshape(B, H, W, C_out)


if __name__ == "__main__":
    key = jax.random.PRNGKey(0)
    kx, kw = jax.random.split(key)

    # Shapes implied by the module's forward.
    B, H, W, C_in, C_out = 1, 7, 7, 1536, 768

    x256 = jax.random.normal(kx, (B, H, W, C_in), dtype=jnp.float32)
    # Deterministic "Linear" weight (PyTorch layout: [out_features, in_features]).
    bound = 1.0 / (C_in ** 0.5)
    weight_f32 = jax.random.uniform(
        kw, (C_out, C_in), dtype=jnp.float32, minval=-bound, maxval=bound
    )
    # One-time parameter conversion: transpose to [C_in, C_out] and cast to bf16.
    # This happens once at model-load time, never in the per-call hot path.
    w_kn_bf16 = convert_linear_weight(weight_f32)

    y = linear_no_bias(x256, w_kn_bf16)
    jax.block_until_ready(y)
    assert y.shape == (B, H, W, C_out)
    assert y.dtype == jnp.float32

    # Tight check against a reference using the same bf16-rounded operands
    # (isolates the kernel from the intentional bf16 quantization).
    x_bf = x256.astype(jnp.bfloat16).astype(jnp.float32)
    w_bf = w_kn_bf16.astype(jnp.float32)  # [C_in, C_out]
    y_ref_bf = jnp.einsum("bhwk,ko->bhwo", x_bf, w_bf, precision="highest")
    assert jnp.allclose(y, y_ref_bf, atol=1e-3, rtol=1e-3)

    # Loose check against the full-precision f32 reference (bf16 quantization error).
    y_ref_f32 = jnp.einsum("bhwk,ok->bhwo", x256, weight_f32, precision="highest")
    assert jnp.allclose(y, y_ref_f32, atol=5e-2, rtol=5e-2)

    print("KERNEL_OK")
</pallas_src>

<mosaic_0001>
module attributes {stable_mosaic.version = 11 : i64} {
  func.func @_linear_kernel(%arg0: i32, %arg1: memref<49x1536xf32, #tpu.memory_space<vmem>>, %arg2: memref<1536x768xbf16, #tpu.memory_space<vmem>>, %arg3: memref<49x768xf32, #tpu.memory_space<vmem>>) attributes {dimension_semantics = [#tpu.dimension_semantics<parallel>], iteration_bounds = array<i64: 1>, scalar_prefetch = 0 : i64, scratch_operands = 0 : i64, tpu.core_type = #tpu.core_type<tc>, window_params = [{pipeline_mode = #tpu.pipeline_mode<synchronous>, transform_indices = @transform_0, window_bounds = array<i64: 49, 1536>}, {transform_indices = @transform_1, window_bounds = array<i64: 1536, 768>}, {transform_indices = @transform_2, window_bounds = array<i64: 49, 768>}]} {
    %c0 = arith.constant 0 : index
    %c0_0 = arith.constant 0 : index
    %0 = vector.load %arg1[%c0, %c0_0] : memref<49x1536xf32, #tpu.memory_space<vmem>>, vector<49x1536xf32>
    %1 = arith.truncf %0 : vector<49x1536xf32> to vector<49x1536xbf16>
    %c0_1 = arith.constant 0 : index
    %c0_2 = arith.constant 0 : index
    %2 = vector.load %arg2[%c0_1, %c0_2] : memref<1536x768xbf16, #tpu.memory_space<vmem>>, vector<1536x768xbf16>
    %cst = arith.constant dense<0.000000e+00> : vector<49x768xf32>
    %3 = tpu.matmul %1, %2, %cst {dimension_numbers = #tpu.dot_dimension_numbers<[1], [0], [0], [1], [0, 0, 1, 1], [], []>} : vector<49x1536xbf16>, vector<1536x768xbf16>, vector<49x768xf32> -> vector<49x768xf32>
    %c0_3 = arith.constant 0 : index
    %c0_4 = arith.constant 0 : index
    %4 = vector.load %arg3[%c0_3, %c0_4] : memref<49x768xf32, #tpu.memory_space<vmem>>, vector<49x768xf32>
    tpu.vector_store %arg3[%c0_3, %c0_4], %3 {strides = array<i32>} : memref<49x768xf32, #tpu.memory_space<vmem>>, vector<49x768xf32>,
    return
  }
  func.func @transform_0(%arg0: i32) -> (i32, i32) {
    %c0_i32 = arith.constant 0 : i32
    %c0_i32_0 = arith.constant 0 : i32
    %c0_i32_1 = arith.constant 0 : i32
    return %c0_i32, %c0_i32_0 : i32, i32
  }
  func.func @transform_1(%arg0: i32) -> (i32, i32) {
    %c0_i32 = arith.constant 0 : i32
    %c0_i32_0 = arith.constant 0 : i32
    return %c0_i32, %arg0 : i32, i32
  }
  func.func @transform_2(%arg0: i32) -> (i32, i32) {
    %c0_i32 = arith.constant 0 : i32
    %c0_i32_0 = arith.constant 0 : i32
    return %c0_i32, %arg0 : i32, i32
  }
}

</mosaic_0001>

<llo_original>
// kernel: tpu_custom_call.1
$region0: #{tpu_custom_call.1}
  #allocation0 [shape = 'u32[]', space=smem, size = 0x4, offset = 0x4, fixed_abs, tag = 'smem constant byte address 0x4 - core index']
  #allocation1 [shape = 'u32[144,128]{1,0:T(1,128)}', space=vmem, size = 0x12000, scoped, tag = 'internal scratch']
  %s0 = inlined_call_operand.hbm [shape: f32[49,1536], index: 0, kind: input, shape index: {}]
  %s1 = inlined_call_operand.hbm [shape: bf16[1536,768], index: 1, kind: input, shape index: {}]
  %s2 = inlined_call_operand.hbm [shape: f32[49,768], index: 2, kind: output, shape index: {}]
  %s3 = sld [smem:[#allocation0]]
  $region26: #{tpu_custom_call.1} parent=0
    _
  %s5 = ssub.s32 1, %s3
  %s6 = scalar_select 0, %s5, %s3
  $region1: #{tpu_custom_call.1} parent=0
    #allocation2 [shape = 'u8[344064]{0}', space=vmem, size = 0x54000, scoped, tag = 'input window, operand 0, single buffered']
    #allocation3 [shape = 's32[1]{0}', space=sflag, size = 0x4, scoped, tag = 'scoped memory for tpu_custom_call.1']
    #allocation4 [shape = 's32[1]{0}', space=sflag, size = 0x4, scoped, tag = 'scoped memory for tpu_custom_call.1']
    #allocation5 [shape = 'u8[2359296]{0}', space=vmem, size = 0x240000, scoped, tag = 'input window, operand 1, single buffered']
    #allocation6 [shape = 's32[1]{0}', space=sflag, size = 0x4, scoped, tag = 'scoped memory for tpu_custom_call.1']
    #allocation7 [shape = 'u8[172032]{0}', space=vmem, size = 0x2a000, scoped, tag = 'output window, operand 0, single buffered']
    %7 = vsyncpa [#allocation3], 0
    %8 = vsyncpa [#allocation6], 0
    %9 = vsyncpa [#allocation4], 0
    // Predicated region
    $region2: #{tpu_custom_call.1} parent=1 // pred_check
      _
    $region3: #{tpu_custom_call.1} parent=1 // pred_check_branch
      %11 = sbr.rel (0) target = $region5
    $region4: #{tpu_custom_call.1} parent=1 // pred_region
      %s13 = ssub.s32 10752, 10752
      %14 = vsyncadd [#allocation3], %s13
      %s15 = sshll.u32 [#allocation2], 4
      %s16 = int_to_ptr.vmem [resolvable:$true] %s15
      %21 = dma.hbm_to_vmem [thread:$0]  %s0, 10752, %s16, [#allocation3], 1536, 1536, 96
    $region5: #{tpu_custom_call.1} parent=1 // pred_fallthru
      _
    // Predicated region
    $region6: #{tpu_custom_call.1} parent=1 // pred_check
      _
    $region7: #{tpu_custom_call.1} parent=1 // pred_check_branch
      %23 = sbr.rel (0) target = $region9
    $region8: #{tpu_custom_call.1} parent=1 // pred_region
      %s25 = ssub.s32 73728, 73728
      %26 = vsyncadd [#allocation6], %s25
      %s27 = sshll.u32 [#allocation5], 4
      %s28 = int_to_ptr.vmem [resolvable:$true] %s27
      %33 = dma.hbm_to_vmem [thread:$0]  %s1, 73728, %s28, [#allocation6], 384, 384, 24
    $region9: #{tpu_custom_call.1} parent=1 // pred_fallthru
      _
    // Predicated region
    $region10: #{tpu_custom_call.1} parent=1 // pred_check
      _
    $region11: #{tpu_custom_call.1} parent=1 // pred_check_branch
      %35 = sbr.rel (0) target = $region13
    $region12: #{tpu_custom_call.1} parent=1 // pred_region
      %36 = dma.done [#allocation3], 10752
    $region13: #{tpu_custom_call.1} parent=1 // pred_fallthru
      _
    // Predicated region
    $region14: #{tpu_custom_call.1} parent=1 // pred_check
      _
    $region15: #{tpu_custom_call.1} parent=1 // pred_check_branch
      %38 = sbr.rel (0) target = $region17
    $region16: #{tpu_custom_call.1} parent=1 // pred_region
      %39 = dma.done [#allocation6], 73728
    $region17: #{tpu_custom_call.1} parent=1 // pred_fallthru
      _
    %v40 = vld [vmem:[#allocation2] sm:$0xff]
    %v41 = vld [vmem:[#allocation2 + $0x8] sm:$0xff]
    %v42 = vld [vmem:[#allocation2 + $0x10] sm:$0xff]
    %v43 = vld [vmem:[#allocation2 + $0x18] sm:$0xff]
    %v44 = vld [vmem:[#allocation2 + $0x20] sm:$0xff]
    %v45 = vld [vmem:[#allocation2 + $0x28] sm:$0xff]
    %v46 = vld [vmem:[#allocation2 + $0x30] sm:$0xff]
    %v47 = vld [vmem:[#allocation2 + $0x38] sm:$0xff]
    %v48 = vld [vmem:[#allocation2 + $0x40] sm:$0xff]
    %v49 = vld [vmem:[#allocation2 + $0x48] sm:$0xff]
    %v50 = vld [vmem:[#allocation2 + $0x50] sm:$0xff]
    %v51 = vld [vmem:[#allocation2 + $0x58] sm:$0xff]
    %v52 = vld [vmem:[#allocation2 + $0x60] sm:$0xff]
    %v53 = vld [vmem:[#allocation2 + $0x68] sm:$0xff]
    %v54 = vld [vmem:[#allocation2 + $0x70] sm:$0xff]
    %v55 = vld [vmem:[#allocation2 + $0x78] sm:$0xff]
    %v56 = vld [vmem:[#allocation2 + $0x80] sm:$0xff]
    %v57 = vld [vmem:[#allocation2 + $0x88] sm:$0xff]
    %v58 = vld [vmem:[#allocation2 + $0x90] sm:$0xff]
    %v59 = vld [vmem:[#allocation2 + $0x98] sm:$0xff]
    %v60 = vld [vmem:[#allocation2 + $0xa0] sm:$0xff]
    %v61 = vld [vmem:[#allocation2 + $0xa8] sm:$0xff]
    %v62 = vld [vmem:[#allocation2 + $0xb0] sm:$0xff]
    %v63 = vld [vmem:[#allocation2 + $0xb8] sm:$0xff]
    %v64 = vld [vmem:[#allocation2 + $0xc0] sm:$0xff]
    %v65 = vld [vmem:[#allocation2 + $0xc8] sm:$0xff]
    %v66 = vld [vmem:[#allocation2 + $0xd0] sm:$0xff]
    %v67 = vld [vmem:[#allocation2 + $0xd8] sm:$0xff]
    %v68 = vld [vmem:[#allocation2 + $0xe0] sm:$0xff]
    %v69 = vld [vmem:[#allocation2 + $0xe8] sm:$0xff]
    %v70 = vld [vmem:[#allocation2 + $0xf0] sm:$0xff]
    %v71 = vld [vmem:[#allocation2 + $0xf8] sm:$0xff]
    %v72 = vld [vmem:[#allocation2 + $0x100] sm:$0xff]
    %v73 = vld [vmem:[#allocation2 + $0x108] sm:$0xff]
    %v74 = vld [vmem:[#allocation2 + $0x110] sm:$0xff]
    %v75 = vld [vmem:[#allocation2 + $0x118] sm:$0xff]
    %v76 = vld [vmem:[#allocation2 + $0x120] sm:$0xff]
    %v77 = vld [vmem:[#allocation2 + $0x128] sm:$0xff]
    %v78 = vld [vmem:[#allocation2 + $0x130] sm:$0xff]
    %v79 = vld [vmem:[#allocation2 + $0x138] sm:$0xff]
    %v80 = vld [vmem:[#allocation2 + $0x140] sm:$0xff]
    %v81 = vld [vmem:[#allocation2 + $0x148] sm:$0xff]
    %v82 = vld [vmem:[#allocation2 + $0x150] sm:$0xff]
    %v83 = vld [vmem:[#allocation2 + $0x158] sm:$0xff]
    %v84 = vld [vmem:[#allocation2 + $0x160] sm:$0xff]
    %v85 = vld [vmem:[#allocation2 + $0x168] sm:$0xff]
    %v86 = vld [vmem:[#allocation2 + $0x170] sm:$0xff]
    %v87 = vld [vmem:[#allocation2 + $0x178] sm:$0xff]
    %v88 = vld [vmem:[#allocation2 + $0x180] sm:$0xff]
    %v89 = vld [vmem:[#allocation2 + $0x188] sm:$0xff]
    %v90 = vld [vmem:[#allocation2 + $0x190] sm:$0xff]
    %v91 = vld [vmem:[#allocation2 + $0x198] sm:$0xff]
    %v92 = vld [vmem:[#allocation2 + $0x1a0] sm:$0xff]
    %v93 = vld [vmem:[#allocation2 + $0x1a8] sm:$0xff]
    %v94 = vld [vmem:[#allocation2 + $0x1b0] sm:$0xff]
    %v95 = vld [vmem:[#allocation2 + $0x1b8] sm:$0xff]
    %v96 = vld [vmem:[#allocation2 + $0x1c0] sm:$0xff]
    %v97 = vld [vmem:[#allocation2 + $0x1c8] sm:$0xff]
    %v98 = vld [vmem:[#allocation2 + $0x1d0] sm:$0xff]
    %v99 = vld [vmem:[#allocation2 + $0x1d8] sm:$0xff]
    %v100 = vld [vmem:[#allocation2 + $0x1e0] sm:$0xff]
    %v101 = vld [vmem:[#allocation2 + $0x1e8] sm:$0xff]
    %v102 = vld [vmem:[#allocation2 + $0x1f0] sm:$0xff]
    %v103 = vld [vmem:[#allocation2 + $0x1f8] sm:$0xff]
    %v104 = vld [vmem:[#allocation2 + $0x200] sm:$0xff]
    %v105 = vld [vmem:[#allocation2 + $0x208] sm:$0xff]
    %v106 = vld [vmem:[#allocation2 + $0x210] sm:$0xff]
    %v107 = vld [vmem:[#allocation2 + $0x218] sm:$0xff]
    %v108 = vld [vmem:[#allocation2 + $0x220] sm:$0xff]
    %v109 = vld [vmem:[#allocation2 + $0x228] sm:$0xff]
    %v110 = vld [vmem:[#allocation2 + $0x230] sm:$0xff]
    %v111 = vld [vmem:[#allocation2 + $0x238] sm:$0xff]
    %v112 = vld [vmem:[#allocation2 + $0x240] sm:$0x1]
    %v113 = vld [vmem:[#allocation2 + $0x248] sm:$0x1]
    %v114 = vld [vmem:[#allocation2 + $0x250] sm:$0x1]
    %v115 = vld [vmem:[#allocation2 + $0x258] sm:$0x1]
    %v116 = vld [vmem:[#allocation2 + $0x260] sm:$0x1]
    %v117 = vld [vmem:[#allocation2 + $0x268] sm:$0x1]
    %v118 = vld [vmem:[#allocation2 + $0x270] sm:$0x1]
    %v119 = vld [vmem:[#allocation2 + $0x278] sm:$0x1]
    %v120 = vld [vmem:[#allocation2 + $0x280] sm:$0x1]
    %v121 = vld [vmem:[#allocation2 + $0x288] sm:$0x1]
    %v122 = vld [vmem:[#allocation2 + $0x290] sm:$0x1]
    %v123 = vld [vmem:[#allocation2 + $0x298] sm:$0x1]
    %v124 = vpack.c.bf16 %v52, %v40
    %v125 = vpack.c.bf16 %v53, %v41
    %v126 = vpack.c.bf16 %v54, %v42
    %v127 = vpack.c.bf16 %v55, %v43
    %v128 = vpack.c.bf16 %v56, %v44
    %v129 = vpack.c.bf16 %v57, %v45
    %v130 = vpack.c.bf16 %v58, %v46
    %v131 = vpack.c.bf16 %v59, %v47
    %v132 = vpack.c.bf16 %v60, %v48
    %v133 = vpack.c.bf16 %v61, %v49
    %v134 = vpack.c.bf16 %v62, %v50
    %v135 = vpack.c.bf16 %v63, %v51
    %v136 = vpack.c.bf16 %v76, %v64
    %v137 = vpack.c.bf16 %v77, %v65
    %v138 = vpack.c.bf16 %v78, %v66
    %v139 = vpack.c.bf16 %v79, %v67
    %v140 = vpack.c.bf16 %v80, %v68
    %v141 = vpack.c.bf16 %v81, %v69
    %v142 = vpack.c.bf16 %v82, %v70
    %v143 = vpack.c.bf16 %v83, %v71
    %v144 = vpack.c.bf16 %v84, %v72
    %v145 = vpack.c.bf16 %v85, %v73
    %v146 = vpack.c.bf16 %v86, %v74
    %v147 = vpack.c.bf16 %v87, %v75
    %v148 = vpack.c.bf16 %v100, %v88
    %v149 = vpack.c.bf16 %v101, %v89
    %v150 = vpack.c.bf16 %v102, %v90
    %v151 = vpack.c.bf16 %v103, %v91
    %v152 = vpack.c.bf16 %v104, %v92
    %v153 = vpack.c.bf16 %v105, %v93
    %v154 = vpack.c.bf16 %v106, %v94
    %v155 = vpack.c.bf16 %v107, %v95
    %v156 = vpack.c.bf16 %v108, %v96
    %v157 = vpack.c.bf16 %v109, %v97
    %v158 = vpack.c.bf16 %v110, %v98
    %v159 = vpack.c.bf16 %v111, %v99
    %v160 = vpack.c.bf16 %v112, %v112
    %v161 = vpack.c.bf16 %v113, %v113
    %v162 = vpack.c.bf16 %v114, %v114
    %v163 = vpack.c.bf16 %v115, %v115
    %v164 = vpack.c.bf16 %v116, %v116
    %v165 = vpack.c.bf16 %v117, %v117
    %v166 = vpack.c.bf16 %v118, %v118
    %v167 = vpack.c.bf16 %v119, %v119
    %v168 = vpack.c.bf16 %v120, %v120
    %v169 = vpack.c.bf16 %v121, %v121
    %v170 = vpack.c.bf16 %v122, %v122
    %v171 = vpack.c.bf16 %v123, %v123
    %v172 = vld [vmem:[#allocation5] sm:$0xff]
    %v173 = vld [vmem:[#allocation5 + $0x8] sm:$0xff]
    %v174 = vld [vmem:[#allocation5 + $0x10] sm:$0xff]
    %v175 = vld [vmem:[#allocation5 + $0x18] sm:$0xff]
    %v176 = vld [vmem:[#allocation5 + $0x20] sm:$0xff]
    %v177 = vld [vmem:[#allocation5 + $0x28] sm:$0xff]
    %v178 = vld [vmem:[#allocation5 + $0x30] sm:$0xff]
    %v179 = vld [vmem:[#allocation5 + $0x38] sm:$0xff]
    %v180 = vld [vmem:[#allocation5 + $0x40] sm:$0xff]
    %v181 = vld [vmem:[#allocation5 + $0x48] sm:$0xff]
    %v182 = vld [vmem:[#allocation5 + $0x50] sm:$0xff]
    %v183 = vld [vmem:[#allocation5 + $0x58] sm:$0xff]
    %v184 = vld [vmem:[#allocation5 + $0x60] sm:$0xff]
    %v185 = vld [vmem:[#allocation5 + $0x68] sm:$0xff]
    %v186 = vld [vmem:[#allocation5 + $0x70] sm:$0xff]
    %v187 = vld [vmem:[#allocation5 + $0x78] sm:$0xff]
    %v188 = vld [vmem:[#allocation5 + $0x80] sm:$0xff]
    %v189 = vld [vmem:[#allocation5 + $0x88] sm:$0xff]
    %v190 = vld [vmem:[#allocation5 + $0x90] sm:$0xff]
    %v191 = vld [vmem:[#allocation5 + $0x98] sm:$0xff]
    %v192 = vld [vmem:[#allocation5 + $0xa0] sm:$0xff]
    %v193 = vld [vmem:[#allocation5 + $0xa8] sm:$0xff]
    %v194 = vld [vmem:[#allocation5 + $0xb0] sm:$0xff]
    %v195 = vld [vmem:[#allocation5 + $0xb8] sm:$0xff]
    %v196 = vld [vmem:[#allocation5 + $0xc0] sm:$0xff]
    %v197 = vld [vmem:[#allocation5 + $0xc8] sm:$0xff]
    %v198 = vld [vmem:[#allocation5 + $0xd0] sm:$0xff]
    %v199 = vld [vmem:[#allocation5 + $0xd8] sm:$0xff]
    %v200 = vld [vmem:[#allocation5 + $0xe0] sm:$0xff]
    %v201 = vld [vmem:[#allocation5 + $0xe8] sm:$0xff]
    %v202 = vld [vmem:[#allocation5 + $0xf0] sm:$0xff]
    %v203 = vld [vmem:[#allocation5 + $0xf8] sm:$0xff]
    %v204 = vld [vmem:[#allocation5 + $0x100] sm:$0xff]
    %v205 = vld [vmem:[#allocation5 + $0x108] sm:$0xff]
    %v206 = vld [vmem:[#allocation5 + $0x110] sm:$0xff]
    %v207 = vld [vmem:[#allocation5 + $0x118] sm:$0xff]
    %v208 = vld [vmem:[#allocation5 + $0x120] sm:$0xff]
    %v209 = vld [vmem:[#allocation5 + $0x128] sm:$0xff]
    %v210 = vld [vmem:[#allocation5 + $0x130] sm:$0xff]
    %v211 = vld [vmem:[#allocation5 + $0x138] sm:$0xff]
    %v212 = vld [vmem:[#allocation5 + $0x140] sm:$0xff]
    %v213 = vld [vmem:[#allocation5 + $0x148] sm:$0xff]
    %v214 = vld [vmem:[#allocation5 + $0x150] sm:$0xff]
    %v215 = vld [vmem:[#allocation5 + $0x158] sm:$0xff]
    %v216 = vld [vmem:[#allocation5 + $0x160] sm:$0xff]
    %v217 = vld [vmem:[#allocation5 + $0x168] sm:$0xff]
    %v218 = vld [vmem:[#allocation5 + $0x170] sm:$0xff]
    %v219 = vld [vmem:[#allocation5 + $0x178] sm:$0xff]
    %v220 = vld [vmem:[#allocation5 + $0x180] sm:$0xff]
    %v221 = vld [vmem:[#allocation5 + $0x188] sm:$0xff]
    %v222 = vld [vmem:[#allocation5 + $0x190] sm:$0xff]
    %v223 = vld [vmem:[#allocation5 + $0x198] sm:$0xff]
    %v224 = vld [vmem:[#allocation5 + $0x1a0] sm:$0xff]
    %v225 = vld [vmem:[#allocation5 + $0x1a8] sm:$0xff]
    %v226 = vld [vmem:[#allocation5 + $0x1b0] sm:$0xff]
    %v227 = vld [vmem:[#allocation5 + $0x1b8] sm:$0xff]
    %v228 = vld [vmem:[#allocation5 + $0x1c0] sm:$0xff]
    %v229 = vld [vmem:[#allocation5 + $0x1c8] sm:$0xff]
    %v230 = vld [vmem:[#allocation5 + $0x1d0] sm:$0xff]
    %v231 = vld [vmem:[#allocation5 + $0x1d8] sm:$0xff]
    %v232 = vld [vmem:[#allocation5 + $0x1e0] sm:$0xff]
    %v233 = vld [vmem:[#allocation5 + $0x1e8] sm:$0xff]
    %v234 = vld [vmem:[#allocation5 + $0x1f0] sm:$0xff]
    %v235 = vld [vmem:[#allocation5 + $0x1f8] sm:$0xff]
    %v236 = vld [vmem:[#allocation5 + $0x200] sm:$0xff]
    %v237 = vld [vmem:[#allocation5 + $0x208] sm:$0xff]
    %v238 = vld [vmem:[#allocation5 + $0x210] sm:$0xff]
    %v239 = vld [vmem:[#allocation5 + $0x218] sm:$0xff]
    %v240 = vld [vmem:[#allocation5 + $0x220] sm:$0xff]
    %v241 = vld [vmem:[#allocation5 + $0x228] sm:$0xff]
    %v242 = vld [vmem:[#allocation5 + $0x230] sm:$0xff]
    %v243 = vld [vmem:[#allocation5 + $0x238] sm:$0xff]
    %v244 = vld [vmem:[#allocation5 + $0x240] sm:$0xff]
    %v245 = vld [vmem:[#allocation5 + $0x248] sm:$0xff]
    %v246 = vld [vmem:[#allocation5 + $0x250] sm:$0xff]
    %v247 = vld [vmem:[#allocation5 + $0x258] sm:$0xff]
    %v248 = vld [vmem:[#allocation5 + $0x260] sm:$0xff]
    %v249 = vld [vmem:[#allocation5 + $0x268] sm:$0xff]
    %v250 = vld [vmem:[#allocation5 + $0x270] sm:$0xff]
    %v251 = vld [vmem:[#allocation5 + $0x278] sm:$0xff]
    %v252 = vld [vmem:[#allocation5 + $0x280] sm:$0xff]
    %v253 = vld [vmem:[#allocation5 + $0x288] sm:$0xff]
    %v254 = vld [vmem:[#allocation5 + $0x290] sm:$0xff]
    %v255 = vld [vmem:[#allocation5 + $0x298] sm:$0xff]
    %v256 = vld [vmem:[#allocation5 + $0x2a0] sm:$0xff]
    %v257 = vld [vmem:[#allocation5 + $0x2a8] sm:$0xff]
    %v258 = vld [vmem:[#allocation5 + $0x2b0] sm:$0xff]
    %v259 = vld [vmem:[#allocation5 + $0x2b8] sm:$0xff]
    %v260 = vld [vmem:[#allocation5 + $0x2c0] sm:$0xff]
    %v261 = vld [vmem:[#allocation5 + $0x2c8] sm:$0xff]
    %v262 = vld [vmem:[#allocation5 + $0x2d0] sm:$0xff]
    %v263 = vld [vmem:[#allocation5 + $0x2d8] sm:$0xff]
    %v264 = vld [vmem:[#allocation5 + $0x2e0] sm:$0xff]
    %v265 = vld [vmem:[#allocation5 + $0x2e8] sm:$0xff]
    %v266 = vld [vmem:[#allocation5 + $0x2f0] sm:$0xff]
    %v267 = vld [vmem:[#allocation5 + $0x2f8] sm:$0xff]
    %v268 = vld [vmem:[#allocation5 + $0x300] sm:$0xff]
    %v269 = vld [vmem:[#allocation5 + $0x308] sm:$0xff]
    %v270 = vld [vmem:[#allocation5 + $0x310] sm:$0xff]
    %v271 = vld [vmem:[#allocation5 + $0x318] sm:$0xff]
    %v272 = vld [vmem:[#allocation5 + $0x320] sm:$0xff]
    %v273 = vld [vmem:[#allocation5 + $0x328] sm:$0xff]
    %v274 = vld [vmem:[#allocation5 + $0x330] sm:$0xff]
    %v275 = vld [vmem:[#allocation5 + $0x338] sm:$0xff]
    %v276 = vld [vmem:[#allocation5 + $0x340] sm:$0xff]
    %v277 = vld [vmem:[#allocation5 + $0x348] sm:$0xff]
    %v278 = vld [vmem:[#allocation5 + $0x350] sm:$0xff]
    %v279 = vld [vmem:[#allocation5 + $0x358] sm:$0xff]
    %v280 = vld [vmem:[#allocation5 + $0x360] sm:$0xff]
    %v281 = vld [vmem:[#allocation5 + $0x368] sm:$0xff]
    %v282 = vld [vmem:[#allocation5 + $0x370] sm:$0xff]
    %v283 = vld [vmem:[#allocation5 + $0x378] sm:$0xff]
    %v284 = vld [vmem:[#allocation5 + $0x380] sm:$0xff]
    %v285 = vld [vmem:[#allocation5 + $0x388] sm:$0xff]
    %v286 = vld [vmem:[#allocation5 + $0x390] sm:$0xff]
    %v287 = vld [vmem:[#allocation5 + $0x398] sm:$0xff]
    %v288 = vld [vmem:[#allocation5 + $0x3a0] sm:$0xff]
    %v289 = vld [vmem:[#allocation5 + $0x3a8] sm:$0xff]
    %v290 = vld [vmem:[#allocation5 + $0x3b0] sm:$0xff]
    %v291 = vld [vmem:[#allocation5 + $0x3b8] sm:$0xff]
    %v292 = vld [vmem:[#allocation5 + $0x3c0] sm:$0xff]
    %v293 = vld [vmem:[#allocation5 + $0x3c8] sm:$0xff]
    %v294 = vld [vmem:[#allocation5 + $0x3d0] sm:$0xff]
    %v295 = vld [vmem:[#allocation5 + $0x3d8] sm:$0xff]
    %v296 = vld [vmem:[#allocation5 + $0x3e0] sm:$0xff]
    %v297 = vld [vmem:[#allocation5 + $0x3e8] sm:$0xff]
    %v298 = vld [vmem:[#allocation5 + $0x3f0] sm:$0xff]
    %v299 = vld [vmem:[#allocation5 + $0x3f8] sm:$0xff]
    %v300 = vld [vmem:[#allocation5 + $0x400] sm:$0xff]
    %v301 = vld [vmem:[#allocation5 + $0x408] sm:$0xff]
    %v302 = vld [vmem:[#allocation5 + $0x410] sm:$0xff]
    %v303 = vld [vmem:[#allocation5 + $0x418] sm:$0xff]
    %v304 = vld [vmem:[#allocation5 + $0x420] sm:$0xff]
    %v305 = vld [vmem:[#allocation5 + $0x428] sm:$0xff]
    %v306 = vld [vmem:[#allocation5 + $0x430] sm:$0xff]
    %v307 = vld [vmem:[#allocation5 + $0x438] sm:$0xff]
    %v308 = vld [vmem:[#allocation5 + $0x440] sm:$0xff]
    %v309 = vld [vmem:[#allocation5 + $0x448] sm:$0xff]
    %v310 = vld [vmem:[#allocation5 + $0x450] sm:$0xff]
    %v311 = vld [vmem:[#allocation5 + $0x458] sm:$0xff]
    %v312 = vld [vmem:[#allocation5 + $0x460] sm:$0xff]
    %v313 = vld [vmem:[#allocation5 + $0x468] sm:$0xff]
    %v314 = vld [vmem:[#allocation5 + $0x470] sm:$0xff]
    %v315 = vld [vmem:[#allocation5 + $0x478] sm:$0xff]
    %v316 = vld [vmem:[#allocation5 + $0x480] sm:$0xff]
    %v317 = vld [vmem:[#allocation5 + $0x488] sm:$0xff]
    %v318 = vld [vmem:[#allocation5 + $0x490] sm:$0xff]
    %v319 = vld [vmem:[#allocation5 + $0x498] sm:$0xff]
    %v320 = vld [vmem:[#allocation5 + $0x4a0] sm:$0xff]
    %v321 = vld [vmem:[#allocation5 + $0x4a8] sm:$0xff]
    %v322 = vld [vmem:[#allocation5 + $0x4b0] sm:$0xff]
    %v323 = vld [vmem:[#allocation5 + $0x4b8] sm:$0xff]
    %v324 = vld [vmem:[#allocation5 + $0x4c0] sm:$0xff]
    %v325 = vld [vmem:[#allocation5 + $0x4c8] sm:$0xff]
    %v326 = vld [vmem:[#allocation5 + $0x4d0] sm:$0xff]
    %v327 = vld [vmem:[#allocation5 + $0x4d8] sm:$0xff]
    %v328 = vld [vmem:[#allocation5 + $0x4e0] sm:$0xff]
    %v329 = vld [vmem:[#allocation5 + $0x4e8] sm:$0xff]
    %v330 = vld [vmem:[#allocation5 + $0x4f0] sm:$0xff]
    %v331 = vld [vmem:[#allocation5 + $0x4f8] sm:$0xff]
    %v332 = vld [vmem:[#allocation5 + $0x500] sm:$0xff]
    %v333 = vld [vmem:[#allocation5 + $0x508] sm:$0xff]
    %v334 = vld [vmem:[#allocation5 + $0x510] sm:$0xff]
    %v335 = vld [vmem:[#allocation5 + $0x518] sm:$0xff]
    %v336 = vld [vmem:[#allocation5 + $0x520] sm:$0xff]
    %v337 = vld [vmem:[#allocation5 + $0x528] sm:$0xff]
    %v338 = vld [vmem:[#allocation5 + $0x530] sm:$0xff]
    %v339 = vld [vmem:[#allocation5 + $0x538] sm:$0xff]
    %v340 = vld [vmem:[#allocation5 + $0x540] sm:$0xff]
    %v341 = vld [vmem:[#allocation5 + $0x548] sm:$0xff]
    %v342 = vld [vmem:[#allocation5 + $0x550] sm:$0xff]
    %v343 = vld [vmem:[#allocation5 + $0x558] sm:$0xff]
    %v344 = vld [vmem:[#allocation5 + $0x560] sm:$0xff]
    %v345 = vld [vmem:[#allocation5 + $0x568] sm:$0xff]
    %v346 = vld [vmem:[#allocation5 + $0x570] sm:$0xff]
    %v347 = vld [vmem:[#allocation5 + $0x578] sm:$0xff]
    %v348 = vld [vmem:[#allocation5 + $0x580] sm:$0xff]
    %v349 = vld [vmem:[#allocation5 + $0x588] sm:$0xff]
    %v350 = vld [vmem:[#allocation5 + $0x590] sm:$0xff]
    %v351 = vld [vmem:[#allocation5 + $0x598] sm:$0xff]
    %v352 = vld [vmem:[#allocation5 + $0x5a0] sm:$0xff]
    %v353 = vld [vmem:[#allocation5 + $0x5a8] sm:$0xff]
    %v354 = vld [vmem:[#allocation5 + $0x5b0] sm:$0xff]
    %v355 = vld [vmem:[#allocation5 + $0x5b8] sm:$0xff]
    %v356 = vld [vmem:[#allocation5 + $0x5c0] sm:$0xff]
    %v357 = vld [vmem:[#allocation5 + $0x5c8] sm:$0xff]
    %v358 = vld [vmem:[#allocation5 + $0x5d0] sm:$0xff]
    %v359 = vld [vmem:[#allocation5 + $0x5d8] sm:$0xff]
    %v360 = vld [vmem:[#allocation5 + $0x5e0] sm:$0xff]
    %v361 = vld [vmem:[#allocation5 + $0x5e8] sm:$0xff]
    %v362 = vld [vmem:[#allocation5 + $0x5f0] sm:$0xff]
    %v363 = vld [vmem:[#allocation5 + $0x5f8] sm:$0xff]
    %v364 = vld [vmem:[#allocation5 + $0x600] sm:$0xff]
    %v365 = vld [vmem:[#allocation5 + $0x608] sm:$0xff]
    %v366 = vld [vmem:[#allocation5 + $0x610] sm:$0xff]
    %v367 = vld [vmem:[#allocation5 + $0x618] sm:$0xff]
    %v368 = vld [vmem:[#allocation5 + $0x620] sm:$0xff]
    %v369 = vld [vmem:[#allocation5 + $0x628] sm:$0xff]
    %v370 = vld [vmem:[#allocation5 + $0x630] sm:$0xff]
    %v371 = vld [vmem:[#allocation5 + $0x638] sm:$0xff]
    %v372 = vld [vmem:[#allocation5 + $0x640] sm:$0xff]
    %v373 = vld [vmem:[#allocation5 + $0x648] sm:$0xff]
    %v374 = vld [vmem:[#allocation5 + $0x650] sm:$0xff]
    %v375 = vld [vmem:[#allocation5 + $0x658] sm:$0xff]
    %v376 = vld [vmem:[#allocation5 + $0x660] sm:$0xff]
    %v377 = vld [vmem:[#allocation5 + $0x668] sm:$0xff]
    %v378 = vld [vmem:[#allocation5 + $0x670] sm:$0xff]
    %v379 = vld [vmem:[#allocation5 + $0x678] sm:$0xff]
    %v380 = vld [vmem:[#allocation5 + $0x680] sm:$0xff]
    %v381 = vld [vmem:[#allocation5 + $0x688] sm:$0xff]
    %v382 = vld [vmem:[#allocation5 + $0x690] sm:$0xff]
    %v383 = vld [vmem:[#allocation5 + $0x698] sm:$0xff]
    %v384 = vld [vmem:[#allocation5 + $0x6a0] sm:$0xff]
    %v385 = vld [vmem:[#allocation5 + $0x6a8] sm:$0xff]
    %v386 = vld [vmem:[#allocation5 + $0x6b0] sm:$0xff]
    %v387 = vld [vmem:[#allocation5 + $0x6b8] sm:$0xff]
    %v388 = vld [vmem:[#allocation5 + $0x6c0] sm:$0xff]
    %v389 = vld [vmem:[#allocation5 + $0x6c8] sm:$0xff]
    %v390 = vld [vmem:[#allocation5 + $0x6d0] sm:$0xff]
    %v391 = vld [vmem:[#allocation5 + $0x6d8] sm:$0xff]
    %v392 = vld [vmem:[#allocation5 + $0x6e0] sm:$0xff]
    %v393 = vld [vmem:[#allocation5 + $0x6e8] sm:$0xff]
    %v394 = vld [vmem:[#allocation5 + $0x6f0] sm:$0xff]
    %v395 = vld [vmem:[#allocation5 + $0x6f8] sm:$0xff]
    %v396 = vld [vmem:[#allocation5 + $0x700] sm:$0xff]
    %v397 = vld [vmem:[#allocation5 + $0x708] sm:$0xff]
    %v398 = vld [vmem:[#allocation5 + $0x710] sm:$0xff]
    %v399 = vld [vmem:[#allocation5 + $0x718] sm:$0xff]
    %v400 = vld [vmem:[#allocation5 + $0x720] sm:$0xff]
    %v401 = vld [vmem:[#allocation5 + $0x728] sm:$0xff]
    %v402 = vld [vmem:[#allocation5 + $0x730] sm:$0xff]
    %v403 = vld [vmem:[#allocation5 + $0x738] sm:$0xff]
    %v404 = vld [vmem:[#allocation5 + $0x740] sm:$0xff]
    %v405 = vld [vmem:[#allocation5 + $0x748] sm:$0xff]
    %v406 = vld [vmem:[#allocation5 + $0x750] sm:$0xff]
    %v407 = vld [vmem:[#allocation5 + $0x758] sm:$0xff]
    %v408 = vld [vmem:[#allocation5 + $0x760] sm:$0xff]
    %v409 = vld [vmem:[#allocation5 + $0x768] sm:$0xff]
    %v410 = vld [vmem:[#allocation5 + $0x770] sm:$0xff]
    %v411 = vld [vmem:[#allocation5 + $0x778] sm:$0xff]
    %v412 = vld [vmem:[#allocation5 + $0x780] sm:$0xff]
    %v413 = vld [vmem:[#allocation5 + $0x788] sm:$0xff]
    %v414 = vld [vmem:[#allocation5 + $0x790] sm:$0xff]
    %v415 = vld [vmem:[#allocation5 + $0x798] sm:$0xff]
    %v416 = vld [vmem:[#allocation5 + $0x7a0] sm:$0xff]
    %v417 = vld [vmem:[#allocation5 + $0x7a8] sm:$0xff]
    %v418 = vld [vmem:[#allocation5 + $0x7b0] sm:$0xff]
    %v419 = vld [vmem:[#allocation5 + $0x7b8] sm:$0xff]
    %v420 = vld [vmem:[#allocation5 + $0x7c0] sm:$0xff]
    %v421 = vld [vmem:[#allocation5 + $0x7c8] sm:$0xff]
    %v422 = vld [vmem:[#allocation5 + $0x7d0] sm:$0xff]
    %v423 = vld [vmem:[#allocation5 + $0x7d8] sm:$0xff]
    %v424 = vld [vmem:[#allocation5 + $0x7e0] sm:$0xff]
    %v425 = vld [vmem:[#allocation5 + $0x7e8] sm:$0xff]
    %v426 = vld [vmem:[#allocation5 + $0x7f0] sm:$0xff]
    %v427 = vld [vmem:[#allocation5 + $0x7f8] sm:$0xff]
    %v428 = vld [vmem:[#allocation5 + $0x800] sm:$0xff]
    %v429 = vld [vmem:[#allocation5 + $0x808] sm:$0xff]
    %v430 = vld [vmem:[#allocation5 + $0x810] sm:$0xff]
    %v431 = vld [vmem:[#allocation5 + $0x818] sm:$0xff]
    %v432 = vld [vmem:[#allocation5 + $0x820] sm:$0xff]
    %v433 = vld [vmem:[#allocation5 + $0x828] sm:$0xff]
    %v434 = vld [vmem:[#allocation5 + $0x830] sm:$0xff]
    %v435 = vld [vmem:[#allocation5 + $0x838] sm:$0xff]
    %v436 = vld [vmem:[#allocation5 + $0x840] sm:$0xff]
    %v437 = vld [vmem:[#allocation5 + $0x848] sm:$0xff]
    %v438 = vld [vmem:[#allocation5 + $0x850] sm:$0xff]
    %v439 = vld [vmem:[#allocation5 + $0x858] sm:$0xff]
    %v440 = vld [vmem:[#allocation5 + $0x860] sm:$0xff]
    %v441 = vld [vmem:[#allocation5 + $0x868] sm:$0xff]
    %v442 = vld [vmem:[#allocation5 + $0x870] sm:$0xff]
    %v443 = vld [vmem:[#allocation5 + $0x878] sm:$0xff]
    %v444 = vld [vmem:[#allocation5 + $0x880] sm:$0xff]
    %v445 = vld [vmem:[#allocation5 + $0x888] sm:$0xff]
    %v446 = vld [vmem:[#allocation5 + $0x890] sm:$0xff]
    %v447 = vld [vmem:[#allocation5 + $0x898] sm:$0xff]
    %v448 = vld [vmem:[#allocation5 + $0x8a0] sm:$0xff]
    %v449 = vld [vmem:[#allocation5 + $0x8a8] sm:$0xff]
    %v450 = vld [vmem:[#allocation5 + $0x8b0] sm:$0xff]
    %v451 = vld [vmem:[#allocation5 + $0x8b8] sm:$0xff]
    %v452 = vld [vmem:[#allocation5 + $0x8c0] sm:$0xff]
    %v453 = vld [vmem:[#allocation5 + $0x8c8] sm:$0xff]
    %v454 = vld [vmem:[#allocation5 + $0x8d0] sm:$0xff]
    %v455 = vld [vmem:[#allocation5 + $0x8d8] sm:$0xff]
    %v456 = vld [vmem:[#allocation5 + $0x8e0] sm:$0xff]
    %v457 = vld [vmem:[#allocation5 + $0x8e8] sm:$0xff]
    %v458 = vld [vmem:[#allocation5 + $0x8f0] sm:$0xff]
    %v459 = vld [vmem:[#allocation5 + $0x8f8] sm:$0xff]
    %v460 = vld [vmem:[#allocation5 + $0x900] sm:$0xff]
    %v461 = vld [vmem:[#allocation5 + $0x908] sm:$0xff]
    %v462 = vld [vmem:[#allocation5 + $0x910] sm:$0xff]
    %v463 = vld [vmem:[#allocation5 + $0x918] sm:$0xff]
    %v464 = vld [vmem:[#allocation5 + $0x920] sm:$0xff]
    %v465 = vld [vmem:[#allocation5 + $0x928] sm:$0xff]
    %v466 = vld [vmem:[#allocation5 + $0x930] sm:$0xff]
    %v467 = vld [vmem:[#allocation5 + $0x938] sm:$0xff]
    %v468 = vld [vmem:[#allocation5 + $0x940] sm:$0xff]
    %v469 = vld [vmem:[#allocation5 + $0x948] sm:$0xff]
    %v470 = vld [vmem:[#allocation5 + $0x950] sm:$0xff]
    %v471 = vld [vmem:[#allocation5 + $0x958] sm:$0xff]
    %v472 = vld [vmem:[#allocation5 + $0x960] sm:$0xff]
    %v473 = vld [vmem:[#allocation5 + $0x968] sm:$0xff]
    %v474 = vld [vmem:[#allocation5 + $0x970] sm:$0xff]
    %v475 = vld [vmem:[#allocation5 + $0x978] sm:$0xff]
    %v476 = vld [vmem:[#allocation5 + $0x980] sm:$0xff]
    %v477 = vld [vmem:[#allocation5 + $0x988] sm:$0xff]
    %v478 = vld [vmem:[#allocation5 + $0x990] sm:$0xff]
    %v479 = vld [vmem:[#allocation5 + $0x998] sm:$0xff]
    %v480 = vld [vmem:[#allocation5 + $0x9a0] sm:$0xff]
    %v481 = vld [vmem:[#allocation5 + $0x9a8] sm:$0xff]
    %v482 = vld [vmem:[#allocation5 + $0x9b0] sm:$0xff]
    %v483 = vld [vmem:[#allocation5 + $0x9b8] sm:$0xff]
    %v484 = vld [vmem:[#allocation5 + $0x9c0] sm:$0xff]
    %v485 = vld [vmem:[#allocation5 + $0x9c8] sm:$0xff]
    %v486 = vld [vmem:[#allocation5 + $0x9d0] sm:$0xff]
    %v487 = vld [vmem:[#allocation5 + $0x9d8] sm:$0xff]
    %v488 = vld [vmem:[#allocation5 + $0x9e0] sm:$0xff]
    %v489 = vld [vmem:[#allocation5 + $0x9e8] sm:$0xff]
    %v490 = vld [vmem:[#allocation5 + $0x9f0] sm:$0xff]
    %v491 = vld [vmem:[#allocation5 + $0x9f8] sm:$0xff]
    %v492 = vld [vmem:[#allocation5 + $0xa00] sm:$0xff]
    %v493 = vld [vmem:[#allocation5 + $0xa08] sm:$0xff]
    %v494 = vld [vmem:[#allocation5 + $0xa10] sm:$0xff]
    %v495 = vld [vmem:[#allocation5 + $0xa18] sm:$0xff]
    %v496 = vld [vmem:[#allocation5 + $0xa20] sm:$0xff]
    %v497 = vld [vmem:[#allocation5 + $0xa28] sm:$0xff]
    %v498 = vld [vmem:[#allocation5 + $0xa30] sm:$0xff]
    %v499 = vld [vmem:[#allocation5 + $0xa38] sm:$0xff]
    %v500 = vld [vmem:[#allocation5 + $0xa40] sm:$0xff]
    %v501 = vld [vmem:[#allocation5 + $0xa48] sm:$0xff]
    %v502 = vld [vmem:[#allocation5 + $0xa50] sm:$0xff]
    %v503 = vld [vmem:[#allocation5 + $0xa58] sm:$0xff]
    %v504 = vld [vmem:[#allocation5 + $0xa60] sm:$0xff]
    %v505 = vld [vmem:[#allocation5 + $0xa68] sm:$0xff]
    %v506 = vld [vmem:[#allocation5 + $0xa70] sm:$0xff]
    %v507 = vld [vmem:[#allocation5 + $0xa78] sm:$0xff]
    %v508 = vld [vmem:[#allocation5 + $0xa80] sm:$0xff]
    %v509 = vld [vmem:[#allocation5 + $0xa88] sm:$0xff]
    %v510 = vld [vmem:[#allocation5 + $0xa90] sm:$0xff]
    %v511 = vld [vmem:[#allocation5 + $0xa98] sm:$0xff]
    %v512 = vld [vmem:[#allocation5 + $0xaa0] sm:$0xff]
    %v513 = vld [vmem:[#allocation5 + $0xaa8] sm:$0xff]
    %v514 = vld [vmem:[#allocation5 + $0xab0] sm:$0xff]
    %v515 = vld [vmem:[#allocation5 + $0xab8] sm:$0xff]
    %v516 = vld [vmem:[#allocation5 + $0xac0] sm:$0xff]
    %v517 = vld [vmem:[#allocation5 + $0xac8] sm:$0xff]
    %v518 = vld [vmem:[#allocation5 + $0xad0] sm:$0xff]
    %v519 = vld [vmem:[#allocation5 + $0xad8] sm:$0xff]
    %v520 = vld [vmem:[#allocation5 + $0xae0] sm:$0xff]
    %v521 = vld [vmem:[#allocation5 + $0xae8] sm:$0xff]
    %v522 = vld [vmem:[#allocation5 + $0xaf0] sm:$0xff]
    %v523 = vld [vmem:[#allocation5 + $0xaf8] sm:$0xff]
    %v524 = vld [vmem:[#allocation5 + $0xb00] sm:$0xff]
    %v525 = vld [vmem:[#allocation5 + $0xb08] sm:$0xff]
    %v526 = vld [vmem:[#allocation5 + $0xb10] sm:$0xff]
    %v527 = vld [vmem:[#allocation5 + $0xb18] sm:$0xff]
    %v528 = vld [vmem:[#allocation5 + $0xb20] sm:$0xff]
    %v529 = vld [vmem:[#allocation5 + $0xb28] sm:$0xff]
    %v530 = vld [vmem:[#allocation5 + $0xb30] sm:$0xff]
    %v531 = vld [vmem:[#allocation5 + $0xb38] sm:$0xff]
    %v532 = vld [vmem:[#allocation5 + $0xb40] sm:$0xff]
    %v533 = vld [vmem:[#allocation5 + $0xb48] sm:$0xff]
    %v534 = vld [vmem:[#allocation5 + $0xb50] sm:$0xff]
    %v535 = vld [vmem:[#allocation5 + $0xb58] sm:$0xff]
    %v536 = vld [vmem:[#allocation5 + $0xb60] sm:$0xff]
    %v537 = vld [vmem:[#allocation5 + $0xb68] sm:$0xff]
    %v538 = vld [vmem:[#allocation5 + $0xb70] sm:$0xff]
    %v539 = vld [vmem:[#allocation5 + $0xb78] sm:$0xff]
    %v540 = vld [vmem:[#allocation5 + $0xb80] sm:$0xff]
    %v541 = vld [vmem:[#allocation5 + $0xb88] sm:$0xff]
    %v542 = vld [vmem:[#allocation5 + $0xb90] sm:$0xff]
    %v543 = vld [vmem:[#allocation5 + $0xb98] sm:$0xff]
    %v544 = vld [vmem:[#allocation5 + $0xba0] sm:$0xff]
    %v545 = vld [vmem:[#allocation5 + $0xba8] sm:$0xff]
    %v546 = vld [vmem:[#allocation5 + $0xbb0] sm:$0xff]
    %v547 = vld [vmem:[#allocation5 + $0xbb8] sm:$0xff]
    %v548 = vld [vmem:[#allocation5 + $0xbc0] sm:$0xff]
    %v549 = vld [vmem:[#allocation5 + $0xbc8] sm:$0xff]
    %v550 = vld [vmem:[#allocation5 + $0xbd0] sm:$0xff]
    %v551 = vld [vmem:[#allocation5 + $0xbd8] sm:$0xff]
    %v552 = vld [vmem:[#allocation5 + $0xbe0] sm:$0xff]
    %v553 = vld [vmem:[#allocation5 + $0xbe8] sm:$0xff]
    %v554 = vld [vmem:[#allocation5 + $0xbf0] sm:$0xff]
    %v555 = vld [vmem:[#allocation5 + $0xbf8] sm:$0xff]
    %v556 = vld [vmem:[#allocation5 + $0xc00] sm:$0xff]
    %v557 = vld [vmem:[#allocation5 + $0xc08] sm:$0xff]
    %v558 = vld [vmem:[#allocation5 + $0xc10] sm:$0xff]
    %v559 = vld [vmem:[#allocation5 + $0xc18] sm:$0xff]
    %v560 = vld [vmem:[#allocation5 + $0xc20] sm:$0xff]
    %v561 = vld [vmem:[#allocation5 + $0xc28] sm:$0xff]
    %v562 = vld [vmem:[#allocation5 + $0xc30] sm:$0xff]
    %v563 = vld [vmem:[#allocation5 + $0xc38] sm:$0xff]
    %v564 = vld [vmem:[#allocation5 + $0xc40] sm:$0xff]
    %v565 = vld [vmem:[#allocation5 + $0xc48] sm:$0xff]
    %v566 = vld [vmem:[#allocation5 + $0xc50] sm:$0xff]
    %v567 = vld [vmem:[#allocation5 + $0xc58] sm:$0xff]
    %v568 = vld [vmem:[#allocation5 + $0xc60] sm:$0xff]
    %v569 = vld [vmem:[#allocation5 + $0xc68] sm:$0xff]
    %v570 = vld [vmem:[#allocation5 + $0xc70] sm:$0xff]
    %v571 = vld [vmem:[#allocation5 + $0xc78] sm:$0xff]
    %v572 = vld [vmem:[#allocation5 + $0xc80] sm:$0xff]
    %v573 = vld [vmem:[#allocation5 + $0xc88] sm:$0xff]
    %v574 = vld [vmem:[#allocation5 + $0xc90] sm:$0xff]
    %v575 = vld [vmem:[#allocation5 + $0xc98] sm:$0xff]
    %v576 = vld [vmem:[#allocation5 + $0xca0] sm:$0xff]
    %v577 = vld [vmem:[#allocation5 + $0xca8] sm:$0xff]
    %v578 = vld [vmem:[#allocation5 + $0xcb0] sm:$0xff]
    %v579 = vld [vmem:[#allocation5 + $0xcb8] sm:$0xff]
    %v580 = vld [vmem:[#allocation5 + $0xcc0] sm:$0xff]
    %v581 = vld [vmem:[#allocation5 + $0xcc8] sm:$0xff]
    %v582 = vld [vmem:[#allocation5 + $0xcd0] sm:$0xff]
    %v583 = vld [vmem:[#allocation5 + $0xcd8] sm:$0xff]
    %v584 = vld [vmem:[#allocation5 + $0xce0] sm:$0xff]
    %v585 = vld [vmem:[#allocation5 + $0xce8] sm:$0xff]
    %v586 = vld [vmem:[#allocation5 + $0xcf0] sm:$0xff]
    %v587 = vld [vmem:[#allocation5 + $0xcf8] sm:$0xff]
    %v588 = vld [vmem:[#allocation5 + $0xd00] sm:$0xff]
    %v589 = vld [vmem:[#allocation5 + $0xd08] sm:$0xff]
    %v590 = vld [vmem:[#allocation5 + $0xd10] sm:$0xff]
    %v591 = vld [vmem:[#allocation5 + $0xd18] sm:$0xff]
    %v592 = vld [vmem:[#allocation5 + $0xd20] sm:$0xff]
    %v593 = vld [vmem:[#allocation5 + $0xd28] sm:$0xff]
    %v594 = vld [vmem:[#allocation5 + $0xd30] sm:$0xff]
    %v595 = vld [vmem:[#allocation5 + $0xd38] sm:$0xff]
    %v596 = vld [vmem:[#allocation5 + $0xd40] sm:$0xff]
    %v597 = vld [vmem:[#allocation5 + $0xd48] sm:$0xff]
    %v598 = vld [vmem:[#allocation5 + $0xd50] sm:$0xff]
    %v599 = vld [vmem:[#allocation5 + $0xd58] sm:$0xff]
    %v600 = vld [vmem:[#allocation5 + $0xd60] sm:$0xff]
    %v601 = vld [vmem:[#allocation5 + $0xd68] sm:$0xff]
    %v602 = vld [vmem:[#allocation5 + $0xd70] sm:$0xff]
    %v603 = vld [vmem:[#allocation5 + $0xd78] sm:$0xff]
    %v604 = vld [vmem:[#allocation5 + $0xd80] sm:$0xff]
    %v605 = vld [vmem:[#allocation5 + $0xd88] sm:$0xff]
    %v606 = vld [vmem:[#allocation5 + $0xd90] sm:$0xff]
    %v607 = vld [vmem:[#allocation5 + $0xd98] sm:$0xff]
    %v608 = vld [vmem:[#allocation5 + $0xda0] sm:$0xff]
    %v609 = vld [vmem:[#allocation5 + $0xda8] sm:$0xff]
    %v610 = vld [vmem:[#allocation5 + $0xdb0] sm:$0xff]
    %v611 = vld [vmem:[#allocation5 + $0xdb8] sm:$0xff]
    %v612 = vld [vmem:[#allocation5 + $0xdc0] sm:$0xff]
    %v613 = vld [vmem:[#allocation5 + $0xdc8] sm:$0xff]
    %v614 = vld [vmem:[#allocation5 + $0xdd0] sm:$0xff]
    %v615 = vld [vmem:[#allocation5 + $0xdd8] sm:$0xff]
    %v616 = vld [vmem:[#allocation5 + $0xde0] sm:$0xff]
    %v617 = vld [vmem:[#allocation5 + $0xde8] sm:$0xff]
    %v618 = vld [vmem:[#allocation5 + $0xdf0] sm:$0xff]
    %v619 = vld [vmem:[#allocation5 + $0xdf8] sm:$0xff]
    %v620 = vld [vmem:[#allocation5 + $0xe00] sm:$0xff]
    %v621 = vld [vmem:[#allocation5 + $0xe08] sm:$0xff]
    %v622 = vld [vmem:[#allocation5 + $0xe10] sm:$0xff]
    %v623 = vld [vmem:[#allocation5 + $0xe18] sm:$0xff]
    %v624 = vld [vmem:[#allocation5 + $0xe20] sm:$0xff]
    %v625 = vld [vmem:[#allocation5 + $0xe28] sm:$0xff]
    %v626 = vld [vmem:[#allocation5 + $0xe30] sm:$0xff]
    %v627 = vld [vmem:[#allocation5 + $0xe38] sm:$0xff]
    %v628 = vld [vmem:[#allocation5 + $0xe40] sm:$0xff]
    %v629 = vld [vmem:[#allocation5 + $0xe48] sm:$0xff]
    %v630 = vld [vmem:[#allocation5 + $0xe50] sm:$0xff]
    %v631 = vld [vmem:[#allocation5 + $0xe58] sm:$0xff]
    %v632 = vld [vmem:[#allocation5 + $0xe60] sm:$0xff]
    %v633 = vld [vmem:[#allocation5 + $0xe68] sm:$0xff]
    %v634 = vld [vmem:[#allocation5 + $0xe70] sm:$0xff]
    %v635 = vld [vmem:[#allocation5 + $0xe78] sm:$0xff]
    %v636 = vld [vmem:[#allocation5 + $0xe80] sm:$0xff]
    %v637 = vld [vmem:[#allocation5 + $0xe88] sm:$0xff]
    %v638 = vld [vmem:[#allocation5 + $0xe90] sm:$0xff]
    %v639 = vld [vmem:[#allocation5 + $0xe98] sm:$0xff]
    %v640 = vld [vmem:[#allocation5 + $0xea0] sm:$0xff]
    %v641 = vld [vmem:[#allocation5 + $0xea8] sm:$0xff]
    %v642 = vld [vmem:[#allocation5 + $0xeb0] sm:$0xff]
    %v643 = vld [vmem:[#allocation5 + $0xeb8] sm:$0xff]
    %v644 = vld [vmem:[#allocation5 + $0xec0] sm:$0xff]
    %v645 = vld [vmem:[#allocation5 + $0xec8] sm:$0xff]
    %v646 = vld [vmem:[#allocation5 + $0xed0] sm:$0xff]
    %v647 = vld [vmem:[#allocation5 + $0xed8] sm:$0xff]
    %v648 = vld [vmem:[#allocation5 + $0xee0] sm:$0xff]
    %v649 = vld [vmem:[#allocation5 + $0xee8] sm:$0xff]
    %v650 = vld [vmem:[#allocation5 + $0xef0] sm:$0xff]
    %v651 = vld [vmem:[#allocation5 + $0xef8] sm:$0xff]
    %v652 = vld [vmem:[#allocation5 + $0xf00] sm:$0xff]
    %v653 = vld [vmem:[#allocation5 + $0xf08] sm:$0xff]
    %v654 = vld [vmem:[#allocation5 + $0xf10] sm:$0xff]
    %v655 = vld [vmem:[#allocation5 + $0xf18] sm:$0xff]
    %v656 = vld [vmem:[#allocation5 + $0xf20] sm:$0xff]
    %v657 = vld [vmem:[#allocation5 + $0xf28] sm:$0xff]
    %v658 = vld [vmem:[#allocation5 + $0xf30] sm:$0xff]
    %v659 = vld [vmem:[#allocation5 + $0xf38] sm:$0xff]
    %v660 = vld [vmem:[#allocation5 + $0xf40] sm:$0xff]
    %v661 = vld [vmem:[#allocation5 + $0xf48] sm:$0xff]
    %v662 = vld [vmem:[#allocation5 + $0xf50] sm:$0xff]
    %v663 = vld [vmem:[#allocation5 + $0xf58] sm:$0xff]
    %v664 = vld [vmem:[#allocation5 + $0xf60] sm:$0xff]
    %v665 = vld [vmem:[#allocation5 + $0xf68] sm:$0xff]
    %v666 = vld [vmem:[#allocation5 + $0xf70] sm:$0xff]
    %v667 = vld [vmem:[#allocation5 + $0xf78] sm:$0xff]
    %v668 = vld [vmem:[#allocation5 + $0xf80] sm:$0xff]
    %v669 = vld [vmem:[#allocation5 + $0xf88] sm:$0xff]
    %v670 = vld [vmem:[#allocation5 + $0xf90] sm:$0xff]
    %v671 = vld [vmem:[#allocation5 + $0xf98] sm:$0xff]
    %v672 = vld [vmem:[#allocation5 + $0xfa0] sm:$0xff]
    %v673 = vld [vmem:[#allocation5 + $0xfa8] sm:$0xff]
    %v674 = vld [vmem:[#allocation5 + $0xfb0] sm:$0xff]
    %v675 = vld [vmem:[#allocation5 + $0xfb8] sm:$0xff]
    %v676 = vld [vmem:[#allocation5 + $0xfc0] sm:$0xff]
    %v677 = vld [vmem:[#allocation5 + $0xfc8] sm:$0xff]
    %v678 = vld [vmem:[#allocation5 + $0xfd0] sm:$0xff]
    %v679 = vld [vmem:[#allocation5 + $0xfd8] sm:$0xff]
    %v680 = vld [vmem:[#allocation5 + $0xfe0] sm:$0xff]
    %v681 = vld [vmem:[#allocation5 + $0xfe8] sm:$0xff]
    %v682 = vld [vmem:[#allocation5 + $0xff0] sm:$0xff]
    %v683 = vld [vmem:[#allocation5 + $0xff8] sm:$0xff]
    %v684 = vld [vmem:[#allocation5 + $0x1000] sm:$0xff]
    %v685 = vld [vmem:[#allocation5 + $0x1008] sm:$0xff]
    %v686 = vld [vmem:[#allocation5 + $0x1010] sm:$0xff]
    %v687 = vld [vmem:[#allocation5 + $0x1018] sm:$0xff]
    %v688 = vld [vmem:[#allocation5 + $0x1020] sm:$0xff]
    %v689 = vld [vmem:[#allocation5 + $0x1028] sm:$0xff]
    %v690 = vld [vmem:[#allocation5 + $0x1030] sm:$0xff]
    %v691 = vld [vmem:[#allocation5 + $0x1038] sm:$0xff]
    %v692 = vld [vmem:[#allocation5 + $0x1040] sm:$0xff]
    %v693 = vld [vmem:[#allocation5 + $0x1048] sm:$0xff]
    %v694 = vld [vmem:[#allocation5 + $0x1050] sm:$0xff]
    %v695 = vld [vmem:[#allocation5 + $0x1058] sm:$0xff]
    %v696 = vld [vmem:[#allocation5 + $0x1060] sm:$0xff]
    %v697 = vld [vmem:[#allocation5 + $0x1068] sm:$0xff]
    %v698 = vld [vmem:[#allocation5 + $0x1070] sm:$0xff]
    %v699 = vld [vmem:[#allocation5 + $0x1078] sm:$0xff]
    %v700 = vld [vmem:[#allocation5 + $0x1080] sm:$0xff]
    %v701 = vld [vmem:[#allocation5 + $0x1088] sm:$0xff]
    %v702 = vld [vmem:[#allocation5 + $0x1090] sm:$0xff]
    %v703 = vld [vmem:[#allocation5 + $0x1098] sm:$0xff]
    %v704 = vld [vmem:[#allocation5 + $0x10a0] sm:$0xff]
    %v705 = vld [vmem:[#allocation5 + $0x10a8] sm:$0xff]
    %v706 = vld [vmem:[#allocation5 + $0x10b0] sm:$0xff]
    %v707 = vld [vmem:[#allocation5 + $0x10b8] sm:$0xff]
    %v708 = vld [vmem:[#allocation5 + $0x10c0] sm:$0xff]
    %v709 = vld [vmem:[#allocation5 + $0x10c8] sm:$0xff]
    %v710 = vld [vmem:[#allocation5 + $0x10d0] sm:$0xff]
    %v711 = vld [vmem:[#allocation5 + $0x10d8] sm:$0xff]
    %v712 = vld [vmem:[#allocation5 + $0x10e0] sm:$0xff]
    %v713 = vld [vmem:[#allocation5 + $0x10e8] sm:$0xff]
    %v714 = vld [vmem:[#allocation5 + $0x10f0] sm:$0xff]
    %v715 = vld [vmem:[#allocation5 + $0x10f8] sm:$0xff]
    %v716 = vld [vmem:[#allocation5 + $0x1100] sm:$0xff]
    %v717 = vld [vmem:[#allocation5 + $0x1108] sm:$0xff]
    %v718 = vld [vmem:[#allocation5 + $0x1110] sm:$0xff]
    %v719 = vld [vmem:[#allocation5 + $0x1118] sm:$0xff]
    %v720 = vld [vmem:[#allocation5 + $0x1120] sm:$0xff]
    %v721 = vld [vmem:[#allocation5 + $0x1128] sm:$0xff]
    %v722 = vld [vmem:[#allocation5 + $0x1130] sm:$0xff]
    %v723 = vld [vmem:[#allocation5 + $0x1138] sm:$0xff]
    %v724 = vld [vmem:[#allocation5 + $0x1140] sm:$0xff]
    %v725 = vld [vmem:[#allocation5 + $0x1148] sm:$0xff]
    %v726 = vld [vmem:[#allocation5 + $0x1150] sm:$0xff]
    %v727 = vld [vmem:[#allocation5 + $0x1158] sm:$0xff]
    %v728 = vld [vmem:[#allocation5 + $0x1160] sm:$0xff]
    %v729 = vld [vmem:[#allocation5 + $0x1168] sm:$0xff]
    %v730 = vld [vmem:[#allocation5 + $0x1170] sm:$0xff]
    %v731 = vld [vmem:[#allocation5 + $0x1178] sm:$0xff]
    %v732 = vld [vmem:[#allocation5 + $0x1180] sm:$0xff]
    %v733 = vld [vmem:[#allocation5 + $0x1188] sm:$0xff]
    %v734 = vld [vmem:[#allocation5 + $0x1190] sm:$0xff]
    %v735 = vld [vmem:[#allocation5 + $0x1198] sm:$0xff]
    %v736 = vld [vmem:[#allocation5 + $0x11a0] sm:$0xff]
    %v737 = vld [vmem:[#allocation5 + $0x11a8] sm:$0xff]
    %v738 = vld [vmem:[#allocation5 + $0x11b0] sm:$0xff]
    %v739 = vld [vmem:[#allocation5 + $0x11b8] sm:$0xff]
    %v740 = vld [vmem:[#allocation5 + $0x11c0] sm:$0xff]
    %v741 = vld [vmem:[#allocation5 + $0x11c8] sm:$0xff]
    %v742 = vld [vmem:[#allocation5 + $0x11d0] sm:$0xff]
    %v743 = vld [vmem:[#allocation5 + $0x11d8] sm:$0xff]
    %v744 = vld [vmem:[#allocation5 + $0x11e0] sm:$0xff]
    %v745 = vld [vmem:[#allocation5 + $0x11e8] sm:$0xff]
    %v746 = vld [vmem:[#allocation5 + $0x11f0] sm:$0xff]
    %v747 = vld [vmem:[#allocation5 + $0x11f8] sm:$0xff]
    %v1324 = vunpack.c.l.b16 %v172
    %v1325 = vunpack.c.h.b16 %v172
    %v1326 = vunpack.c.l.b16 %v173
    %v1327 = vunpack.c.h.b16 %v173
    %v1328 = vunpack.c.l.b16 %v174
    %v1329 = vunpack.c.h.b16 %v174
    %v1330 = vunpack.c.l.b16 %v175
    %v1331 = vunpack.c.h.b16 %v175
    %v1332 = vunpack.c.l.b16 %v176
    %v1333 = vunpack.c.h.b16 %v176
    %v1334 = vunpack.c.l.b16 %v177
    %v1335 = vunpack.c.h.b16 %v177
    %v1336 = vunpack.c.l.b16 %v178
    %v1337 = vunpack.c.h.b16 %v178
    %v1338 = vunpack.c.l.b16 %v179
    %v1339 = vunpack.c.h.b16 %v179
    %v1340 = vunpack.c.l.b16 %v180
    %v1341 = vunpack.c.h.b16 %v180
    %v1342 = vunpack.c.l.b16 %v181
    %v1343 = vunpack.c.h.b16 %v181
    %v1344 = vunpack.c.l.b16 %v182
    %v1345 = vunpack.c.h.b16 %v182
    %v1346 = vunpack.c.l.b16 %v183
    %v1347 = vunpack.c.h.b16 %v183
    %v1348 = vunpack.c.l.b16 %v184
    %v1349 = vunpack.c.h.b16 %v184
    %v1350 = vunpack.c.l.b16 %v185
    %v1351 = vunpack.c.h.b16 %v185
    %v1352 = vunpack.c.l.b16 %v186
    %v1353 = vunpack.c.h.b16 %v186
    %v1354 = vunpack.c.l.b16 %v187
    %v1355 = vunpack.c.h.b16 %v187
    %v1356 = vunpack.c.l.b16 %v188
    %v1357 = vunpack.c.h.b16 %v188
    %v1358 = vunpack.c.l.b16 %v189
    %v1359 = vunpack.c.h.b16 %v189
    %v1360 = vunpack.c.l.b16 %v190
    %v1361 = vunpack.c.h.b16 %v190
    %v1362 = vunpack.c.l.b16 %v191
    %v1363 = vunpack.c.h.b16 %v191
    %v1364 = vunpack.c.l.b16 %v192
    %v1365 = vunpack.c.h.b16 %v192
    %v1366 = vunpack.c.l.b16 %v193
    %v1367 = vunpack.c.h.b16 %v193
    %v1368 = vunpack.c.l.b16 %v194
    %v1369 = vunpack.c.h.b16 %v194
    %v1370 = vunpack.c.l.b16 %v195
    %v1371 = vunpack.c.h.b16 %v195
    %v1372 = vunpack.c.l.b16 %v196
    %v1373 = vunpack.c.h.b16 %v196
    %v1374 = vunpack.c.l.b16 %v197
    %v1375 = vunpack.c.h.b16 %v197
    %v1376 = vunpack.c.l.b16 %v198
    %v1377 = vunpack.c.h.b16 %v198
    %v1378 = vunpack.c.l.b16 %v199
    %v1379 = vunpack.c.h.b16 %v199
    %v1380 = vunpack.c.l.b16 %v200
    %v1381 = vunpack.c.h.b16 %v200
    %v1382 = vunpack.c.l.b16 %v201
    %v1383 = vunpack.c.h.b16 %v201
    %v1384 = vunpack.c.l.b16 %v202
    %v1385 = vunpack.c.h.b16 %v202
    %v1386 = vunpack.c.l.b16 %v203
    %v1387 = vunpack.c.h.b16 %v203
    %v1388 = vunpack.c.l.b16 %v204
    %v1389 = vunpack.c.h.b16 %v204
    %v1390 = vunpack.c.l.b16 %v205
    %v1391 = vunpack.c.h.b16 %v205
    %v1392 = vunpack.c.l.b16 %v206
    %v1393 = vunpack.c.h.b16 %v206
    %v1394 = vunpack.c.l.b16 %v207
    %v1395 = vunpack.c.h.b16 %v207
    %v1396 = vunpack.c.l.b16 %v208
    %v1397 = vunpack.c.h.b16 %v208
    %v1398 = vunpack.c.l.b16 %v209
    %v1399 = vunpack.c.h.b16 %v209
    %v1400 = vunpack.c.l.b16 %v210
    %v1401 = vunpack.c.h.b16 %v210
    %v1402 = vunpack.c.l.b16 %v211
    %v1403 = vunpack.c.h.b16 %v211
    %v1404 = vunpack.c.l.b16 %v212
    %v1405 = vunpack.c.h.b16 %v212
    %v1406 = vunpack.c.l.b16 %v213
    %v1407 = vunpack.c.h.b16 %v213
    %v1408 = vunpack.c.l.b16 %v214
    %v1409 = vunpack.c.h.b16 %v214
    %v1410 = vunpack.c.l.b16 %v215
    %v1411 = vunpack.c.h.b16 %v215
    %v1412 = vunpack.c.l.b16 %v216
    %v1413 = vunpack.c.h.b16 %v216
    %v1414 = vunpack.c.l.b16 %v217
    %v1415 = vunpack.c.h.b16 %v217
    %v1416 = vunpack.c.l.b16 %v218
    %v1417 = vunpack.c.h.b16 %v218
    %v1418 = vunpack.c.l.b16 %v219
    %v1419 = vunpack.c.h.b16 %v219
    %v1420 = vunpack.c.l.b16 %v220
    %v1421 = vunpack.c.h.b16 %v220
    %v1422 = vunpack.c.l.b16 %v221
    %v1423 = vunpack.c.h.b16 %v221
    %v1424 = vunpack.c.l.b16 %v222
    %v1425 = vunpack.c.h.b16 %v222
    %v1426 = vunpack.c.l.b16 %v223
    %v1427 = vunpack.c.h.b16 %v223
    %v1428 = vunpack.c.l.b16 %v224
    %v1429 = vunpack.c.h.b16 %v224
    %v1430 = vunpack.c.l.b16 %v225
    %v1431 = vunpack.c.h.b16 %v225
    %v1432 = vunpack.c.l.b16 %v226
    %v1433 = vunpack.c.h.b16 %v226
    %v1434 = vunpack.c.l.b16 %v227
    %v1435 = vunpack.c.h.b16 %v227
    %v1436 = vunpack.c.l.b16 %v228
    %v1437 = vunpack.c.h.b16 %v228
    %v1438 = vunpack.c.l.b16 %v229
    %v1439 = vunpack.c.h.b16 %v229
    %v1440 = vunpack.c.l.b16 %v230
    %v1441 = vunpack.c.h.b16 %v230
    %v1442 = vunpack.c.l.b16 %v231
    %v1443 = vunpack.c.h.b16 %v231
    %v1444 = vunpack.c.l.b16 %v232
    %v1445 = vunpack.c.h.b16 %v232
    %v1446 = vunpack.c.l.b16 %v233
    %v1447 = vunpack.c.h.b16 %v233
    %v1448 = vunpack.c.l.b16 %v234
    %v1449 = vunpack.c.h.b16 %v234
    %v1450 = vunpack.c.l.b16 %v235
    %v1451 = vunpack.c.h.b16 %v235
    %v1452 = vunpack.c.l.b16 %v236
    %v1453 = vunpack.c.h.b16 %v236
    %v1454 = vunpack.c.l.b16 %v237
    %v1455 = vunpack.c.h.b16 %v237
    %v1456 = vunpack.c.l.b16 %v238
    %v1457 = vunpack.c.h.b16 %v238
    %v1458 = vunpack.c.l.b16 %v239
    %v1459 = vunpack.c.h.b16 %v239
    %v1460 = vunpack.c.l.b16 %v240
    %v1461 = vunpack.c.h.b16 %v240
    %v1462 = vunpack.c.l.b16 %v241
    %v1463 = vunpack.c.h.b16 %v241
    %v1464 = vunpack.c.l.b16 %v242
    %v1465 = vunpack.c.h.b16 %v242
    %v1466 = vunpack.c.l.b16 %v243
    %v1467 = vunpack.c.h.b16 %v243
    %v1468 = vunpack.c.l.b16 %v244
    %v1469 = vunpack.c.h.b16 %v244
    %v1470 = vunpack.c.l.b16 %v245
    %v1471 = vunpack.c.h.b16 %v245
    %v1472 = vunpack.c.l.b16 %v246
    %v1473 = vunpack.c.h.b16 %v246
    %v1474 = vunpack.c.l.b16 %v247
    %v1475 = vunpack.c.h.b16 %v247
    %v1476 = vunpack.c.l.b16 %v248
    %v1477 = vunpack.c.h.b16 %v248
    %v1478 = vunpack.c.l.b16 %v249
    %v1479 = vunpack.c.h.b16 %v249
    %v1480 = vunpack.c.l.b16 %v250
    %v1481 = vunpack.c.h.b16 %v250
    %v1482 = vunpack.c.l.b16 %v251
    %v1483 = vunpack.c.h.b16 %v251
    %v1484 = vunpack.c.l.b16 %v252
    %v1485 = vunpack.c.h.b16 %v252
    %v1486 = vunpack.c.l.b16 %v253
    %v1487 = vunpack.c.h.b16 %v253
    %v1488 = vunpack.c.l.b16 %v254
    %v1489 = vunpack.c.h.b16 %v254
    %v1490 = vunpack.c.l.b16 %v255
    %v1491 = vunpack.c.h.b16 %v255
    %v1492 = vunpack.c.l.b16 %v256
    %v1493 = vunpack.c.h.b16 %v256
    %v1494 = vunpack.c.l.b16 %v257
    %v1495 = vunpack.c.h.b16 %v257
    %v1496 = vunpack.c.l.b16 %v258
    %v1497 = vunpack.c.h.b16 %v258
    %v1498 = vunpack.c.l.b16 %v259
    %v1499 = vunpack.c.h.b16 %v259
    %v1500 = vunpack.c.l.b16 %v260
    %v1501 = vunpack.c.h.b16 %v260
    %v1502 = vunpack.c.l.b16 %v261
    %v1503 = vunpack.c.h.b16 %v261
    %v1504 = vunpack.c.l.b16 %v262
    %v1505 = vunpack.c.h.b16 %v262
    %v1506 = vunpack.c.l.b16 %v263
    %v1507 = vunpack.c.h.b16 %v263
    %v1508 = vunpack.c.l.b16 %v264
    %v1509 = vunpack.c.h.b16 %v264
    %v1510 = vunpack.c.l.b16 %v265
    %v1511 = vunpack.c.h.b16 %v265
    %v1512 = vunpack.c.l.b16 %v266
    %v1513 = vunpack.c.h.b16 %v266
    %v1514 = vunpack.c.l.b16 %v267
    %v1515 = vunpack.c.h.b16 %v267
    %v1516 = vunpack.c.l.b16 %v268
    %v1517 = vunpack.c.h.b16 %v268
    %v1518 = vunpack.c.l.b16 %v269
    %v1519 = vunpack.c.h.b16 %v269
    %v1520 = vunpack.c.l.b16 %v270
    %v1521 = vunpack.c.h.b16 %v270
    %v1522 = vunpack.c.l.b16 %v271
    %v1523 = vunpack.c.h.b16 %v271
    %v1524 = vunpack.c.l.b16 %v272
    %v1525 = vunpack.c.h.b16 %v272
    %v1526 = vunpack.c.l.b16 %v273
    %v1527 = vunpack.c.h.b16 %v273
    %v1528 = vunpack.c.l.b16 %v274
    %v1529 = vunpack.c.h.b16 %v274
    %v1530 = vunpack.c.l.b16 %v275
    %v1531 = vunpack.c.h.b16 %v275
    %v1532 = vunpack.c.l.b16 %v276
    %v1533 = vunpack.c.h.b16 %v276
    %v1534 = vunpack.c.l.b16 %v277
    %v1535 = vunpack.c.h.b16 %v277
    %v1536 = vunpack.c.l.b16 %v278
    %v1537 = vunpack.c.h.b16 %v278
    %v1538 = vunpack.c.l.b16 %v279
    %v1539 = vunpack.c.h.b16 %v279
    %v1540 = vunpack.c.l.b16 %v280
    %v1541 = vunpack.c.h.b16 %v280
    %v1542 = vunpack.c.l.b16 %v281
    %v1543 = vunpack.c.h.b16 %v281
    %v1544 = vunpack.c.l.b16 %v282
    %v1545 = vunpack.c.h.b16 %v282
    %v1546 = vunpack.c.l.b16 %v283
    %v1547 = vunpack.c.h.b16 %v283
    %v1548 = vunpack.c.l.b16 %v284
    %v1549 = vunpack.c.h.b16 %v284
    %v1550 = vunpack.c.l.b16 %v285
    %v1551 = vunpack.c.h.b16 %v285
    %v1552 = vunpack.c.l.b16 %v286
    %v1553 = vunpack.c.h.b16 %v286
    %v1554 = vunpack.c.l.b16 %v287
    %v1555 = vunpack.c.h.b16 %v287
    %v1556 = vunpack.c.l.b16 %v288
    %v1557 = vunpack.c.h.b16 %v288
    %v1558 = vunpack.c.l.b16 %v289
    %v1559 = vunpack.c.h.b16 %v289
    %v1560 = vunpack.c.l.b16 %v290
    %v1561 = vunpack.c.h.b16 %v290
    %v1562 = vunpack.c.l.b16 %v291
    %v1563 = vunpack.c.h.b16 %v291
    %v1564 = vunpack.c.l.b16 %v292
    %v1565 = vunpack.c.h.b16 %v292
    %v1566 = vunpack.c.l.b16 %v293
    %v1567 = vunpack.c.h.b16 %v293
    %v1568 = vunpack.c.l.b16 %v294
    %v1569 = vunpack.c.h.b16 %v294
    %v1570 = vunpack.c.l.b16 %v295
    %v1571 = vunpack.c.h.b16 %v295
    %v1572 = vunpack.c.l.b16 %v296
    %v1573 = vunpack.c.h.b16 %v296
    %v1574 = vunpack.c.l.b16 %v297
    %v1575 = vunpack.c.h.b16 %v297
    %v1576 = vunpack.c.l.b16 %v298
    %v1577 = vunpack.c.h.b16 %v298
    %v1578 = vunpack.c.l.b16 %v299
    %v1579 = vunpack.c.h.b16 %v299
    %v1580 = vunpack.c.l.b16 %v300
    %v1581 = vunpack.c.h.b16 %v300
    %v1582 = vunpack.c.l.b16 %v301
    %v1583 = vunpack.c.h.b16 %v301
    %v1584 = vunpack.c.l.b16 %v302
    %v1585 = vunpack.c.h.b16 %v302
    %v1586 = vunpack.c.l.b16 %v303
    %v1587 = vunpack.c.h.b16 %v303
    %v1588 = vunpack.c.l.b16 %v304
    %v1589 = vunpack.c.h.b16 %v304
    %v1590 = vunpack.c.l.b16 %v305
    %v1591 = vunpack.c.h.b16 %v305
    %v1592 = vunpack.c.l.b16 %v306
    %v1593 = vunpack.c.h.b16 %v306
    %v1594 = vunpack.c.l.b16 %v307
    %v1595 = vunpack.c.h.b16 %v307
    %v1596 = vunpack.c.l.b16 %v308
    %v1597 = vunpack.c.h.b16 %v308
    %v1598 = vunpack.c.l.b16 %v309
    %v1599 = vunpack.c.h.b16 %v309
    %v1600 = vunpack.c.l.b16 %v310
    %v1601 = vunpack.c.h.b16 %v310
    %v1602 = vunpack.c.l.b16 %v311
    %v1603 = vunpack.c.h.b16 %v311
    %v1604 = vunpack.c.l.b16 %v312
    %v1605 = vunpack.c.h.b16 %v312
    %v1606 = vunpack.c.l.b16 %v313
    %v1607 = vunpack.c.h.b16 %v313
    %v1608 = vunpack.c.l.b16 %v314
    %v1609 = vunpack.c.h.b16 %v314
    %v1610 = vunpack.c.l.b16 %v315
    %v1611 = vunpack.c.h.b16 %v315
    %v1612 = vunpack.c.l.b16 %v316
    %v1613 = vunpack.c.h.b16 %v316
    %v1614 = vunpack.c.l.b16 %v317
    %v1615 = vunpack.c.h.b16 %v317
    %v1616 = vunpack.c.l.b16 %v318
    %v1617 = vunpack.c.h.b16 %v318
    %v1618 = vunpack.c.l.b16 %v319
    %v1619 = vunpack.c.h.b16 %v319
    %v1620 = vunpack.c.l.b16 %v320
    %v1621 = vunpack.c.h.b16 %v320
    %v1622 = vunpack.c.l.b16 %v321
    %v1623 = vunpack.c.h.b16 %v321
    %v1624 = vunpack.c.l.b16 %v322
    %v1625 = vunpack.c.h.b16 %v322
    %v1626 = vunpack.c.l.b16 %v323
    %v1627 = vunpack.c.h.b16 %v323
    %v1628 = vunpack.c.l.b16 %v324
    %v1629 = vunpack.c.h.b16 %v324
    %v1630 = vunpack.c.l.b16 %v325
    %v1631 = vunpack.c.h.b16 %v325
    %v1632 = vunpack.c.l.b16 %v326
    %v1633 = vunpack.c.h.b16 %v326
    %v1634 = vunpack.c.l.b16 %v327
    %v1635 = vunpack.c.h.b16 %v327
    %v1636 = vunpack.c.l.b16 %v328
    %v1637 = vunpack.c.h.b16 %v328
    %v1638 = vunpack.c.l.b16 %v329
    %v1639 = vunpack.c.h.b16 %v329
    %v1640 = vunpack.c.l.b16 %v330
    %v1641 = vunpack.c.h.b16 %v330
    %v1642 = vunpack.c.l.b16 %v331
    %v1643 = vunpack.c.h.b16 %v331
    %v1644 = vunpack.c.l.b16 %v332
    %v1645 = vunpack.c.h.b16 %v332
    %v1646 = vunpack.c.l.b16 %v333
    %v1647 = vunpack.c.h.b16 %v333
    %v1648 = vunpack.c.l.b16 %v334
    %v1649 = vunpack.c.h.b16 %v334
    %v1650 = vunpack.c.l.b16 %v335
    %v1651 = vunpack.c.h.b16 %v335
    %v1652 = vunpack.c.l.b16 %v336
    %v1653 = vunpack.c.h.b16 %v336
    %v1654 = vunpack.c.l.b16 %v337
    %v1655 = vunpack.c.h.b16 %v337
    %v1656 = vunpack.c.l.b16 %v338
    %v1657 = vunpack.c.h.b16 %v338
    %v1658 = vunpack.c.l.b16 %v339
    %v1659 = vunpack.c.h.b16 %v339
    %v1660 = vunpack.c.l.b16 %v340
    %v1661 = vunpack.c.h.b16 %v340
    %v1662 = vunpack.c.l.b16 %v341
    %v1663 = vunpack.c.h.b16 %v341
    %v1664 = vunpack.c.l.b16 %v342
    %v1665 = vunpack.c.h.b16 %v342
    %v1666 = vunpack.c.l.b16 %v343
    %v1667 = vunpack.c.h.b16 %v343
    %v1668 = vunpack.c.l.b16 %v344
    %v1669 = vunpack.c.h.b16 %v344
    %v1670 = vunpack.c.l.b16 %v345
    %v1671 = vunpack.c.h.b16 %v345
    %v1672 = vunpack.c.l.b16 %v346
    %v1673 = vunpack.c.h.b16 %v346
    %v1674 = vunpack.c.l.b16 %v347
    %v1675 = vunpack.c.h.b16 %v347
    %v1676 = vunpack.c.l.b16 %v348
    %v1677 = vunpack.c.h.b16 %v348
    %v1678 = vunpack.c.l.b16 %v349
    %v1679 = vunpack.c.h.b16 %v349
    %v1680 = vunpack.c.l.b16 %v350
    %v1681 = vunpack.c.h.b16 %v350
    %v1682 = vunpack.c.l.b16 %v351
    %v1683 = vunpack.c.h.b16 %v351
    %v1684 = vunpack.c.l.b16 %v352
    %v1685 = vunpack.c.h.b16 %v352
    %v1686 = vunpack.c.l.b16 %v353
    %v1687 = vunpack.c.h.b16 %v353
    %v1688 = vunpack.c.l.b16 %v354
    %v1689 = vunpack.c.h.b16 %v354
    %v1690 = vunpack.c.l.b16 %v355
    %v1691 = vunpack.c.h.b16 %v355
    %v1692 = vunpack.c.l.b16 %v356
    %v1693 = vunpack.c.h.b16 %v356
    %v1694 = vunpack.c.l.b16 %v357
    %v1695 = vunpack.c.h.b16 %v357
    %v1696 = vunpack.c.l.b16 %v358
    %v1697 = vunpack.c.h.b16 %v358
    %v1698 = vunpack.c.l.b16 %v359
    %v1699 = vunpack.c.h.b16 %v359
    %v1700 = vunpack.c.l.b16 %v360
    %v1701 = vunpack.c.h.b16 %v360
    %v1702 = vunpack.c.l.b16 %v361
    %v1703 = vunpack.c.h.b16 %v361
    %v1704 = vunpack.c.l.b16 %v362
    %v1705 = vunpack.c.h.b16 %v362
    %v1706 = vunpack.c.l.b16 %v363
    %v1707 = vunpack.c.h.b16 %v363
    %v1708 = vunpack.c.l.b16 %v364
    %v1709 = vunpack.c.h.b16 %v364
    %v1710 = vunpack.c.l.b16 %v365
    %v1711 = vunpack.c.h.b16 %v365
    %v1712 = vunpack.c.l.b16 %v366
    %v1713 = vunpack.c.h.b16 %v366
    %v1714 = vunpack.c.l.b16 %v367
    %v1715 = vunpack.c.h.b16 %v367
    %v1716 = vunpack.c.l.b16 %v368
    %v1717 = vunpack.c.h.b16 %v368
    %v1718 = vunpack.c.l.b16 %v369
    %v1719 = vunpack.c.h.b16 %v369
    %v1720 = vunpack.c.l.b16 %v370
    %v1721 = vunpack.c.h.b16 %v370
    %v1722 = vunpack.c.l.b16 %v371
    %v1723 = vunpack.c.h.b16 %v371
    %v1724 = vunpack.c.l.b16 %v372
    %v1725 = vunpack.c.h.b16 %v372
    %v1726 = vunpack.c.l.b16 %v373
    %v1727 = vunpack.c.h.b16 %v373
    %v1728 = vunpack.c.l.b16 %v374
    %v1729 = vunpack.c.h.b16 %v374
    %v1730 = vunpack.c.l.b16 %v375
    %v1731 = vunpack.c.h.b16 %v375
    %v1732 = vunpack.c.l.b16 %v376
    %v1733 = vunpack.c.h.b16 %v376
    %v1734 = vunpack.c.l.b16 %v377
    %v1735 = vunpack.c.h.b16 %v377
    %v1736 = vunpack.c.l.b16 %v378
    %v1737 = vunpack.c.h.b16 %v378
    %v1738 = vunpack.c.l.b16 %v379
    %v1739 = vunpack.c.h.b16 %v379
    %v1740 = vunpack.c.l.b16 %v380
    %v1741 = vunpack.c.h.b16 %v380
    %v1742 = vunpack.c.l.b16 %v381
    %v1743 = vunpack.c.h.b16 %v381
    %v1744 = vunpack.c.l.b16 %v382
    %v1745 = vunpack.c.h.b16 %v382
    %v1746 = vunpack.c.l.b16 %v383
    %v1747 = vunpack.c.h.b16 %v383
    %v1748 = vunpack.c.l.b16 %v384
    %v1749 = vunpack.c.h.b16 %v384
    %v1750 = vunpack.c.l.b16 %v385
    %v1751 = vunpack.c.h.b16 %v385
    %v1752 = vunpack.c.l.b16 %v386
    %v1753 = vunpack.c.h.b16 %v386
    %v1754 = vunpack.c.l.b16 %v387
    %v1755 = vunpack.c.h.b16 %v387
    %v1756 = vunpack.c.l.b16 %v388
    %v1757 = vunpack.c.h.b16 %v388
    %v1758 = vunpack.c.l.b16 %v389
    %v1759 = vunpack.c.h.b16 %v389
    %v1760 = vunpack.c.l.b16 %v390
    %v1761 = vunpack.c.h.b16 %v390
    %v1762 = vunpack.c.l.b16 %v391
    %v1763 = vunpack.c.h.b16 %v391
    %v1764 = vunpack.c.l.b16 %v392
    %v1765 = vunpack.c.h.b16 %v392
    %v1766 = vunpack.c.l.b16 %v393
    %v1767 = vunpack.c.h.b16 %v393
    %v1768 = vunpack.c.l.b16 %v394
    %v1769 = vunpack.c.h.b16 %v394
    %v1770 = vunpack.c.l.b16 %v395
    %v1771 = vunpack.c.h.b16 %v395
    %v1772 = vunpack.c.l.b16 %v396
    %v1773 = vunpack.c.h.b16 %v396
    %v1774 = vunpack.c.l.b16 %v397
    %v1775 = vunpack.c.h.b16 %v397
    %v1776 = vunpack.c.l.b16 %v398
    %v1777 = vunpack.c.h.b16 %v398
    %v1778 = vunpack.c.l.b16 %v399
    %v1779 = vunpack.c.h.b16 %v399
    %v1780 = vunpack.c.l.b16 %v400
    %v1781 = vunpack.c.h.b16 %v400
    %v1782 = vunpack.c.l.b16 %v401
    %v1783 = vunpack.c.h.b16 %v401
    %v1784 = vunpack.c.l.b16 %v402
    %v1785 = vunpack.c.h.b16 %v402
    %v1786 = vunpack.c.l.b16 %v403
    %v1787 = vunpack.c.h.b16 %v403
    %v1788 = vunpack.c.l.b16 %v404
    %v1789 = vunpack.c.h.b16 %v404
    %v1790 = vunpack.c.l.b16 %v405
    %v1791 = vunpack.c.h.b16 %v405
    %v1792 = vunpack.c.l.b16 %v406
    %v1793 = vunpack.c.h.b16 %v406
    %v1794 = vunpack.c.l.b16 %v407
    %v1795 = vunpack.c.h.b16 %v407
    %v1796 = vunpack.c.l.b16 %v408
    %v1797 = vunpack.c.h.b16 %v408
    %v1798 = vunpack.c.l.b16 %v409
    %v1799 = vunpack.c.h.b16 %v409
    %v1800 = vunpack.c.l.b16 %v410
    %v1801 = vunpack.c.h.b16 %v410
    %v1802 = vunpack.c.l.b16 %v411
    %v1803 = vunpack.c.h.b16 %v411
    %v1804 = vunpack.c.l.b16 %v412
    %v1805 = vunpack.c.h.b16 %v412
    %v1806 = vunpack.c.l.b16 %v413
    %v1807 = vunpack.c.h.b16 %v413
    %v1808 = vunpack.c.l.b16 %v414
    %v1809 = vunpack.c.h.b16 %v414
    %v1810 = vunpack.c.l.b16 %v415
    %v1811 = vunpack.c.h.b16 %v415
    %v1812 = vunpack.c.l.b16 %v416
    %v1813 = vunpack.c.h.b16 %v416
    %v1814 = vunpack.c.l.b16 %v417
    %v1815 = vunpack.c.h.b16 %v417
    %v1816 = vunpack.c.l.b16 %v418
    %v1817 = vunpack.c.h.b16 %v418
    %v1818 = vunpack.c.l.b16 %v419
    %v1819 = vunpack.c.h.b16 %v419
    %v1820 = vunpack.c.l.b16 %v420
    %v1821 = vunpack.c.h.b16 %v420
    %v1822 = vunpack.c.l.b16 %v421
    %v1823 = vunpack.c.h.b16 %v421
    %v1824 = vunpack.c.l.b16 %v422
    %v1825 = vunpack.c.h.b16 %v422
    %v1826 = vunpack.c.l.b16 %v423
    %v1827 = vunpack.c.h.b16 %v423
    %v1828 = vunpack.c.l.b16 %v424
    %v1829 = vunpack.c.h.b16 %v424
    %v1830 = vunpack.c.l.b16 %v425
    %v1831 = vunpack.c.h.b16 %v425
    %v1832 = vunpack.c.l.b16 %v426
    %v1833 = vunpack.c.h.b16 %v426
    %v1834 = vunpack.c.l.b16 %v427
    %v1835 = vunpack.c.h.b16 %v427
    %v1836 = vunpack.c.l.b16 %v428
    %v1837 = vunpack.c.h.b16 %v428
    %v1838 = vunpack.c.l.b16 %v429
    %v1839 = vunpack.c.h.b16 %v429
    %v1840 = vunpack.c.l.b16 %v430
    %v1841 = vunpack.c.h.b16 %v430
    %v1842 = vunpack.c.l.b16 %v431
    %v1843 = vunpack.c.h.b16 %v431
    %v1844 = vunpack.c.l.b16 %v432
    %v1845 = vunpack.c.h.b16 %v432
    %v1846 = vunpack.c.l.b16 %v433
    %v1847 = vunpack.c.h.b16 %v433
    %v1848 = vunpack.c.l.b16 %v434
    %v1849 = vunpack.c.h.b16 %v434
    %v1850 = vunpack.c.l.b16 %v435
    %v1851 = vunpack.c.h.b16 %v435
    %v1852 = vunpack.c.l.b16 %v436
    %v1853 = vunpack.c.h.b16 %v436
    %v1854 = vunpack.c.l.b16 %v437
    %v1855 = vunpack.c.h.b16 %v437
    %v1856 = vunpack.c.l.b16 %v438
    %v1857 = vunpack.c.h.b16 %v438
    %v1858 = vunpack.c.l.b16 %v439
    %v1859 = vunpack.c.h.b16 %v439
    %v1860 = vunpack.c.l.b16 %v440
    %v1861 = vunpack.c.h.b16 %v440
    %v1862 = vunpack.c.l.b16 %v441
    %v1863 = vunpack.c.h.b16 %v441
    %v1864 = vunpack.c.l.b16 %v442
    %v1865 = vunpack.c.h.b16 %v442
    %v1866 = vunpack.c.l.b16 %v443
    %v1867 = vunpack.c.h.b16 %v443
    %v1868 = vunpack.c.l.b16 %v444
    %v1869 = vunpack.c.h.b16 %v444
    %v1870 = vunpack.c.l.b16 %v445
    %v1871 = vunpack.c.h.b16 %v445
    %v1872 = vunpack.c.l.b16 %v446
    %v1873 = vunpack.c.h.b16 %v446
    %v1874 = vunpack.c.l.b16 %v447
    %v1875 = vunpack.c.h.b16 %v447
    %v1876 = vunpack.c.l.b16 %v448
    %v1877 = vunpack.c.h.b16 %v448
    %v1878 = vunpack.c.l.b16 %v449
    %v1879 = vunpack.c.h.b16 %v449
    %v1880 = vunpack.c.l.b16 %v450
    %v1881 = vunpack.c.h.b16 %v450
    %v1882 = vunpack.c.l.b16 %v451
    %v1883 = vunpack.c.h.b16 %v451
    %v1884 = vunpack.c.l.b16 %v452
    %v1885 = vunpack.c.h.b16 %v452
    %v1886 = vunpack.c.l.b16 %v453
    %v1887 = vunpack.c.h.b16 %v453
    %v1888 = vunpack.c.l.b16 %v454
    %v1889 = vunpack.c.h.b16 %v454
    %v1890 = vunpack.c.l.b16 %v455
    %v1891 = vunpack.c.h.b16 %v455
    %v1892 = vunpack.c.l.b16 %v456
    %v1893 = vunpack.c.h.b16 %v456
    %v1894 = vunpack.c.l.b16 %v457
    %v1895 = vunpack.c.h.b16 %v457
    %v1896 = vunpack.c.l.b16 %v458
    %v1897 = vunpack.c.h.b16 %v458
    %v1898 = vunpack.c.l.b16 %v459
    %v1899 = vunpack.c.h.b16 %v459
    %v1900 = vunpack.c.l.b16 %v460
    %v1901 = vunpack.c.h.b16 %v460
    %v1902 = vunpack.c.l.b16 %v461
    %v1903 = vunpack.c.h.b16 %v461
    %v1904 = vunpack.c.l.b16 %v462
    %v1905 = vunpack.c.h.b16 %v462
    %v1906 = vunpack.c.l.b16 %v463
    %v1907 = vunpack.c.h.b16 %v463
    %v1908 = vunpack.c.l.b16 %v464
    %v1909 = vunpack.c.h.b16 %v464
    %v1910 = vunpack.c.l.b16 %v465
    %v1911 = vunpack.c.h.b16 %v465
    %v1912 = vunpack.c.l.b16 %v466
    %v1913 = vunpack.c.h.b16 %v466
    %v1914 = vunpack.c.l.b16 %v467
    %v1915 = vunpack.c.h.b16 %v467
    %v1916 = vunpack.c.l.b16 %v468
    %v1917 = vunpack.c.h.b16 %v468
    %v1918 = vunpack.c.l.b16 %v469
    %v1919 = vunpack.c.h.b16 %v469
    %v1920 = vunpack.c.l.b16 %v470
    %v1921 = vunpack.c.h.b16 %v470
    %v1922 = vunpack.c.l.b16 %v471
    %v1923 = vunpack.c.h.b16 %v471
    %v1924 = vunpack.c.l.b16 %v472
    %v1925 = vunpack.c.h.b16 %v472
    %v1926 = vunpack.c.l.b16 %v473
    %v1927 = vunpack.c.h.b16 %v473
    %v1928 = vunpack.c.l.b16 %v474
    %v1929 = vunpack.c.h.b16 %v474
    %v1930 = vunpack.c.l.b16 %v475
    %v1931 = vunpack.c.h.b16 %v475
    %v1932 = vunpack.c.l.b16 %v476
    %v1933 = vunpack.c.h.b16 %v476
    %v1934 = vunpack.c.l.b16 %v477
    %v1935 = vunpack.c.h.b16 %v477
    %v1936 = vunpack.c.l.b16 %v478
    %v1937 = vunpack.c.h.b16 %v478
    %v1938 = vunpack.c.l.b16 %v479
    %v1939 = vunpack.c.h.b16 %v479
    %v1940 = vunpack.c.l.b16 %v480
    %v1941 = vunpack.c.h.b16 %v480
    %v1942 = vunpack.c.l.b16 %v481
    %v1943 = vunpack.c.h.b16 %v481
    %v1944 = vunpack.c.l.b16 %v482
    %v1945 = vunpack.c.h.b16 %v482
    %v1946 = vunpack.c.l.b16 %v483
    %v1947 = vunpack.c.h.b16 %v483
    %v1948 = vunpack.c.l.b16 %v484
    %v1949 = vunpack.c.h.b16 %v484
    %v1950 = vunpack.c.l.b16 %v485
    %v1951 = vunpack.c.h.b16 %v485
    %v1952 = vunpack.c.l.b16 %v486
    %v1953 = vunpack.c.h.b16 %v486
    %v1954 = vunpack.c.l.b16 %v487
    %v1955 = vunpack.c.h.b16 %v487
    %v1956 = vunpack.c.l.b16 %v488
    %v1957 = vunpack.c.h.b16 %v488
    %v1958 = vunpack.c.l.b16 %v489
    %v1959 = vunpack.c.h.b16 %v489
    %v1960 = vunpack.c.l.b16 %v490
    %v1961 = vunpack.c.h.b16 %v490
    %v1962 = vunpack.c.l.b16 %v491
    %v1963 = vunpack.c.h.b16 %v491
    %v1964 = vunpack.c.l.b16 %v492
    %v1965 = vunpack.c.h.b16 %v492
    %v1966 = vunpack.c.l.b16 %v493
    %v1967 = vunpack.c.h.b16 %v493
    %v1968 = vunpack.c.l.b16 %v494
    %v1969 = vunpack.c.h.b16 %v494
    %v1970 = vunpack.c.l.b16 %v495
    %v1971 = vunpack.c.h.b16 %v495
    %v1972 = vunpack.c.l.b16 %v496
    %v1973 = vunpack.c.h.b16 %v496
    %v1974 = vunpack.c.l.b16 %v497
    %v1975 = vunpack.c.h.b16 %v497
    %v1976 = vunpack.c.l.b16 %v498
    %v1977 = vunpack.c.h.b16 %v498
    %v1978 = vunpack.c.l.b16 %v499
    %v1979 = vunpack.c.h.b16 %v499
    %v1980 = vunpack.c.l.b16 %v500
    %v1981 = vunpack.c.h.b16 %v500
    %v1982 = vunpack.c.l.b16 %v501
    %v1983 = vunpack.c.h.b16 %v501
    %v1984 = vunpack.c.l.b16 %v502
    %v1985 = vunpack.c.h.b16 %v502
    %v1986 = vunpack.c.l.b16 %v503
    %v1987 = vunpack.c.h.b16 %v503
    %v1988 = vunpack.c.l.b16 %v504
    %v1989 = vunpack.c.h.b16 %v504
    %v1990 = vunpack.c.l.b16 %v505
    %v1991 = vunpack.c.h.b16 %v505
    %v1992 = vunpack.c.l.b16 %v506
    %v1993 = vunpack.c.h.b16 %v506
    %v1994 = vunpack.c.l.b16 %v507
    %v1995 = vunpack.c.h.b16 %v507
    %v1996 = vunpack.c.l.b16 %v508
    %v1997 = vunpack.c.h.b16 %v508
    %v1998 = vunpack.c.l.b16 %v509
    %v1999 = vunpack.c.h.b16 %v509
    %v2000 = vunpack.c.l.b16 %v510
    %v2001 = vunpack.c.h.b16 %v510
    %v2002 = vunpack.c.l.b16 %v511
    %v2003 = vunpack.c.h.b16 %v511
    %v2004 = vunpack.c.l.b16 %v512
    %v2005 = vunpack.c.h.b16 %v512
    %v2006 = vunpack.c.l.b16 %v513
    %v2007 = vunpack.c.h.b16 %v513
    %v2008 = vunpack.c.l.b16 %v514
    %v2009 = vunpack.c.h.b16 %v514
    %v2010 = vunpack.c.l.b16 %v515
    %v2011 = vunpack.c.h.b16 %v515
    %v2012 = vunpack.c.l.b16 %v516
    %v2013 = vunpack.c.h.b16 %v516
    %v2014 = vunpack.c.l.b16 %v517
    %v2015 = vunpack.c.h.b16 %v517
    %v2016 = vunpack.c.l.b16 %v518
    %v2017 = vunpack.c.h.b16 %v518
    %v2018 = vunpack.c.l.b16 %v519
    %v2019 = vunpack.c.h.b16 %v519
    %v2020 = vunpack.c.l.b16 %v520
    %v2021 = vunpack.c.h.b16 %v520
    %v2022 = vunpack.c.l.b16 %v521
    %v2023 = vunpack.c.h.b16 %v521
    %v2024 = vunpack.c.l.b16 %v522
    %v2025 = vunpack.c.h.b16 %v522
    %v2026 = vunpack.c.l.b16 %v523
    %v2027 = vunpack.c.h.b16 %v523
    %v2028 = vunpack.c.l.b16 %v524
    %v2029 = vunpack.c.h.b16 %v524
    %v2030 = vunpack.c.l.b16 %v525
    %v2031 = vunpack.c.h.b16 %v525
    %v2032 = vunpack.c.l.b16 %v526
    %v2033 = vunpack.c.h.b16 %v526
    %v2034 = vunpack.c.l.b16 %v527
    %v2035 = vunpack.c.h.b16 %v527
    %v2036 = vunpack.c.l.b16 %v528
    %v2037 = vunpack.c.h.b16 %v528
    %v2038 = vunpack.c.l.b16 %v529
    %v2039 = vunpack.c.h.b16 %v529
    %v2040 = vunpack.c.l.b16 %v530
    %v2041 = vunpack.c.h.b16 %v530
    %v2042 = vunpack.c.l.b16 %v531
    %v2043 = vunpack.c.h.b16 %v531
    %v2044 = vunpack.c.l.b16 %v532
    %v2045 = vunpack.c.h.b16 %v532
    %v2046 = vunpack.c.l.b16 %v533
    %v2047 = vunpack.c.h.b16 %v533
    %v2048 = vunpack.c.l.b16 %v534
    %v2049 = vunpack.c.h.b16 %v534
    %v2050 = vunpack.c.l.b16 %v535
    %v2051 = vunpack.c.h.b16 %v535
    %v2052 = vunpack.c.l.b16 %v536
    %v2053 = vunpack.c.h.b16 %v536
    %v2054 = vunpack.c.l.b16 %v537
    %v2055 = vunpack.c.h.b16 %v537
    %v2056 = vunpack.c.l.b16 %v538
    %v2057 = vunpack.c.h.b16 %v538
    %v2058 = vunpack.c.l.b16 %v539
    %v2059 = vunpack.c.h.b16 %v539
    %v2060 = vunpack.c.l.b16 %v540
    %v2061 = vunpack.c.h.b16 %v540
    %v2062 = vunpack.c.l.b16 %v541
    %v2063 = vunpack.c.h.b16 %v541
    %v2064 = vunpack.c.l.b16 %v542
    %v2065 = vunpack.c.h.b16 %v542
    %v2066 = vunpack.c.l.b16 %v543
    %v2067 = vunpack.c.h.b16 %v543
    %v2068 = vunpack.c.l.b16 %v544
    %v2069 = vunpack.c.h.b16 %v544
    %v2070 = vunpack.c.l.b16 %v545
    %v2071 = vunpack.c.h.b16 %v545
    %v2072 = vunpack.c.l.b16 %v546
    %v2073 = vunpack.c.h.b16 %v546
    %v2074 = vunpack.c.l.b16 %v547
    %v2075 = vunpack.c.h.b16 %v547
    %v2076 = vunpack.c.l.b16 %v548
    %v2077 = vunpack.c.h.b16 %v548
    %v2078 = vunpack.c.l.b16 %v549
    %v2079 = vunpack.c.h.b16 %v549
    %v2080 = vunpack.c.l.b16 %v550
    %v2081 = vunpack.c.h.b16 %v550
    %v2082 = vunpack.c.l.b16 %v551
    %v2083 = vunpack.c.h.b16 %v551
    %v2084 = vunpack.c.l.b16 %v552
    %v2085 = vunpack.c.h.b16 %v552
    %v2086 = vunpack.c.l.b16 %v553
    %v2087 = vunpack.c.h.b16 %v553
    %v2088 = vunpack.c.l.b16 %v554
    %v2089 = vunpack.c.h.b16 %v554
    %v2090 = vunpack.c.l.b16 %v555
    %v2091 = vunpack.c.h.b16 %v555
    %v2092 = vunpack.c.l.b16 %v556
    %v2093 = vunpack.c.h.b16 %v556
    %v2094 = vunpack.c.l.b16 %v557
    %v2095 = vunpack.c.h.b16 %v557
    %v2096 = vunpack.c.l.b16 %v558
    %v2097 = vunpack.c.h.b16 %v558
    %v2098 = vunpack.c.l.b16 %v559
    %v2099 = vunpack.c.h.b16 %v559
    %v2100 = vunpack.c.l.b16 %v560
    %v2101 = vunpack.c.h.b16 %v560
    %v2102 = vunpack.c.l.b16 %v561
    %v2103 = vunpack.c.h.b16 %v561
    %v2104 = vunpack.c.l.b16 %v562
    %v2105 = vunpack.c.h.b16 %v562
    %v2106 = vunpack.c.l.b16 %v563
    %v2107 = vunpack.c.h.b16 %v563
    %v2108 = vunpack.c.l.b16 %v564
    %v2109 = vunpack.c.h.b16 %v564
    %v2110 = vunpack.c.l.b16 %v565
    %v2111 = vunpack.c.h.b16 %v565
    %v2112 = vunpack.c.l.b16 %v566
    %v2113 = vunpack.c.h.b16 %v566
    %v2114 = vunpack.c.l.b16 %v567
    %v2115 = vunpack.c.h.b16 %v567
    %v2116 = vunpack.c.l.b16 %v568
    %v2117 = vunpack.c.h.b16 %v568
    %v2118 = vunpack.c.l.b16 %v569
    %v2119 = vunpack.c.h.b16 %v569
    %v2120 = vunpack.c.l.b16 %v570
    %v2121 = vunpack.c.h.b16 %v570
    %v2122 = vunpack.c.l.b16 %v571
    %v2123 = vunpack.c.h.b16 %v571
    %v2124 = vunpack.c.l.b16 %v572
    %v2125 = vunpack.c.h.b16 %v572
    %v2126 = vunpack.c.l.b16 %v573
    %v2127 = vunpack.c.h.b16 %v573
    %v2128 = vunpack.c.l.b16 %v574
    %v2129 = vunpack.c.h.b16 %v574
    %v2130 = vunpack.c.l.b16 %v575
    %v2131 = vunpack.c.h.b16 %v575
    %v2132 = vunpack.c.l.b16 %v576
    %v2133 = vunpack.c.h.b16 %v576
    %v2134 = vunpack.c.l.b16 %v577
    %v2135 = vunpack.c.h.b16 %v577
    %v2136 = vunpack.c.l.b16 %v578
    %v2137 = vunpack.c.h.b16 %v578
    %v2138 = vunpack.c.l.b16 %v579
    %v2139 = vunpack.c.h.b16 %v579
    %v2140 = vunpack.c.l.b16 %v580
    %v2141 = vunpack.c.h.b16 %v580
    %v2142 = vunpack.c.l.b16 %v581
    %v2143 = vunpack.c.h.b16 %v581
    %v2144 = vunpack.c.l.b16 %v582
    %v2145 = vunpack.c.h.b16 %v582
    %v2146 = vunpack.c.l.b16 %v583
    %v2147 = vunpack.c.h.b16 %v583
    %v2148 = vunpack.c.l.b16 %v584
    %v2149 = vunpack.c.h.b16 %v584
    %v2150 = vunpack.c.l.b16 %v585
    %v2151 = vunpack.c.h.b16 %v585
    %v2152 = vunpack.c.l.b16 %v586
    %v2153 = vunpack.c.h.b16 %v586
    %v2154 = vunpack.c.l.b16 %v587
    %v2155 = vunpack.c.h.b16 %v587
    %v2156 = vunpack.c.l.b16 %v588
    %v2157 = vunpack.c.h.b16 %v588
    %v2158 = vunpack.c.l.b16 %v589
    %v2159 = vunpack.c.h.b16 %v589
    %v2160 = vunpack.c.l.b16 %v590
    %v2161 = vunpack.c.h.b16 %v590
    %v2162 = vunpack.c.l.b16 %v591
    %v2163 = vunpack.c.h.b16 %v591
    %v2164 = vunpack.c.l.b16 %v592
    %v2165 = vunpack.c.h.b16 %v592
    %v2166 = vunpack.c.l.b16 %v593
    %v2167 = vunpack.c.h.b16 %v593
    %v2168 = vunpack.c.l.b16 %v594
    %v2169 = vunpack.c.h.b16 %v594
    %v2170 = vunpack.c.l.b16 %v595
    %v2171 = vunpack.c.h.b16 %v595
    %v2172 = vunpack.c.l.b16 %v596
    %v2173 = vunpack.c.h.b16 %v596
    %v2174 = vunpack.c.l.b16 %v597
    %v2175 = vunpack.c.h.b16 %v597
    %v2176 = vunpack.c.l.b16 %v598
    %v2177 = vunpack.c.h.b16 %v598
    %v2178 = vunpack.c.l.b16 %v599
    %v2179 = vunpack.c.h.b16 %v599
    %v2180 = vunpack.c.l.b16 %v600
    %v2181 = vunpack.c.h.b16 %v600
    %v2182 = vunpack.c.l.b16 %v601
    %v2183 = vunpack.c.h.b16 %v601
    %v2184 = vunpack.c.l.b16 %v602
    %v2185 = vunpack.c.h.b16 %v602
    %v2186 = vunpack.c.l.b16 %v603
    %v2187 = vunpack.c.h.b16 %v603
    %v2188 = vunpack.c.l.b16 %v604
    %v2189 = vunpack.c.h.b16 %v604
    %v2190 = vunpack.c.l.b16 %v605
    %v2191 = vunpack.c.h.b16 %v605
    %v2192 = vunpack.c.l.b16 %v606
    %v2193 = vunpack.c.h.b16 %v606
    %v2194 = vunpack.c.l.b16 %v607
    %v2195 = vunpack.c.h.b16 %v607
    %v2196 = vunpack.c.l.b16 %v608
    %v2197 = vunpack.c.h.b16 %v608
    %v2198 = vunpack.c.l.b16 %v609
    %v2199 = vunpack.c.h.b16 %v609
    %v2200 = vunpack.c.l.b16 %v610
    %v2201 = vunpack.c.h.b16 %v610
    %v2202 = vunpack.c.l.b16 %v611
    %v2203 = vunpack.c.h.b16 %v611
    %v2204 = vunpack.c.l.b16 %v612
    %v2205 = vunpack.c.h.b16 %v612
    %v2206 = vunpack.c.l.b16 %v613
    %v2207 = vunpack.c.h.b16 %v613
    %v2208 = vunpack.c.l.b16 %v614
    %v2209 = vunpack.c.h.b16 %v614
    %v2210 = vunpack.c.l.b16 %v615
    %v2211 = vunpack.c.h.b16 %v615
    %v2212 = vunpack.c.l.b16 %v616
    %v2213 = vunpack.c.h.b16 %v616
    %v2214 = vunpack.c.l.b16 %v617
    %v2215 = vunpack.c.h.b16 %v617
    %v2216 = vunpack.c.l.b16 %v618
    %v2217 = vunpack.c.h.b16 %v618
    %v2218 = vunpack.c.l.b16 %v619
    %v2219 = vunpack.c.h.b16 %v619
    %v2220 = vunpack.c.l.b16 %v620
    %v2221 = vunpack.c.h.b16 %v620
    %v2222 = vunpack.c.l.b16 %v621
    %v2223 = vunpack.c.h.b16 %v621
    %v2224 = vunpack.c.l.b16 %v622
    %v2225 = vunpack.c.h.b16 %v622
    %v2226 = vunpack.c.l.b16 %v623
    %v2227 = vunpack.c.h.b16 %v623
    %v2228 = vunpack.c.l.b16 %v624
    %v2229 = vunpack.c.h.b16 %v624
    %v2230 = vunpack.c.l.b16 %v625
    %v2231 = vunpack.c.h.b16 %v625
    %v2232 = vunpack.c.l.b16 %v626
    %v2233 = vunpack.c.h.b16 %v626
    %v2234 = vunpack.c.l.b16 %v627
    %v2235 = vunpack.c.h.b16 %v627
    %v2236 = vunpack.c.l.b16 %v628
    %v2237 = vunpack.c.h.b16 %v628
    %v2238 = vunpack.c.l.b16 %v629
    %v2239 = vunpack.c.h.b16 %v629
    %v2240 = vunpack.c.l.b16 %v630
    %v2241 = vunpack.c.h.b16 %v630
    %v2242 = vunpack.c.l.b16 %v631
    %v2243 = vunpack.c.h.b16 %v631
    %v2244 = vunpack.c.l.b16 %v632
    %v2245 = vunpack.c.h.b16 %v632
    %v2246 = vunpack.c.l.b16 %v633
    %v2247 = vunpack.c.h.b16 %v633
    %v2248 = vunpack.c.l.b16 %v634
    %v2249 = vunpack.c.h.b16 %v634
    %v2250 = vunpack.c.l.b16 %v635
    %v2251 = vunpack.c.h.b16 %v635
    %v2252 = vunpack.c.l.b16 %v636
    %v2253 = vunpack.c.h.b16 %v636
    %v2254 = vunpack.c.l.b16 %v637
    %v2255 = vunpack.c.h.b16 %v637
    %v2256 = vunpack.c.l.b16 %v638
    %v2257 = vunpack.c.h.b16 %v638
    %v2258 = vunpack.c.l.b16 %v639
    %v2259 = vunpack.c.h.b16 %v639
    %v2260 = vunpack.c.l.b16 %v640
    %v2261 = vunpack.c.h.b16 %v640
    %v2262 = vunpack.c.l.b16 %v641
    %v2263 = vunpack.c.h.b16 %v641
    %v2264 = vunpack.c.l.b16 %v642
    %v2265 = vunpack.c.h.b16 %v642
    %v2266 = vunpack.c.l.b16 %v643
    %v2267 = vunpack.c.h.b16 %v643
    %v2268 = vunpack.c.l.b16 %v644
    %v2269 = vunpack.c.h.b16 %v644
    %v2270 = vunpack.c.l.b16 %v645
    %v2271 = vunpack.c.h.b16 %v645
    %v2272 = vunpack.c.l.b16 %v646
    %v2273 = vunpack.c.h.b16 %v646
    %v2274 = vunpack.c.l.b16 %v647
    %v2275 = vunpack.c.h.b16 %v647
    %v2276 = vunpack.c.l.b16 %v648
    %v2277 = vunpack.c.h.b16 %v648
    %v2278 = vunpack.c.l.b16 %v649
    %v2279 = vunpack.c.h.b16 %v649
    %v2280 = vunpack.c.l.b16 %v650
    %v2281 = vunpack.c.h.b16 %v650
    %v2282 = vunpack.c.l.b16 %v651
    %v2283 = vunpack.c.h.b16 %v651
    %v2284 = vunpack.c.l.b16 %v652
    %v2285 = vunpack.c.h.b16 %v652
    %v2286 = vunpack.c.l.b16 %v653
    %v2287 = vunpack.c.h.b16 %v653
    %v2288 = vunpack.c.l.b16 %v654
    %v2289 = vunpack.c.h.b16 %v654
    %v2290 = vunpack.c.l.b16 %v655
    %v2291 = vunpack.c.h.b16 %v655
    %v2292 = vunpack.c.l.b16 %v656
    %v2293 = vunpack.c.h.b16 %v656
    %v2294 = vunpack.c.l.b16 %v657
    %v2295 = vunpack.c.h.b16 %v657
    %v2296 = vunpack.c.l.b16 %v658
    %v2297 = vunpack.c.h.b16 %v658
    %v2298 = vunpack.c.l.b16 %v659
    %v2299 = vunpack.c.h.b16 %v659
    %v2300 = vunpack.c.l.b16 %v660
    %v2301 = vunpack.c.h.b16 %v660
    %v2302 = vunpack.c.l.b16 %v661
    %v2303 = vunpack.c.h.b16 %v661
    %v2304 = vunpack.c.l.b16 %v662
    %v2305 = vunpack.c.h.b16 %v662
    %v2306 = vunpack.c.l.b16 %v663
    %v2307 = vunpack.c.h.b16 %v663
    %v2308 = vunpack.c.l.b16 %v664
    %v2309 = vunpack.c.h.b16 %v664
    %v2310 = vunpack.c.l.b16 %v665
    %v2311 = vunpack.c.h.b16 %v665
    %v2312 = vunpack.c.l.b16 %v666
    %v2313 = vunpack.c.h.b16 %v666
    %v2314 = vunpack.c.l.b16 %v667
    %v2315 = vunpack.c.h.b16 %v667
    %v2316 = vunpack.c.l.b16 %v668
    %v2317 = vunpack.c.h.b16 %v668
    %v2318 = vunpack.c.l.b16 %v669
    %v2319 = vunpack.c.h.b16 %v669
    %v2320 = vunpack.c.l.b16 %v670
    %v2321 = vunpack.c.h.b16 %v670
    %v2322 = vunpack.c.l.b16 %v671
    %v2323 = vunpack.c.h.b16 %v671
    %v2324 = vunpack.c.l.b16 %v672
    %v2325 = vunpack.c.h.b16 %v672
    %v2326 = vunpack.c.l.b16 %v673
    %v2327 = vunpack.c.h.b16 %v673
    %v2328 = vunpack.c.l.b16 %v674
    %v2329 = vunpack.c.h.b16 %v674
    %v2330 = vunpack.c.l.b16 %v675
    %v2331 = vunpack.c.h.b16 %v675
    %v2332 = vunpack.c.l.b16 %v676
    %v2333 = vunpack.c.h.b16 %v676
    %v2334 = vunpack.c.l.b16 %v677
    %v2335 = vunpack.c.h.b16 %v677
    %v2336 = vunpack.c.l.b16 %v678
    %v2337 = vunpack.c.h.b16 %v678
    %v2338 = vunpack.c.l.b16 %v679
    %v2339 = vunpack.c.h.b16 %v679
    %v2340 = vunpack.c.l.b16 %v680
    %v2341 = vunpack.c.h.b16 %v680
    %v2342 = vunpack.c.l.b16 %v681
    %v2343 = vunpack.c.h.b16 %v681
    %v2344 = vunpack.c.l.b16 %v682
    %v2345 = vunpack.c.h.b16 %v682
    %v2346 = vunpack.c.l.b16 %v683
    %v2347 = vunpack.c.h.b16 %v683
    %v2348 = vunpack.c.l.b16 %v684
    %v2349 = vunpack.c.h.b16 %v684
    %v2350 = vunpack.c.l.b16 %v685
    %v2351 = vunpack.c.h.b16 %v685
    %v2352 = vunpack.c.l.b16 %v686
    %v2353 = vunpack.c.h.b16 %v686
    %v2354 = vunpack.c.l.b16 %v687
    %v2355 = vunpack.c.h.b16 %v687
    %v2356 = vunpack.c.l.b16 %v688
    %v2357 = vunpack.c.h.b16 %v688
    %v2358 = vunpack.c.l.b16 %v689
    %v2359 = vunpack.c.h.b16 %v689
    %v2360 = vunpack.c.l.b16 %v690
    %v2361 = vunpack.c.h.b16 %v690
    %v2362 = vunpack.c.l.b16 %v691
    %v2363 = vunpack.c.h.b16 %v691
    %v2364 = vunpack.c.l.b16 %v692
    %v2365 = vunpack.c.h.b16 %v692
    %v2366 = vunpack.c.l.b16 %v693
    %v2367 = vunpack.c.h.b16 %v693
    %v2368 = vunpack.c.l.b16 %v694
    %v2369 = vunpack.c.h.b16 %v694
    %v2370 = vunpack.c.l.b16 %v695
    %v2371 = vunpack.c.h.b16 %v695
    %v2372 = vunpack.c.l.b16 %v696
    %v2373 = vunpack.c.h.b16 %v696
    %v2374 = vunpack.c.l.b16 %v697
    %v2375 = vunpack.c.h.b16 %v697
    %v2376 = vunpack.c.l.b16 %v698
    %v2377 = vunpack.c.h.b16 %v698
    %v2378 = vunpack.c.l.b16 %v699
    %v2379 = vunpack.c.h.b16 %v699
    %v2380 = vunpack.c.l.b16 %v700
    %v2381 = vunpack.c.h.b16 %v700
    %v2382 = vunpack.c.l.b16 %v701
    %v2383 = vunpack.c.h.b16 %v701
    %v2384 = vunpack.c.l.b16 %v702
    %v2385 = vunpack.c.h.b16 %v702
    %v2386 = vunpack.c.l.b16 %v703
    %v2387 = vunpack.c.h.b16 %v703
    %v2388 = vunpack.c.l.b16 %v704
    %v2389 = vunpack.c.h.b16 %v704
    %v2390 = vunpack.c.l.b16 %v705
    %v2391 = vunpack.c.h.b16 %v705
    %v2392 = vunpack.c.l.b16 %v706
    %v2393 = vunpack.c.h.b16 %v706
    %v2394 = vunpack.c.l.b16 %v707
    %v2395 = vunpack.c.h.b16 %v707
    %v2396 = vunpack.c.l.b16 %v708
    %v2397 = vunpack.c.h.b16 %v708
    %v2398 = vunpack.c.l.b16 %v709
    %v2399 = vunpack.c.h.b16 %v709
    %v2400 = vunpack.c.l.b16 %v710
    %v2401 = vunpack.c.h.b16 %v710
    %v2402 = vunpack.c.l.b16 %v711
    %v2403 = vunpack.c.h.b16 %v711
    %v2404 = vunpack.c.l.b16 %v712
    %v2405 = vunpack.c.h.b16 %v712
    %v2406 = vunpack.c.l.b16 %v713
    %v2407 = vunpack.c.h.b16 %v713
    %v2408 = vunpack.c.l.b16 %v714
    %v2409 = vunpack.c.h.b16 %v714
    %v2410 = vunpack.c.l.b16 %v715
    %v2411 = vunpack.c.h.b16 %v715
    %v2412 = vunpack.c.l.b16 %v716
    %v2413 = vunpack.c.h.b16 %v716
    %v2414 = vunpack.c.l.b16 %v717
    %v2415 = vunpack.c.h.b16 %v717
    %v2416 = vunpack.c.l.b16 %v718
    %v2417 = vunpack.c.h.b16 %v718
    %v2418 = vunpack.c.l.b16 %v719
    %v2419 = vunpack.c.h.b16 %v719
    %v2420 = vunpack.c.l.b16 %v720
    %v2421 = vunpack.c.h.b16 %v720
    %v2422 = vunpack.c.l.b16 %v721
    %v2423 = vunpack.c.h.b16 %v721
    %v2424 = vunpack.c.l.b16 %v722
    %v2425 = vunpack.c.h.b16 %v722
    %v2426 = vunpack.c.l.b16 %v723
    %v2427 = vunpack.c.h.b16 %v723
    %v2428 = vunpack.c.l.b16 %v724
    %v2429 = vunpack.c.h.b16 %v724
    %v2430 = vunpack.c.l.b16 %v725
    %v2431 = vunpack.c.h.b16 %v725
    %v2432 = vunpack.c.l.b16 %v726
    %v2433 = vunpack.c.h.b16 %v726
    %v2434 = vunpack.c.l.b16 %v727
    %v2435 = vunpack.c.h.b16 %v727
    %v2436 = vunpack.c.l.b16 %v728
    %v2437 = vunpack.c.h.b16 %v728
    %v2438 = vunpack.c.l.b16 %v729
    %v2439 = vunpack.c.h.b16 %v729
    %v2440 = vunpack.c.l.b16 %v730
    %v2441 = vunpack.c.h.b16 %v730
    %v2442 = vunpack.c.l.b16 %v731
    %v2443 = vunpack.c.h.b16 %v731
    %v2444 = vunpack.c.l.b16 %v732
    %v2445 = vunpack.c.h.b16 %v732
    %v2446 = vunpack.c.l.b16 %v733
    %v2447 = vunpack.c.h.b16 %v733
    %v2448 = vunpack.c.l.b16 %v734
    %v2449 = vunpack.c.h.b16 %v734
    %v2450 = vunpack.c.l.b16 %v735
    %v2451 = vunpack.c.h.b16 %v735
    %v2452 = vunpack.c.l.b16 %v736
    %v2453 = vunpack.c.h.b16 %v736
    %v2454 = vunpack.c.l.b16 %v737
    %v2455 = vunpack.c.h.b16 %v737
    %v2456 = vunpack.c.l.b16 %v738
    %v2457 = vunpack.c.h.b16 %v738
    %v2458 = vunpack.c.l.b16 %v739
    %v2459 = vunpack.c.h.b16 %v739
    %v2460 = vunpack.c.l.b16 %v740
    %v2461 = vunpack.c.h.b16 %v740
    %v2462 = vunpack.c.l.b16 %v741
    %v2463 = vunpack.c.h.b16 %v741
    %v2464 = vunpack.c.l.b16 %v742
    %v2465 = vunpack.c.h.b16 %v742
    %v2466 = vunpack.c.l.b16 %v743
    %v2467 = vunpack.c.h.b16 %v743
    %v2468 = vunpack.c.l.b16 %v744
    %v2469 = vunpack.c.h.b16 %v744
    %v2470 = vunpack.c.l.b16 %v745
    %v2471 = vunpack.c.h.b16 %v745
    %v2472 = vunpack.c.l.b16 %v746
    %v2473 = vunpack.c.h.b16 %v746
    %v2474 = vunpack.c.l.b16 %v747
    %v2475 = vunpack.c.h.b16 %v747
    %v2476 = vpack.c.b16 %v1330, %v1324
    %v2477 = vpack.c.b16 %v1331, %v1325
    %v2478 = vpack.c.b16 %v1332, %v1326
    %v2479 = vpack.c.b16 %v1333, %v1327
    %v2480 = vpack.c.b16 %v1334, %v1328
    %v2481 = vpack.c.b16 %v1335, %v1329
    %v2482 = vpack.c.b16 %v1342, %v1336
    %v2483 = vpack.c.b16 %v1343, %v1337
    %v2484 = vpack.c.b16 %v1344, %v1338
    %v2485 = vpack.c.b16 %v1345, %v1339
    %v2486 = vpack.c.b16 %v1346, %v1340
    %v2487 = vpack.c.b16 %v1347, %v1341
    %v2488 = vpack.c.b16 %v1354, %v1348
    %v2489 = vpack.c.b16 %v1355, %v1349
    %v2490 = vpack.c.b16 %v1356, %v1350
    %v2491 = vpack.c.b16 %v1357, %v1351
    %v2492 = vpack.c.b16 %v1358, %v1352
    %v2493 = vpack.c.b16 %v1359, %v1353
    %v2494 = vpack.c.b16 %v1366, %v1360
    %v2495 = vpack.c.b16 %v1367, %v1361
    %v2496 = vpack.c.b16 %v1368, %v1362
    %v2497 = vpack.c.b16 %v1369, %v1363
    %v2498 = vpack.c.b16 %v1370, %v1364
    %v2499 = vpack.c.b16 %v1371, %v1365
    %v2500 = vpack.c.b16 %v1378, %v1372
    %v2501 = vpack.c.b16 %v1379, %v1373
    %v2502 = vpack.c.b16 %v1380, %v1374
    %v2503 = vpack.c.b16 %v1381, %v1375
    %v2504 = vpack.c.b16 %v1382, %v1376
    %v2505 = vpack.c.b16 %v1383, %v1377
    %v2506 = vpack.c.b16 %v1390, %v1384
    %v2507 = vpack.c.b16 %v1391, %v1385
    %v2508 = vpack.c.b16 %v1392, %v1386
    %v2509 = vpack.c.b16 %v1393, %v1387
    %v2510 = vpack.c.b16 %v1394, %v1388
    %v2511 = vpack.c.b16 %v1395, %v1389
    %v2512 = vpack.c.b16 %v1402, %v1396
    %v2513 = vpack.c.b16 %v1403, %v1397
    %v2514 = vpack.c.b16 %v1404, %v1398
    %v2515 = vpack.c.b16 %v1405, %v1399
    %v2516 = vpack.c.b16 %v1406, %v1400
    %v2517 = vpack.c.b16 %v1407, %v1401
    %v2518 = vpack.c.b16 %v1414, %v1408
    %v2519 = vpack.c.b16 %v1415, %v1409
    %v2520 = vpack.c.b16 %v1416, %v1410
    %v2521 = vpack.c.b16 %v1417, %v1411
    %v2522 = vpack.c.b16 %v1418, %v1412
    %v2523 = vpack.c.b16 %v1419, %v1413
    %v2524 = vpack.c.b16 %v1426, %v1420
    %v2525 = vpack.c.b16 %v1427, %v1421
    %v2526 = vpack.c.b16 %v1428, %v1422
    %v2527 = vpack.c.b16 %v1429, %v1423
    %v2528 = vpack.c.b16 %v1430, %v1424
    %v2529 = vpack.c.b16 %v1431, %v1425
    %v2530 = vpack.c.b16 %v1438, %v1432
    %v2531 = vpack.c.b16 %v1439, %v1433
    %v2532 = vpack.c.b16 %v1440, %v1434
    %v2533 = vpack.c.b16 %v1441, %v1435
    %v2534 = vpack.c.b16 %v1442, %v1436
    %v2535 = vpack.c.b16 %v1443, %v1437
    %v2536 = vpack.c.b16 %v1450, %v1444
    %v2537 = vpack.c.b16 %v1451, %v1445
    %v2538 = vpack.c.b16 %v1452, %v1446
    %v2539 = vpack.c.b16 %v1453, %v1447
    %v2540 = vpack.c.b16 %v1454, %v1448
    %v2541 = vpack.c.b16 %v1455, %v1449
    %v2542 = vpack.c.b16 %v1462, %v1456
    %v2543 = vpack.c.b16 %v1463, %v1457
    %v2544 = vpack.c.b16 %v1464, %v1458
    %v2545 = vpack.c.b16 %v1465, %v1459
    %v2546 = vpack.c.b16 %v1466, %v1460
    %v2547 = vpack.c.b16 %v1467, %v1461
    %v2548 = vpack.c.b16 %v1474, %v1468
    %v2549 = vpack.c.b16 %v1475, %v1469
    %v2550 = vpack.c.b16 %v1476, %v1470
    %v2551 = vpack.c.b16 %v1477, %v1471
    %v2552 = vpack.c.b16 %v1478, %v1472
    %v2553 = vpack.c.b16 %v1479, %v1473
    %v2554 = vpack.c.b16 %v1486, %v1480
    %v2555 = vpack.c.b16 %v1487, %v1481
    %v2556 = vpack.c.b16 %v1488, %v1482
    %v2557 = vpack.c.b16 %v1489, %v1483
    %v2558 = vpack.c.b16 %v1490, %v1484
    %v2559 = vpack.c.b16 %v1491, %v1485
    %v2560 = vpack.c.b16 %v1498, %v1492
    %v2561 = vpack.c.b16 %v1499, %v1493
    %v2562 = vpack.c.b16 %v1500, %v1494
    %v2563 = vpack.c.b16 %v1501, %v1495
    %v2564 = vpack.c.b16 %v1502, %v1496
    %v2565 = vpack.c.b16 %v1503, %v1497
    %v2566 = vpack.c.b16 %v1510, %v1504
    %v2567 = vpack.c.b16 %v1511, %v1505
    %v2568 = vpack.c.b16 %v1512, %v1506
    %v2569 = vpack.c.b16 %v1513, %v1507
    %v2570 = vpack.c.b16 %v1514, %v1508
    %v2571 = vpack.c.b16 %v1515, %v1509
    %v2572 = vpack.c.b16 %v1522, %v1516
    %v2573 = vpack.c.b16 %v1523, %v1517
    %v2574 = vpack.c.b16 %v1524, %v1518
    %v2575 = vpack.c.b16 %v1525, %v1519
    %v2576 = vpack.c.b16 %v1526, %v1520
    %v2577 = vpack.c.b16 %v1527, %v1521
    %v2578 = vpack.c.b16 %v1534, %v1528
    %v2579 = vpack.c.b16 %v1535, %v1529
    %v2580 = vpack.c.b16 %v1536, %v1530
    %v2581 = vpack.c.b16 %v1537, %v1531
    %v2582 = vpack.c.b16 %v1538, %v1532
    %v2583 = vpack.c.b16 %v1539, %v1533
    %v2584 = vpack.c.b16 %v1546, %v1540
    %v2585 = vpack.c.b16 %v1547, %v1541
    %v2586 = vpack.c.b16 %v1548, %v1542
    %v2587 = vpack.c.b16 %v1549, %v1543
    %v2588 = vpack.c.b16 %v1550, %v1544
    %v2589 = vpack.c.b16 %v1551, %v1545
    %v2590 = vpack.c.b16 %v1558, %v1552
    %v2591 = vpack.c.b16 %v1559, %v1553
    %v2592 = vpack.c.b16 %v1560, %v1554
    %v2593 = vpack.c.b16 %v1561, %v1555
    %v2594 = vpack.c.b16 %v1562, %v1556
    %v2595 = vpack.c.b16 %v1563, %v1557
    %v2596 = vpack.c.b16 %v1570, %v1564
    %v2597 = vpack.c.b16 %v1571, %v1565
    %v2598 = vpack.c.b16 %v1572, %v1566
    %v2599 = vpack.c.b16 %v1573, %v1567
    %v2600 = vpack.c.b16 %v1574, %v1568
    %v2601 = vpack.c.b16 %v1575, %v1569
    %v2602 = vpack.c.b16 %v1582, %v1576
    %v2603 = vpack.c.b16 %v1583, %v1577
    %v2604 = vpack.c.b16 %v1584, %v1578
    %v2605 = vpack.c.b16 %v1585, %v1579
    %v2606 = vpack.c.b16 %v1586, %v1580
    %v2607 = vpack.c.b16 %v1587, %v1581
    %v2608 = vpack.c.b16 %v1594, %v1588
    %v2609 = vpack.c.b16 %v1595, %v1589
    %v2610 = vpack.c.b16 %v1596, %v1590
    %v2611 = vpack.c.b16 %v1597, %v1591
    %v2612 = vpack.c.b16 %v1598, %v1592
    %v2613 = vpack.c.b16 %v1599, %v1593
    %v2614 = vpack.c.b16 %v1606, %v1600
    %v2615 = vpack.c.b16 %v1607, %v1601
    %v2616 = vpack.c.b16 %v1608, %v1602
    %v2617 = vpack.c.b16 %v1609, %v1603
    %v2618 = vpack.c.b16 %v1610, %v1604
    %v2619 = vpack.c.b16 %v1611, %v1605
    %v2620 = vpack.c.b16 %v1618, %v1612
    %v2621 = vpack.c.b16 %v1619, %v1613
    %v2622 = vpack.c.b16 %v1620, %v1614
    %v2623 = vpack.c.b16 %v1621, %v1615
    %v2624 = vpack.c.b16 %v1622, %v1616
    %v2625 = vpack.c.b16 %v1623, %v1617
    %v2626 = vpack.c.b16 %v1630, %v1624
    %v2627 = vpack.c.b16 %v1631, %v1625
    %v2628 = vpack.c.b16 %v1632, %v1626
    %v2629 = vpack.c.b16 %v1633, %v1627
    %v2630 = vpack.c.b16 %v1634, %v1628
    %v2631 = vpack.c.b16 %v1635, %v1629
    %v2632 = vpack.c.b16 %v1642, %v1636
    %v2633 = vpack.c.b16 %v1643, %v1637
    %v2634 = vpack.c.b16 %v1644, %v1638
    %v2635 = vpack.c.b16 %v1645, %v1639
    %v2636 = vpack.c.b16 %v1646, %v1640
    %v2637 = vpack.c.b16 %v1647, %v1641
    %v2638 = vpack.c.b16 %v1654, %v1648
    %v2639 = vpack.c.b16 %v1655, %v1649
    %v2640 = vpack.c.b16 %v1656, %v1650
    %v2641 = vpack.c.b16 %v1657, %v1651
    %v2642 = vpack.c.b16 %v1658, %v1652
    %v2643 = vpack.c.b16 %v1659, %v1653
    %v2644 = vpack.c.b16 %v1666, %v1660
    %v2645 = vpack.c.b16 %v1667, %v1661
    %v2646 = vpack.c.b16 %v1668, %v1662
    %v2647 = vpack.c.b16 %v1669, %v1663
    %v2648 = vpack.c.b16 %v1670, %v1664
    %v2649 = vpack.c.b16 %v1671, %v1665
    %v2650 = vpack.c.b16 %v1678, %v1672
    %v2651 = vpack.c.b16 %v1679, %v1673
    %v2652 = vpack.c.b16 %v1680, %v1674
    %v2653 = vpack.c.b16 %v1681, %v1675
    %v2654 = vpack.c.b16 %v1682, %v1676
    %v2655 = vpack.c.b16 %v1683, %v1677
    %v2656 = vpack.c.b16 %v1690, %v1684
    %v2657 = vpack.c.b16 %v1691, %v1685
    %v2658 = vpack.c.b16 %v1692, %v1686
    %v2659 = vpack.c.b16 %v1693, %v1687
    %v2660 = vpack.c.b16 %v1694, %v1688
    %v2661 = vpack.c.b16 %v1695, %v1689
    %v2662 = vpack.c.b16 %v1702, %v1696
    %v2663 = vpack.c.b16 %v1703, %v1697
    %v2664 = vpack.c.b16 %v1704, %v1698
    %v2665 = vpack.c.b16 %v1705, %v1699
    %v2666 = vpack.c.b16 %v1706, %v1700
    %v2667 = vpack.c.b16 %v1707, %v1701
    %v2668 = vpack.c.b16 %v1714, %v1708
    %v2669 = vpack.c.b16 %v1715, %v1709
    %v2670 = vpack.c.b16 %v1716, %v1710
    %v2671 = vpack.c.b16 %v1717, %v1711
    %v2672 = vpack.c.b16 %v1718, %v1712
    %v2673 = vpack.c.b16 %v1719, %v1713
    %v2674 = vpack.c.b16 %v1726, %v1720
    %v2675 = vpack.c.b16 %v1727, %v1721
    %v2676 = vpack.c.b16 %v1728, %v1722
    %v2677 = vpack.c.b16 %v1729, %v1723
    %v2678 = vpack.c.b16 %v1730, %v1724
    %v2679 = vpack.c.b16 %v1731, %v1725
    %v2680 = vpack.c.b16 %v1738, %v1732
    %v2681 = vpack.c.b16 %v1739, %v1733
    %v2682 = vpack.c.b16 %v1740, %v1734
    %v2683 = vpack.c.b16 %v1741, %v1735
    %v2684 = vpack.c.b16 %v1742, %v1736
    %v2685 = vpack.c.b16 %v1743, %v1737
    %v2686 = vpack.c.b16 %v1750, %v1744
    %v2687 = vpack.c.b16 %v1751, %v1745
    %v2688 = vpack.c.b16 %v1752, %v1746
    %v2689 = vpack.c.b16 %v1753, %v1747
    %v2690 = vpack.c.b16 %v1754, %v1748
    %v2691 = vpack.c.b16 %v1755, %v1749
    %v2692 = vpack.c.b16 %v1762, %v1756
    %v2693 = vpack.c.b16 %v1763, %v1757
    %v2694 = vpack.c.b16 %v1764, %v1758
    %v2695 = vpack.c.b16 %v1765, %v1759
    %v2696 = vpack.c.b16 %v1766, %v1760
    %v2697 = vpack.c.b16 %v1767, %v1761
    %v2698 = vpack.c.b16 %v1774, %v1768
    %v2699 = vpack.c.b16 %v1775, %v1769
    %v2700 = vpack.c.b16 %v1776, %v1770
    %v2701 = vpack.c.b16 %v1777, %v1771
    %v2702 = vpack.c.b16 %v1778, %v1772
    %v2703 = vpack.c.b16 %v1779, %v1773
    %v2704 = vpack.c.b16 %v1786, %v1780
    %v2705 = vpack.c.b16 %v1787, %v1781
    %v2706 = vpack.c.b16 %v1788, %v1782
    %v2707 = vpack.c.b16 %v1789, %v1783
    %v2708 = vpack.c.b16 %v1790, %v1784
    %v2709 = vpack.c.b16 %v1791, %v1785
    %v2710 = vpack.c.b16 %v1798, %v1792
    %v2711 = vpack.c.b16 %v1799, %v1793
    %v2712 = vpack.c.b16 %v1800, %v1794
    %v2713 = vpack.c.b16 %v1801, %v1795
    %v2714 = vpack.c.b16 %v1802, %v1796
    %v2715 = vpack.c.b16 %v1803, %v1797
    %v2716 = vpack.c.b16 %v1810, %v1804
    %v2717 = vpack.c.b16 %v1811, %v1805
    %v2718 = vpack.c.b16 %v1812, %v1806
    %v2719 = vpack.c.b16 %v1813, %v1807
    %v2720 = vpack.c.b16 %v1814, %v1808
    %v2721 = vpack.c.b16 %v1815, %v1809
    %v2722 = vpack.c.b16 %v1822, %v1816
    %v2723 = vpack.c.b16 %v1823, %v1817
    %v2724 = vpack.c.b16 %v1824, %v1818
    %v2725 = vpack.c.b16 %v1825, %v1819
    %v2726 = vpack.c.b16 %v1826, %v1820
    %v2727 = vpack.c.b16 %v1827, %v1821
    %v2728 = vpack.c.b16 %v1834, %v1828
    %v2729 = vpack.c.b16 %v1835, %v1829
    %v2730 = vpack.c.b16 %v1836, %v1830
    %v2731 = vpack.c.b16 %v1837, %v1831
    %v2732 = vpack.c.b16 %v1838, %v1832
    %v2733 = vpack.c.b16 %v1839, %v1833
    %v2734 = vpack.c.b16 %v1846, %v1840
    %v2735 = vpack.c.b16 %v1847, %v1841
    %v2736 = vpack.c.b16 %v1848, %v1842
    %v2737 = vpack.c.b16 %v1849, %v1843
    %v2738 = vpack.c.b16 %v1850, %v1844
    %v2739 = vpack.c.b16 %v1851, %v1845
    %v2740 = vpack.c.b16 %v1858, %v1852
    %v2741 = vpack.c.b16 %v1859, %v1853
    %v2742 = vpack.c.b16 %v1860, %v1854
    %v2743 = vpack.c.b16 %v1861, %v1855
    %v2744 = vpack.c.b16 %v1862, %v1856
    %v2745 = vpack.c.b16 %v1863, %v1857
    %v2746 = vpack.c.b16 %v1870, %v1864
    %v2747 = vpack.c.b16 %v1871, %v1865
    %v2748 = vpack.c.b16 %v1872, %v1866
    %v2749 = vpack.c.b16 %v1873, %v1867
    %v2750 = vpack.c.b16 %v1874, %v1868
    %v2751 = vpack.c.b16 %v1875, %v1869
    %v2752 = vpack.c.b16 %v1882, %v1876
    %v2753 = vpack.c.b16 %v1883, %v1877
    %v2754 = vpack.c.b16 %v1884, %v1878
    %v2755 = vpack.c.b16 %v1885, %v1879
    %v2756 = vpack.c.b16 %v1886, %v1880
    %v2757 = vpack.c.b16 %v1887, %v1881
    %v2758 = vpack.c.b16 %v1894, %v1888
    %v2759 = vpack.c.b16 %v1895, %v1889
    %v2760 = vpack.c.b16 %v1896, %v1890
    %v2761 = vpack.c.b16 %v1897, %v1891
    %v2762 = vpack.c.b16 %v1898, %v1892
    %v2763 = vpack.c.b16 %v1899, %v1893
    %v2764 = vpack.c.b16 %v1906, %v1900
    %v2765 = vpack.c.b16 %v1907, %v1901
    %v2766 = vpack.c.b16 %v1908, %v1902
    %v2767 = vpack.c.b16 %v1909, %v1903
    %v2768 = vpack.c.b16 %v1910, %v1904
    %v2769 = vpack.c.b16 %v1911, %v1905
    %v2770 = vpack.c.b16 %v1918, %v1912
    %v2771 = vpack.c.b16 %v1919, %v1913
    %v2772 = vpack.c.b16 %v1920, %v1914
    %v2773 = vpack.c.b16 %v1921, %v1915
    %v2774 = vpack.c.b16 %v1922, %v1916
    %v2775 = vpack.c.b16 %v1923, %v1917
    %v2776 = vpack.c.b16 %v1930, %v1924
    %v2777 = vpack.c.b16 %v1931, %v1925
    %v2778 = vpack.c.b16 %v1932, %v1926
    %v2779 = vpack.c.b16 %v1933, %v1927
    %v2780 = vpack.c.b16 %v1934, %v1928
    %v2781 = vpack.c.b16 %v1935, %v1929
    %v2782 = vpack.c.b16 %v1942, %v1936
    %v2783 = vpack.c.b16 %v1943, %v1937
    %v2784 = vpack.c.b16 %v1944, %v1938
    %v2785 = vpack.c.b16 %v1945, %v1939
    %v2786 = vpack.c.b16 %v1946, %v1940
    %v2787 = vpack.c.b16 %v1947, %v1941
    %v2788 = vpack.c.b16 %v1954, %v1948
    %v2789 = vpack.c.b16 %v1955, %v1949
    %v2790 = vpack.c.b16 %v1956, %v1950
    %v2791 = vpack.c.b16 %v1957, %v1951
    %v2792 = vpack.c.b16 %v1958, %v1952
    %v2793 = vpack.c.b16 %v1959, %v1953
    %v2794 = vpack.c.b16 %v1966, %v1960
    %v2795 = vpack.c.b16 %v1967, %v1961
    %v2796 = vpack.c.b16 %v1968, %v1962
    %v2797 = vpack.c.b16 %v1969, %v1963
    %v2798 = vpack.c.b16 %v1970, %v1964
    %v2799 = vpack.c.b16 %v1971, %v1965
    %v2800 = vpack.c.b16 %v1978, %v1972
    %v2801 = vpack.c.b16 %v1979, %v1973
    %v2802 = vpack.c.b16 %v1980, %v1974
    %v2803 = vpack.c.b16 %v1981, %v1975
    %v2804 = vpack.c.b16 %v1982, %v1976
    %v2805 = vpack.c.b16 %v1983, %v1977
    %v2806 = vpack.c.b16 %v1990, %v1984
    %v2807 = vpack.c.b16 %v1991, %v1985
    %v2808 = vpack.c.b16 %v1992, %v1986
    %v2809 = vpack.c.b16 %v1993, %v1987
    %v2810 = vpack.c.b16 %v1994, %v1988
    %v2811 = vpack.c.b16 %v1995, %v1989
    %v2812 = vpack.c.b16 %v2002, %v1996
    %v2813 = vpack.c.b16 %v2003, %v1997
    %v2814 = vpack.c.b16 %v2004, %v1998
    %v2815 = vpack.c.b16 %v2005, %v1999
    %v2816 = vpack.c.b16 %v2006, %v2000
    %v2817 = vpack.c.b16 %v2007, %v2001
    %v2818 = vpack.c.b16 %v2014, %v2008
    %v2819 = vpack.c.b16 %v2015, %v2009
    %v2820 = vpack.c.b16 %v2016, %v2010
    %v2821 = vpack.c.b16 %v2017, %v2011
    %v2822 = vpack.c.b16 %v2018, %v2012
    %v2823 = vpack.c.b16 %v2019, %v2013
    %v2824 = vpack.c.b16 %v2026, %v2020
    %v2825 = vpack.c.b16 %v2027, %v2021
    %v2826 = vpack.c.b16 %v2028, %v2022
    %v2827 = vpack.c.b16 %v2029, %v2023
    %v2828 = vpack.c.b16 %v2030, %v2024
    %v2829 = vpack.c.b16 %v2031, %v2025
    %v2830 = vpack.c.b16 %v2038, %v2032
    %v2831 = vpack.c.b16 %v2039, %v2033
    %v2832 = vpack.c.b16 %v2040, %v2034
    %v2833 = vpack.c.b16 %v2041, %v2035
    %v2834 = vpack.c.b16 %v2042, %v2036
    %v2835 = vpack.c.b16 %v2043, %v2037
    %v2836 = vpack.c.b16 %v2050, %v2044
    %v2837 = vpack.c.b16 %v2051, %v2045
    %v2838 = vpack.c.b16 %v2052, %v2046
    %v2839 = vpack.c.b16 %v2053, %v2047
    %v2840 = vpack.c.b16 %v2054, %v2048
    %v2841 = vpack.c.b16 %v2055, %v2049
    %v2842 = vpack.c.b16 %v2062, %v2056
    %v2843 = vpack.c.b16 %v2063, %v2057
    %v2844 = vpack.c.b16 %v2064, %v2058
    %v2845 = vpack.c.b16 %v2065, %v2059
    %v2846 = vpack.c.b16 %v2066, %v2060
    %v2847 = vpack.c.b16 %v2067, %v2061
    %v2848 = vpack.c.b16 %v2074, %v2068
    %v2849 = vpack.c.b16 %v2075, %v2069
    %v2850 = vpack.c.b16 %v2076, %v2070
    %v2851 = vpack.c.b16 %v2077, %v2071
    %v2852 = vpack.c.b16 %v2078, %v2072
    %v2853 = vpack.c.b16 %v2079, %v2073
    %v2854 = vpack.c.b16 %v2086, %v2080
    %v2855 = vpack.c.b16 %v2087, %v2081
    %v2856 = vpack.c.b16 %v2088, %v2082
    %v2857 = vpack.c.b16 %v2089, %v2083
    %v2858 = vpack.c.b16 %v2090, %v2084
    %v2859 = vpack.c.b16 %v2091, %v2085
    %v2860 = vpack.c.b16 %v2098, %v2092
    %v2861 = vpack.c.b16 %v2099, %v2093
    %v2862 = vpack.c.b16 %v2100, %v2094
    %v2863 = vpack.c.b16 %v2101, %v2095
    %v2864 = vpack.c.b16 %v2102, %v2096
    %v2865 = vpack.c.b16 %v2103, %v2097
    %v2866 = vpack.c.b16 %v2110, %v2104
    %v2867 = vpack.c.b16 %v2111, %v2105
    %v2868 = vpack.c.b16 %v2112, %v2106
    %v2869 = vpack.c.b16 %v2113, %v2107
    %v2870 = vpack.c.b16 %v2114, %v2108
    %v2871 = vpack.c.b16 %v2115, %v2109
    %v2872 = vpack.c.b16 %v2122, %v2116
    %v2873 = vpack.c.b16 %v2123, %v2117
    %v2874 = vpack.c.b16 %v2124, %v2118
    %v2875 = vpack.c.b16 %v2125, %v2119
    %v2876 = vpack.c.b16 %v2126, %v2120
    %v2877 = vpack.c.b16 %v2127, %v2121
    %v2878 = vpack.c.b16 %v2134, %v2128
    %v2879 = vpack.c.b16 %v2135, %v2129
    %v2880 = vpack.c.b16 %v2136, %v2130
    %v2881 = vpack.c.b16 %v2137, %v2131
    %v2882 = vpack.c.b16 %v2138, %v2132
    %v2883 = vpack.c.b16 %v2139, %v2133
    %v2884 = vpack.c.b16 %v2146, %v2140
    %v2885 = vpack.c.b16 %v2147, %v2141
    %v2886 = vpack.c.b16 %v2148, %v2142
    %v2887 = vpack.c.b16 %v2149, %v2143
    %v2888 = vpack.c.b16 %v2150, %v2144
    %v2889 = vpack.c.b16 %v2151, %v2145
    %v2890 = vpack.c.b16 %v2158, %v2152
    %v2891 = vpack.c.b16 %v2159, %v2153
    %v2892 = vpack.c.b16 %v2160, %v2154
    %v2893 = vpack.c.b16 %v2161, %v2155
    %v2894 = vpack.c.b16 %v2162, %v2156
    %v2895 = vpack.c.b16 %v2163, %v2157
    %v2896 = vpack.c.b16 %v2170, %v2164
    %v2897 = vpack.c.b16 %v2171, %v2165
    %v2898 = vpack.c.b16 %v2172, %v2166
    %v2899 = vpack.c.b16 %v2173, %v2167
    %v2900 = vpack.c.b16 %v2174, %v2168
    %v2901 = vpack.c.b16 %v2175, %v2169
    %v2902 = vpack.c.b16 %v2182, %v2176
    %v2903 = vpack.c.b16 %v2183, %v2177
    %v2904 = vpack.c.b16 %v2184, %v2178
    %v2905 = vpack.c.b16 %v2185, %v2179
    %v2906 = vpack.c.b16 %v2186, %v2180
    %v2907 = vpack.c.b16 %v2187, %v2181
    %v2908 = vpack.c.b16 %v2194, %v2188
    %v2909 = vpack.c.b16 %v2195, %v2189
    %v2910 = vpack.c.b16 %v2196, %v2190
    %v2911 = vpack.c.b16 %v2197, %v2191
    %v2912 = vpack.c.b16 %v2198, %v2192
    %v2913 = vpack.c.b16 %v2199, %v2193
    %v2914 = vpack.c.b16 %v2206, %v2200
    %v2915 = vpack.c.b16 %v2207, %v2201
    %v2916 = vpack.c.b16 %v2208, %v2202
    %v2917 = vpack.c.b16 %v2209, %v2203
    %v2918 = vpack.c.b16 %v2210, %v2204
    %v2919 = vpack.c.b16 %v2211, %v2205
    %v2920 = vpack.c.b16 %v2218, %v2212
    %v2921 = vpack.c.b16 %v2219, %v2213
    %v2922 = vpack.c.b16 %v2220, %v2214
    %v2923 = vpack.c.b16 %v2221, %v2215
    %v2924 = vpack.c.b16 %v2222, %v2216
    %v2925 = vpack.c.b16 %v2223, %v2217
    %v2926 = vpack.c.b16 %v2230, %v2224
    %v2927 = vpack.c.b16 %v2231, %v2225
    %v2928 = vpack.c.b16 %v2232, %v2226
    %v2929 = vpack.c.b16 %v2233, %v2227
    %v2930 = vpack.c.b16 %v2234, %v2228
    %v2931 = vpack.c.b16 %v2235, %v2229
    %v2932 = vpack.c.b16 %v2242, %v2236
    %v2933 = vpack.c.b16 %v2243, %v2237
    %v2934 = vpack.c.b16 %v2244, %v2238
    %v2935 = vpack.c.b16 %v2245, %v2239
    %v2936 = vpack.c.b16 %v2246, %v2240
    %v2937 = vpack.c.b16 %v2247, %v2241
    %v2938 = vpack.c.b16 %v2254, %v2248
    %v2939 = vpack.c.b16 %v2255, %v2249
    %v2940 = vpack.c.b16 %v2256, %v2250
    %v2941 = vpack.c.b16 %v2257, %v2251
    %v2942 = vpack.c.b16 %v2258, %v2252
    %v2943 = vpack.c.b16 %v2259, %v2253
    %v2944 = vpack.c.b16 %v2266, %v2260
    %v2945 = vpack.c.b16 %v2267, %v2261
    %v2946 = vpack.c.b16 %v2268, %v2262
    %v2947 = vpack.c.b16 %v2269, %v2263
    %v2948 = vpack.c.b16 %v2270, %v2264
    %v2949 = vpack.c.b16 %v2271, %v2265
    %v2950 = vpack.c.b16 %v2278, %v2272
    %v2951 = vpack.c.b16 %v2279, %v2273
    %v2952 = vpack.c.b16 %v2280, %v2274
    %v2953 = vpack.c.b16 %v2281, %v2275
    %v2954 = vpack.c.b16 %v2282, %v2276
    %v2955 = vpack.c.b16 %v2283, %v2277
    %v2956 = vpack.c.b16 %v2290, %v2284
    %v2957 = vpack.c.b16 %v2291, %v2285
    %v2958 = vpack.c.b16 %v2292, %v2286
    %v2959 = vpack.c.b16 %v2293, %v2287
    %v2960 = vpack.c.b16 %v2294, %v2288
    %v2961 = vpack.c.b16 %v2295, %v2289
    %v2962 = vpack.c.b16 %v2302, %v2296
    %v2963 = vpack.c.b16 %v2303, %v2297
    %v2964 = vpack.c.b16 %v2304, %v2298
    %v2965 = vpack.c.b16 %v2305, %v2299
    %v2966 = vpack.c.b16 %v2306, %v2300
    %v2967 = vpack.c.b16 %v2307, %v2301
    %v2968 = vpack.c.b16 %v2314, %v2308
    %v2969 = vpack.c.b16 %v2315, %v2309
    %v2970 = vpack.c.b16 %v2316, %v2310
    %v2971 = vpack.c.b16 %v2317, %v2311
    %v2972 = vpack.c.b16 %v2318, %v2312
    %v2973 = vpack.c.b16 %v2319, %v2313
    %v2974 = vpack.c.b16 %v2326, %v2320
    %v2975 = vpack.c.b16 %v2327, %v2321
    %v2976 = vpack.c.b16 %v2328, %v2322
    %v2977 = vpack.c.b16 %v2329, %v2323
    %v2978 = vpack.c.b16 %v2330, %v2324
    %v2979 = vpack.c.b16 %v2331, %v2325
    %v2980 = vpack.c.b16 %v2338, %v2332
    %v2981 = vpack.c.b16 %v2339, %v2333
    %v2982 = vpack.c.b16 %v2340, %v2334
    %v2983 = vpack.c.b16 %v2341, %v2335
    %v2984 = vpack.c.b16 %v2342, %v2336
    %v2985 = vpack.c.b16 %v2343, %v2337
    %v2986 = vpack.c.b16 %v2350, %v2344
    %v2987 = vpack.c.b16 %v2351, %v2345
    %v2988 = vpack.c.b16 %v2352, %v2346
    %v2989 = vpack.c.b16 %v2353, %v2347
    %v2990 = vpack.c.b16 %v2354, %v2348
    %v2991 = vpack.c.b16 %v2355, %v2349
    %v2992 = vpack.c.b16 %v2362, %v2356
    %v2993 = vpack.c.b16 %v2363, %v2357
    %v2994 = vpack.c.b16 %v2364, %v2358
    %v2995 = vpack.c.b16 %v2365, %v2359
    %v2996 = vpack.c.b16 %v2366, %v2360
    %v2997 = vpack.c.b16 %v2367, %v2361
    %v2998 = vpack.c.b16 %v2374, %v2368
    %v2999 = vpack.c.b16 %v2375, %v2369
    %v3000 = vpack.c.b16 %v2376, %v2370
    %v3001 = vpack.c.b16 %v2377, %v2371
    %v3002 = vpack.c.b16 %v2378, %v2372
    %v3003 = vpack.c.b16 %v2379, %v2373
    %v3004 = vpack.c.b16 %v2386, %v2380
    %v3005 = vpack.c.b16 %v2387, %v2381
    %v3006 = vpack.c.b16 %v2388, %v2382
    %v3007 = vpack.c.b16 %v2389, %v2383
    %v3008 = vpack.c.b16 %v2390, %v2384
    %v3009 = vpack.c.b16 %v2391, %v2385
    %v3010 = vpack.c.b16 %v2398, %v2392
    %v3011 = vpack.c.b16 %v2399, %v2393
    %v3012 = vpack.c.b16 %v2400, %v2394
    %v3013 = vpack.c.b16 %v2401, %v2395
    %v3014 = vpack.c.b16 %v2402, %v2396
    %v3015 = vpack.c.b16 %v2403, %v2397
    %v3016 = vpack.c.b16 %v2410, %v2404
    %v3017 = vpack.c.b16 %v2411, %v2405
    %v3018 = vpack.c.b16 %v2412, %v2406
    %v3019 = vpack.c.b16 %v2413, %v2407
    %v3020 = vpack.c.b16 %v2414, %v2408
    %v3021 = vpack.c.b16 %v2415, %v2409
    %v3022 = vpack.c.b16 %v2422, %v2416
    %v3023 = vpack.c.b16 %v2423, %v2417
    %v3024 = vpack.c.b16 %v2424, %v2418
    %v3025 = vpack.c.b16 %v2425, %v2419
    %v3026 = vpack.c.b16 %v2426, %v2420
    %v3027 = vpack.c.b16 %v2427, %v2421
    %v3028 = vpack.c.b16 %v2434, %v2428
    %v3029 = vpack.c.b16 %v2435, %v2429
    %v3030 = vpack.c.b16 %v2436, %v2430
    %v3031 = vpack.c.b16 %v2437, %v2431
    %v3032 = vpack.c.b16 %v2438, %v2432
    %v3033 = vpack.c.b16 %v2439, %v2433
    %v3034 = vpack.c.b16 %v2446, %v2440
    %v3035 = vpack.c.b16 %v2447, %v2441
    %v3036 = vpack.c.b16 %v2448, %v2442
    %v3037 = vpack.c.b16 %v2449, %v2443
    %v3038 = vpack.c.b16 %v2450, %v2444
    %v3039 = vpack.c.b16 %v2451, %v2445
    %v3040 = vpack.c.b16 %v2458, %v2452
    %v3041 = vpack.c.b16 %v2459, %v2453
    %v3042 = vpack.c.b16 %v2460, %v2454
    %v3043 = vpack.c.b16 %v2461, %v2455
    %v3044 = vpack.c.b16 %v2462, %v2456
    %v3045 = vpack.c.b16 %v2463, %v2457
    %v3046 = vpack.c.b16 %v2470, %v2464
    %v3047 = vpack.c.b16 %v2471, %v2465
    %v3048 = vpack.c.b16 %v2472, %v2466
    %v3049 = vpack.c.b16 %v2473, %v2467
    %v3050 = vpack.c.b16 %v2474, %v2468
    %v3051 = vpack.c.b16 %v2475, %v2469
    %3628 = vmatprep.subr.bf16.mxu0 %v2477
    %3629 = vmatpush1.bf16.msra.mxu0 %v2476
    %3630 = vmatprep.subr.bf16.mxu0 %v2483
    %3631 = vmatpush1.bf16.msra.mxu0 %v2482
    %3632 = vmatprep.subr.bf16.mxu0 %v2489
    %3633 = vmatpush1.bf16.msra.mxu0 %v2488
    %3634 = vmatprep.subr.bf16.mxu0 %v2495
    %3635 = vmatpush1.bf16.msra.mxu0 %v2494
    %3636 = vmatprep.subr.bf16.mxu0 %v2501
    %3637 = vmatpush1.bf16.msra.mxu0 %v2500
    %3638 = vmatprep.subr.bf16.mxu0 %v2507
    %3639 = vmatpush1.bf16.msra.mxu0 %v2506
    %3640 = vmatprep.subr.bf16.mxu0 %v2513
    %3641 = vmatpush1.bf16.msra.mxu0 %v2512
    %3642 = vmatprep.subr.bf16.mxu0 %v2519
    %3643 = vmatpush1.bf16.msra.mxu0 %v2518
    %3644 = vmatprep.subr.bf16.mxu0 %v2525
    %3645 = vmatpush1.bf16.msra.mxu0 %v2524
    %3646 = vmatprep.subr.bf16.mxu0 %v2531
    %3647 = vmatpush1.bf16.msra.mxu0 %v2530
    %3648 = vmatprep.subr.bf16.mxu0 %v2537
    %3649 = vmatpush1.bf16.msra.mxu0 %v2536
    %3650 = vmatprep.subr.bf16.mxu0 %v2543
    %3651 = vmatpush1.bf16.msra.mxu0 %v2542
    %3652 = vmatprep.subr.bf16.mxu0 %v2549
    %3653 = vmatpush1.bf16.msra.mxu0 %v2548
    %3654 = vmatprep.subr.bf16.mxu0 %v2555
    %3655 = vmatpush1.bf16.msra.mxu0 %v2554
    %3656 = vmatprep.subr.bf16.mxu0 %v2561
    %3657 = vmatpush1.bf16.msra.mxu0 %v2560
    %3658 = vmatprep.subr.bf16.mxu0 %v2567
    %3659 = vmatpush1.bf16.msra.mxu0 %v2566
    %3660 = vmatprep.mubr.bf16.mxu0 %v125
    %3661 = vmatmul.mubr.bf16.gmra.mrb[0].mxu0 %v124
    %v3662 = vpop.f32.mrb[0].mxu0
    %v3663 = vadd.f32 0.0, %v3662
    %v3664 = vpop.f32.mrb[0].mxu0
    %v3665 = vadd.f32 0.0, %v3664
    %v3666 = vpop.f32.mrb[0].mxu0
    %v3667 = vadd.f32 0.0, %v3666
    %v3668 = vpop.f32.mrb[0].mxu0
    %v3669 = vadd.f32 0.0, %v3668
    %3670 = vmatprep.mubr.bf16.mxu0 %v137
    %3671 = vmatmul.mubr.bf16.gmra.mrb[0].mxu0 %v136
    %v3672 = vpop.f32.mrb[0].mxu0
    %v3673 = vadd.f32 0.0, %v3672
    %v3674 = vpop.f32.mrb[0].mxu0
    %v3675 = vadd.f32 0.0, %v3674
    %v3676 = vpop.f32.mrb[0].mxu0
    %v3677 = vadd.f32 0.0, %v3676
    %v3678 = vpop.f32.mrb[0].mxu0
    %v3679 = vadd.f32 0.0, %v3678
    %3680 = vmatprep.mubr.bf16.mxu0 %v149
    %3681 = vmatmul.mubr.bf16.gmra.mrb[0].mxu0 %v148
    %v3682 = vpop.f32.mrb[0].mxu0
    %v3683 = vadd.f32 0.0, %v3682
    %v3684 = vpop.f32.mrb[0].mxu0
    %v3685 = vadd.f32 0.0, %v3684
    %v3686 = vpop.f32.mrb[0].mxu0
    %v3687 = vadd.f32 0.0, %v3686
    %v3688 = vpop.f32.mrb[0].mxu0
    %v3689 = vadd.f32 0.0, %v3688
    %3690 = vmatprep.mubr.bf16.mxu0 %v161
    %3691 = vmatmul.mubr.bf16.gmra.mrb[0].mxu0 %v160
    %v3692 = vpop.f32.mrb[0].mxu0
    %v3693 = vadd.f32 0.0, %v3692
    %v3694 = vpop.f32.mrb[0].mxu0
    %v3695 = vadd.f32 0.0, %v3694
    %v3696 = vpop.f32.mrb[0].mxu0
    %v3697 = vpop.f32.mrb[0].mxu0
    %3698 = vdwg.mxu0
    %3699 = vmatprep.subr.bf16.mxu0 %v2573
    %3700 = vmatpush1.bf16.msra.mxu0 %v2572
    %3701 = vmatprep.subr.bf16.mxu0 %v2579
    %3702 = vmatpush1.bf16.msra.mxu0 %v2578
    %3703 = vmatprep.subr.bf16.mxu0 %v2585
    %3704 = vmatpush1.bf16.msra.mxu0 %v2584
    %3705 = vmatprep.subr.bf16.mxu0 %v2591
    %3706 = vmatpush1.bf16.msra.mxu0 %v2590
    %3707 = vmatprep.subr.bf16.mxu0 %v2597
    %3708 = vmatpush1.bf16.msra.mxu0 %v2596
    %3709 = vmatprep.subr.bf16.mxu0 %v2603
    %3710 = vmatpush1.bf16.msra.mxu0 %v2602
    %3711 = vmatprep.subr.bf16.mxu0 %v2609
    %3712 = vmatpush1.bf16.msra.mxu0 %v2608
    %3713 = vmatprep.subr.bf16.mxu0 %v2615
    %3714 = vmatpush1.bf16.msra.mxu0 %v2614
    %3715 = vmatprep.subr.bf16.mxu0 %v2621
    %3716 = vmatpush1.bf16.msra.mxu0 %v2620
    %3717 = vmatprep.subr.bf16.mxu0 %v2627
    %3718 = vmatpush1.bf16.msra.mxu0 %v2626
    %3719 = vmatprep.subr.bf16.mxu0 %v2633
    %3720 = vmatpush1.bf16.msra.mxu0 %v2632
    %3721 = vmatprep.subr.bf16.mxu0 %v2639
    %3722 = vmatpush1.bf16.msra.mxu0 %v2638
    %3723 = vmatprep.subr.bf16.mxu0 %v2645
    %3724 = vmatpush1.bf16.msra.mxu0 %v2644
    %3725 = vmatprep.subr.bf16.mxu0 %v2651
    %3726 = vmatpush1.bf16.msra.mxu0 %v2650
    %3727 = vmatprep.subr.bf16.mxu0 %v2657
    %3728 = vmatpush1.bf16.msra.mxu0 %v2656
    %3729 = vmatprep.subr.bf16.mxu0 %v2663
    %3730 = vmatpush1.bf16.msra.mxu0 %v2662
    %3731 = vmatprep.mubr.bf16.mxu0 %v127
    %3732 = vmatmul.mubr.bf16.gmra.mrb[0].mxu0 %v126
    %v3733 = vpop.f32.mrb[0].mxu0
    %v3734 = vadd.f32 %v3663, %v3733
    %v3735 = vpop.f32.mrb[0].mxu0
    %v3736 = vadd.f32 %v3665, %v3735
    %v3737 = vpop.f32.mrb[0].mxu0
    %v3738 = vadd.f32 %v3667, %v3737
    %v3739 = vpop.f32.mrb[0].mxu0
    %v3740 = vadd.f32 %v3669, %v3739
    %3741 = vmatprep.mubr.bf16.mxu0 %v139
    %3742 = vmatmul.mubr.bf16.gmra.mrb[0].mxu0 %v138
    %v3743 = vpop.f32.mrb[0].mxu0
    %v3744 = vadd.f32 %v3673, %v3743
    %v3745 = vpop.f32.mrb[0].mxu0
    %v3746 = vadd.f32 %v3675, %v3745
    %v3747 = vpop.f32.mrb[0].mxu0
    %v3748 = vadd.f32 %v3677, %v3747
    %v3749 = vpop.f32.mrb[0].mxu0
    %v3750 = vadd.f32 %v3679, %v3749
    %3751 = vmatprep.mubr.bf16.mxu0 %v151
    %3752 = vmatmul.mubr.bf16.gmra.mrb[0].mxu0 %v150
    %v3753 = vpop.f32.mrb[0].mxu0
    %v3754 = vadd.f32 %v3683, %v3753
    %v3755 = vpop.f32.mrb[0].mxu0
    %v3756 = vadd.f32 %v3685, %v3755
    %v3757 = vpop.f32.mrb[0].mxu0
    %v3758 = vadd.f32 %v3687, %v3757
    %v3759 = vpop.f32.mrb[0].mxu0
    %v3760 = vadd.f32 %v3689, %v3759
    %3761 = vmatprep.mubr.bf16.mxu0 %v163
    %3762 = vmatmul.mubr.bf16.gmra.mrb[0].mxu0 %v162
    %v3763 = vpop.f32.mrb[0].mxu0
    %v3764 = vadd.f32 %v3693, %v3763
    %v3765 = vpop.f32.mrb[0].mxu0
    %v3766 = vadd.f32 %v3695, %v3765
    %v3767 = vpop.f32.mrb[0].mxu0
    %v3768 = vpop.f32.mrb[0].mxu0
    %3769 = vdwg.mxu0
    %3770 = vmatprep.subr.bf16.mxu0 %v2669
    %3771 = vmatpush1.bf16.msra.mxu0 %v2668
    %3772 = vmatprep.subr.bf16.mxu0 %v2675
    %3773 = vmatpush1.bf16.msra.mxu0 %v2674
    %3774 = vmatprep.subr.bf16.mxu0 %v2681
    %3775 = vmatpush1.bf16.msra.mxu0 %v2680
    %3776 = vmatprep.subr.bf16.mxu0 %v2687
    %3777 = vmatpush1.bf16.msra.mxu0 %v2686
    %3778 = vmatprep.subr.bf16.mxu0 %v2693
    %3779 = vmatpush1.bf16.msra.mxu0 %v2692
    %3780 = vmatprep.subr.bf16.mxu0 %v2699
    %3781 = vmatpush1.bf16.msra.mxu0 %v2698
    %3782 = vmatprep.subr.bf16.mxu0 %v2705
    %3783 = vmatpush1.bf16.msra.mxu0 %v2704
    %3784 = vmatprep.subr.bf16.mxu0 %v2711
    %3785 = vmatpush1.bf16.msra.mxu0 %v2710
    %3786 = vmatprep.subr.bf16.mxu0 %v2717
    %3787 = vmatpush1.bf16.msra.mxu0 %v2716
    %3788 = vmatprep.subr.bf16.mxu0 %v2723
    %3789 = vmatpush1.bf16.msra.mxu0 %v2722
    %3790 = vmatprep.subr.bf16.mxu0 %v2729
    %3791 = vmatpush1.bf16.msra.mxu0 %v2728
    %3792 = vmatprep.subr.bf16.mxu0 %v2735
    %3793 = vmatpush1.bf16.msra.mxu0 %v2734
    %3794 = vmatprep.subr.bf16.mxu0 %v2741
    %3795 = vmatpush1.bf16.msra.mxu0 %v2740
    %3796 = vmatprep.subr.bf16.mxu0 %v2747
    %3797 = vmatpush1.bf16.msra.mxu0 %v2746
    %3798 = vmatprep.subr.bf16.mxu0 %v2753
    %3799 = vmatpush1.bf16.msra.mxu0 %v2752
    %3800 = vmatprep.subr.bf16.mxu0 %v2759
    %3801 = vmatpush1.bf16.msra.mxu0 %v2758
    %3802 = vmatprep.mubr.bf16.mxu0 %v129
    %3803 = vmatmul.mubr.bf16.gmra.mrb[0].mxu0 %v128
    %v3804 = vpop.f32.mrb[0].mxu0
    %v3805 = vadd.f32 %v3734, %v3804
    %v3806 = vpop.f32.mrb[0].mxu0
    %v3807 = vadd.f32 %v3736, %v3806
    %v3808 = vpop.f32.mrb[0].mxu0
    %v3809 = vadd.f32 %v3738, %v3808
    %v3810 = vpop.f32.mrb[0].mxu0
    %v3811 = vadd.f32 %v3740, %v3810
    %3812 = vmatprep.mubr.bf16.mxu0 %v141
    %3813 = vmatmul.mubr.bf16.gmra.mrb[0].mxu0 %v140
    %v3814 = vpop.f32.mrb[0].mxu0
    %v3815 = vadd.f32 %v3744, %v3814
    %v3816 = vpop.f32.mrb[0].mxu0
    %v3817 = vadd.f32 %v3746, %v3816
    %v3818 = vpop.f32.mrb[0].mxu0
    %v3819 = vadd.f32 %v3748, %v3818
    %v3820 = vpop.f32.mrb[0].mxu0
    %v3821 = vadd.f32 %v3750, %v3820
    %3822 = vmatprep.mubr.bf16.mxu0 %v153
    %3823 = vmatmul.mubr.bf16.gmra.mrb[0].mxu0 %v152
    %v3824 = vpop.f32.mrb[0].mxu0
    %v3825 = vadd.f32 %v3754, %v3824
    %v3826 = vpop.f32.mrb[0].mxu0
    %v3827 = vadd.f32 %v3756, %v3826
    %v3828 = vpop.f32.mrb[0].mxu0
    %v3829 = vadd.f32 %v3758, %v3828
    %v3830 = vpop.f32.mrb[0].mxu0
    %v3831 = vadd.f32 %v3760, %v3830
    %3832 = vmatprep.mubr.bf16.mxu0 %v165
    %3833 = vmatmul.mubr.bf16.gmra.mrb[0].mxu0 %v164
    %v3834 = vpop.f32.mrb[0].mxu0
    %v3835 = vadd.f32 %v3764, %v3834
    %v3836 = vpop.f32.mrb[0].mxu0
    %v3837 = vadd.f32 %v3766, %v3836
    %v3838 = vpop.f32.mrb[0].mxu0
    %v3839 = vpop.f32.mrb[0].mxu0
    %3840 = vdwg.mxu0
    %3841 = vmatprep.subr.bf16.mxu0 %v2765
    %3842 = vmatpush1.bf16.msra.mxu0 %v2764
    %3843 = vmatprep.subr.bf16.mxu0 %v2771
    %3844 = vmatpush1.bf16.msra.mxu0 %v2770
    %3845 = vmatprep.subr.bf16.mxu0 %v2777
    %3846 = vmatpush1.bf16.msra.mxu0 %v2776
    %3847 = vmatprep.subr.bf16.mxu0 %v2783
    %3848 = vmatpush1.bf16.msra.mxu0 %v2782
    %3849 = vmatprep.subr.bf16.mxu0 %v2789
    %3850 = vmatpush1.bf16.msra.mxu0 %v2788
    %3851 = vmatprep.subr.bf16.mxu0 %v2795
    %3852 = vmatpush1.bf16.msra.mxu0 %v2794
    %3853 = vmatprep.subr.bf16.mxu0 %v2801
    %3854 = vmatpush1.bf16.msra.mxu0 %v2800
    %3855 = vmatprep.subr.bf16.mxu0 %v2807
    %3856 = vmatpush1.bf16.msra.mxu0 %v2806
    %3857 = vmatprep.subr.bf16.mxu0 %v2813
    %3858 = vmatpush1.bf16.msra.mxu0 %v2812
    %3859 = vmatprep.subr.bf16.mxu0 %v2819
    %3860 = vmatpush1.bf16.msra.mxu0 %v2818
    %3861 = vmatprep.subr.bf16.mxu0 %v2825
    %3862 = vmatpush1.bf16.msra.mxu0 %v2824
    %3863 = vmatprep.subr.bf16.mxu0 %v2831
    %3864 = vmatpush1.bf16.msra.mxu0 %v2830
    %3865 = vmatprep.subr.bf16.mxu0 %v2837
    %3866 = vmatpush1.bf16.msra.mxu0 %v2836
    %3867 = vmatprep.subr.bf16.mxu0 %v2843
    %3868 = vmatpush1.bf16.msra.mxu0 %v2842
    %3869 = vmatprep.subr.bf16.mxu0 %v2849
    %3870 = vmatpush1.bf16.msra.mxu0 %v2848
    %3871 = vmatprep.subr.bf16.mxu0 %v2855
    %3872 = vmatpush1.bf16.msra.mxu0 %v2854
    %3873 = vmatprep.mubr.bf16.mxu0 %v131
    %3874 = vmatmul.mubr.bf16.gmra.mrb[0].mxu0 %v130
    %v3875 = vpop.f32.mrb[0].mxu0
    %v3876 = vadd.f32 %v3805, %v3875
    %v3877 = vpop.f32.mrb[0].mxu0
    %v3878 = vadd.f32 %v3807, %v3877
    %v3879 = vpop.f32.mrb[0].mxu0
    %v3880 = vadd.f32 %v3809, %v3879
    %v3881 = vpop.f32.mrb[0].mxu0
    %v3882 = vadd.f32 %v3811, %v3881
    %3883 = vmatprep.mubr.bf16.mxu0 %v143
    %3884 = vmatmul.mubr.bf16.gmra.mrb[0].mxu0 %v142
    %v3885 = vpop.f32.mrb[0].mxu0
    %v3886 = vadd.f32 %v3815, %v3885
    %v3887 = vpop.f32.mrb[0].mxu0
    %v3888 = vadd.f32 %v3817, %v3887
    %v3889 = vpop.f32.mrb[0].mxu0
    %v3890 = vadd.f32 %v3819, %v3889
    %v3891 = vpop.f32.mrb[0].mxu0
    %v3892 = vadd.f32 %v3821, %v3891
    %3893 = vmatprep.mubr.bf16.mxu0 %v155
    %3894 = vmatmul.mubr.bf16.gmra.mrb[0].mxu0 %v154
    %v3895 = vpop.f32.mrb[0].mxu0
    %v3896 = vadd.f32 %v3825, %v3895
    %v3897 = vpop.f32.mrb[0].mxu0
    %v3898 = vadd.f32 %v3827, %v3897
    %v3899 = vpop.f32.mrb[0].mxu0
    %v3900 = vadd.f32 %v3829, %v3899
    %v3901 = vpop.f32.mrb[0].mxu0
    %v3902 = vadd.f32 %v3831, %v3901
    %3903 = vmatprep.mubr.bf16.mxu0 %v167
    %3904 = vmatmul.mubr.bf16.gmra.mrb[0].mxu0 %v166
    %v3905 = vpop.f32.mrb[0].mxu0
    %v3906 = vadd.f32 %v3835, %v3905
    %v3907 = vpop.f32.mrb[0].mxu0
    %v3908 = vadd.f32 %v3837, %v3907
    %v3909 = vpop.f32.mrb[0].mxu0
    %v3910 = vpop.f32.mrb[0].mxu0
    %3911 = vdwg.mxu0
    %3912 = vmatprep.subr.bf16.mxu0 %v2861
    %3913 = vmatpush1.bf16.msra.mxu0 %v2860
    %3914 = vmatprep.subr.bf16.mxu0 %v2867
    %3915 = vmatpush1.bf16.msra.mxu0 %v2866
    %3916 = vmatprep.subr.bf16.mxu0 %v2873
    %3917 = vmatpush1.bf16.msra.mxu0 %v2872
    %3918 = vmatprep.subr.bf16.mxu0 %v2879
    %3919 = vmatpush1.bf16.msra.mxu0 %v2878
    %3920 = vmatprep.subr.bf16.mxu0 %v2885
    %3921 = vmatpush1.bf16.msra.mxu0 %v2884
    %3922 = vmatprep.subr.bf16.mxu0 %v2891
    %3923 = vmatpush1.bf16.msra.mxu0 %v2890
    %3924 = vmatprep.subr.bf16.mxu0 %v2897
    %3925 = vmatpush1.bf16.msra.mxu0 %v2896
    %3926 = vmatprep.subr.bf16.mxu0 %v2903
    %3927 = vmatpush1.bf16.msra.mxu0 %v2902
    %3928 = vmatprep.subr.bf16.mxu0 %v2909
    %3929 = vmatpush1.bf16.msra.mxu0 %v2908
    %3930 = vmatprep.subr.bf16.mxu0 %v2915
    %3931 = vmatpush1.bf16.msra.mxu0 %v2914
    %3932 = vmatprep.subr.bf16.mxu0 %v2921
    %3933 = vmatpush1.bf16.msra.mxu0 %v2920
    %3934 = vmatprep.subr.bf16.mxu0 %v2927
    %3935 = vmatpush1.bf16.msra.mxu0 %v2926
    %3936 = vmatprep.subr.bf16.mxu0 %v2933
    %3937 = vmatpush1.bf16.msra.mxu0 %v2932
    %3938 = vmatprep.subr.bf16.mxu0 %v2939
    %3939 = vmatpush1.bf16.msra.mxu0 %v2938
    %3940 = vmatprep.subr.bf16.mxu0 %v2945
    %3941 = vmatpush1.bf16.msra.mxu0 %v2944
    %3942 = vmatprep.subr.bf16.mxu0 %v2951
    %3943 = vmatpush1.bf16.msra.mxu0 %v2950
    %3944 = vmatprep.mubr.bf16.mxu0 %v133
    %3945 = vmatmul.mubr.bf16.gmra.mrb[0].mxu0 %v132
    %v3946 = vpop.f32.mrb[0].mxu0
    %v3947 = vadd.f32 %v3876, %v3946
    %v3948 = vpop.f32.mrb[0].mxu0
    %v3949 = vadd.f32 %v3878, %v3948
    %v3950 = vpop.f32.mrb[0].mxu0
    %v3951 = vadd.f32 %v3880, %v3950
    %v3952 = vpop.f32.mrb[0].mxu0
    %v3953 = vadd.f32 %v3882, %v3952
    %3954 = vmatprep.mubr.bf16.mxu0 %v145
    %3955 = vmatmul.mubr.bf16.gmra.mrb[0].mxu0 %v144
    %v3956 = vpop.f32.mrb[0].mxu0
    %v3957 = vadd.f32 %v3886, %v3956
    %v3958 = vpop.f32.mrb[0].mxu0
    %v3959 = vadd.f32 %v3888, %v3958
    %v3960 = vpop.f32.mrb[0].mxu0
    %v3961 = vadd.f32 %v3890, %v3960
    %v3962 = vpop.f32.mrb[0].mxu0
    %v3963 = vadd.f32 %v3892, %v3962
    %3964 = vmatprep.mubr.bf16.mxu0 %v157
    %3965 = vmatmul.mubr.bf16.gmra.mrb[0].mxu0 %v156
    %v3966 = vpop.f32.mrb[0].mxu0
    %v3967 = vadd.f32 %v3896, %v3966
    %v3968 = vpop.f32.mrb[0].mxu0
    %v3969 = vadd.f32 %v3898, %v3968
    %v3970 = vpop.f32.mrb[0].mxu0
    %v3971 = vadd.f32 %v3900, %v3970
    %v3972 = vpop.f32.mrb[0].mxu0
    %v3973 = vadd.f32 %v3902, %v3972
    %3974 = vmatprep.mubr.bf16.mxu0 %v169
    %3975 = vmatmul.mubr.bf16.gmra.mrb[0].mxu0 %v168
    %v3976 = vpop.f32.mrb[0].mxu0
    %v3977 = vadd.f32 %v3906, %v3976
    %v3978 = vpop.f32.mrb[0].mxu0
    %v3979 = vadd.f32 %v3908, %v3978
    %v3980 = vpop.f32.mrb[0].mxu0
    %v3981 = vpop.f32.mrb[0].mxu0
    %3982 = vdwg.mxu0
    %3983 = vmatprep.subr.bf16.mxu0 %v2957
    %3984 = vmatpush1.bf16.msra.mxu0 %v2956
    %3985 = vmatprep.subr.bf16.mxu0 %v2963
    %3986 = vmatpush1.bf16.msra.mxu0 %v2962
    %3987 = vmatprep.subr.bf16.mxu0 %v2969
    %3988 = vmatpush1.bf16.msra.mxu0 %v2968
    %3989 = vmatprep.subr.bf16.mxu0 %v2975
    %3990 = vmatpush1.bf16.msra.mxu0 %v2974
    %3991 = vmatprep.subr.bf16.mxu0 %v2981
    %3992 = vmatpush1.bf16.msra.mxu0 %v2980
    %3993 = vmatprep.subr.bf16.mxu0 %v2987
    %3994 = vmatpush1.bf16.msra.mxu0 %v2986
    %3995 = vmatprep.subr.bf16.mxu0 %v2993
    %3996 = vmatpush1.bf16.msra.mxu0 %v2992
    %3997 = vmatprep.subr.bf16.mxu0 %v2999
    %3998 = vmatpush1.bf16.msra.mxu0 %v2998
    %3999 = vmatprep.subr.bf16.mxu0 %v3005
    %4000 = vmatpush1.bf16.msra.mxu0 %v3004
    %4001 = vmatprep.subr.bf16.mxu0 %v3011
    %4002 = vmatpush1.bf16.msra.mxu0 %v3010
    %4003 = vmatprep.subr.bf16.mxu0 %v3017
    %4004 = vmatpush1.bf16.msra.mxu0 %v3016
    %4005 = vmatprep.subr.bf16.mxu0 %v3023
    %4006 = vmatpush1.bf16.msra.mxu0 %v3022
    %4007 = vmatprep.subr.bf16.mxu0 %v3029
    %4008 = vmatpush1.bf16.msra.mxu0 %v3028
    %4009 = vmatprep.subr.bf16.mxu0 %v3035
    %4010 = vmatpush1.bf16.msra.mxu0 %v3034
    %4011 = vmatprep.subr.bf16.mxu0 %v3041
    %4012 = vmatpush1.bf16.msra.mxu0 %v3040
    %4013 = vmatprep.subr.bf16.mxu0 %v3047
    %4014 = vmatpush1.bf16.msra.mxu0 %v3046
    %4015 = vmatprep.mubr.bf16.mxu0 %v135
    %4016 = vmatmul.mubr.bf16.gmra.mrb[0].mxu0 %v134
    %v4017 = vpop.f32.mrb[0].mxu0
    %v4018 = vadd.f32 %v3947, %v4017
    %v4019 = vpop.f32.mrb[0].mxu0
    %v4020 = vadd.f32 %v3949, %v4019
    %v4021 = vpop.f32.mrb[0].mxu0
    %v4022 = vadd.f32 %v3951, %v4021
    %v4023 = vpop.f32.mrb[0].mxu0
    %v4024 = vadd.f32 %v3953, %v4023
    %4025 = vmatprep.mubr.bf16.mxu0 %v147
    %4026 = vmatmul.mubr.bf16.gmra.mrb[0].mxu0 %v146
    %v4027 = vpop.f32.mrb[0].mxu0
    %v4028 = vadd.f32 %v3957, %v4027
    %v4029 = vpop.f32.mrb[0].mxu0
    %v4030 = vadd.f32 %v3959, %v4029
    %v4031 = vpop.f32.mrb[0].mxu0
    %v4032 = vadd.f32 %v3961, %v4031
    %v4033 = vpop.f32.mrb[0].mxu0
    %v4034 = vadd.f32 %v3963, %v4033
    %4035 = vmatprep.mubr.bf16.mxu0 %v159
    %4036 = vmatmul.mubr.bf16.gmra.mrb[0].mxu0 %v158
    %v4037 = vpop.f32.mrb[0].mxu0
    %v4038 = vadd.f32 %v3967, %v4037
    %v4039 = vpop.f32.mrb[0].mxu0
    %v4040 = vadd.f32 %v3969, %v4039
    %v4041 = vpop.f32.mrb[0].mxu0
    %v4042 = vadd.f32 %v3971, %v4041
    %v4043 = vpop.f32.mrb[0].mxu0
    %v4044 = vadd.f32 %v3973, %v4043
    %4045 = vmatprep.mubr.bf16.mxu0 %v171
    %4046 = vmatmul.mubr.bf16.gmra.mrb[0].mxu0 %v170
    %v4047 = vpop.f32.mrb[0].mxu0
    %v4048 = vadd.f32 %v3977, %v4047
    %v4049 = vpop.f32.mrb[0].mxu0
    %v4050 = vadd.f32 %v3979, %v4049
    %v4051 = vpop.f32.mrb[0].mxu0
    %v4052 = vpop.f32.mrb[0].mxu0
    %4053 = vdwg.mxu0
    %4054 = vmatprep.subr.bf16.mxu0 %v2479
    %4055 = vmatpush1.bf16.msra.mxu0 %v2478
    %4056 = vmatprep.subr.bf16.mxu0 %v2485
    %4057 = vmatpush1.bf16.msra.mxu0 %v2484
    %4058 = vmatprep.subr.bf16.mxu0 %v2491
    %4059 = vmatpush1.bf16.msra.mxu0 %v2490
    %4060 = vmatprep.subr.bf16.mxu0 %v2497
    %4061 = vmatpush1.bf16.msra.mxu0 %v2496
    %4062 = vmatprep.subr.bf16.mxu0 %v2503
    %4063 = vmatpush1.bf16.msra.mxu0 %v2502
    %4064 = vmatprep.subr.bf16.mxu0 %v2509
    %4065 = vmatpush1.bf16.msra.mxu0 %v2508
    %4066 = vmatprep.subr.bf16.mxu0 %v2515
    %4067 = vmatpush1.bf16.msra.mxu0 %v2514
    %4068 = vmatprep.subr.bf16.mxu0 %v2521
    %4069 = vmatpush1.bf16.msra.mxu0 %v2520
    %4070 = vmatprep.subr.bf16.mxu0 %v2527
    %4071 = vmatpush1.bf16.msra.mxu0 %v2526
    %4072 = vmatprep.subr.bf16.mxu0 %v2533
    %4073 = vmatpush1.bf16.msra.mxu0 %v2532
    %4074 = vmatprep.subr.bf16.mxu0 %v2539
    %4075 = vmatpush1.bf16.msra.mxu0 %v2538
    %4076 = vmatprep.subr.bf16.mxu0 %v2545
    %4077 = vmatpush1.bf16.msra.mxu0 %v2544
    %4078 = vmatprep.subr.bf16.mxu0 %v2551
    %4079 = vmatpush1.bf16.msra.mxu0 %v2550
    %4080 = vmatprep.subr.bf16.mxu0 %v2557
    %4081 = vmatpush1.bf16.msra.mxu0 %v2556
    %4082 = vmatprep.subr.bf16.mxu0 %v2563
    %4083 = vmatpush1.bf16.msra.mxu0 %v2562
    %4084 = vmatprep.subr.bf16.mxu0 %v2569
    %4085 = vmatpush1.bf16.msra.mxu0 %v2568
    %4086 = vmatprep.mubr.bf16.mxu0 %v125
    %4087 = vmatmul.mubr.bf16.gmra.mrb[0].mxu0 %v124
    %v4088 = vpop.f32.mrb[0].mxu0
    %v4089 = vadd.f32 0.0, %v4088
    %v4090 = vpop.f32.mrb[0].mxu0
    %v4091 = vadd.f32 0.0, %v4090
    %v4092 = vpop.f32.mrb[0].mxu0
    %v4093 = vadd.f32 0.0, %v4092
    %v4094 = vpop.f32.mrb[0].mxu0
    %v4095 = vadd.f32 0.0, %v4094
    %4096 = vmatprep.mubr.bf16.mxu0 %v137
    %4097 = vmatmul.mubr.bf16.gmra.mrb[0].mxu0 %v136
    %v4098 = vpop.f32.mrb[0].mxu0
    %v4099 = vadd.f32 0.0, %v4098
    %v4100 = vpop.f32.mrb[0].mxu0
    %v4101 = vadd.f32 0.0, %v4100
    %v4102 = vpop.f32.mrb[0].mxu0
    %v4103 = vadd.f32 0.0, %v4102
    %v4104 = vpop.f32.mrb[0].mxu0
    %v4105 = vadd.f32 0.0, %v4104
    %4106 = vmatprep.mubr.bf16.mxu0 %v149
    %4107 = vmatmul.mubr.bf16.gmra.mrb[0].mxu0 %v148
    %v4108 = vpop.f32.mrb[0].mxu0
    %v4109 = vadd.f32 0.0, %v4108
    %v4110 = vpop.f32.mrb[0].mxu0
    %v4111 = vadd.f32 0.0, %v4110
    %v4112 = vpop.f32.mrb[0].mxu0
    %v4113 = vadd.f32 0.0, %v4112
    %v4114 = vpop.f32.mrb[0].mxu0
    %v4115 = vadd.f32 0.0, %v4114
    %4116 = vmatprep.mubr.bf16.mxu0 %v161
    %4117 = vmatmul.mubr.bf16.gmra.mrb[0].mxu0 %v160
    %v4118 = vpop.f32.mrb[0].mxu0
    %v4119 = vadd.f32 0.0, %v4118
    %v4120 = vpop.f32.mrb[0].mxu0
    %v4121 = vadd.f32 0.0, %v4120
    %v4122 = vpop.f32.mrb[0].mxu0
    %v4123 = vpop.f32.mrb[0].mxu0
    %4124 = vdwg.mxu0
    %4125 = vmatprep.subr.bf16.mxu0 %v2575
    %4126 = vmatpush1.bf16.msra.mxu0 %v2574
    %4127 = vmatprep.subr.bf16.mxu0 %v2581
    %4128 = vmatpush1.bf16.msra.mxu0 %v2580
    %4129 = vmatprep.subr.bf16.mxu0 %v2587
    %4130 = vmatpush1.bf16.msra.mxu0 %v2586
    %4131 = vmatprep.subr.bf16.mxu0 %v2593
    %4132 = vmatpush1.bf16.msra.mxu0 %v2592
    %4133 = vmatprep.subr.bf16.mxu0 %v2599
    %4134 = vmatpush1.bf16.msra.mxu0 %v2598
    %4135 = vmatprep.subr.bf16.mxu0 %v2605
    %4136 = vmatpush1.bf16.msra.mxu0 %v2604
    %4137 = vmatprep.subr.bf16.mxu0 %v2611
    %4138 = vmatpush1.bf16.msra.mxu0 %v2610
    %4139 = vmatprep.subr.bf16.mxu0 %v2617
    %4140 = vmatpush1.bf16.msra.mxu0 %v2616
    %4141 = vmatprep.subr.bf16.mxu0 %v2623
    %4142 = vmatpush1.bf16.msra.mxu0 %v2622
    %4143 = vmatprep.subr.bf16.mxu0 %v2629
    %4144 = vmatpush1.bf16.msra.mxu0 %v2628
    %4145 = vmatprep.subr.bf16.mxu0 %v2635
    %4146 = vmatpush1.bf16.msra.mxu0 %v2634
    %4147 = vmatprep.subr.bf16.mxu0 %v2641
    %4148 = vmatpush1.bf16.msra.mxu0 %v2640
    %4149 = vmatprep.subr.bf16.mxu0 %v2647
    %4150 = vmatpush1.bf16.msra.mxu0 %v2646
    %4151 = vmatprep.subr.bf16.mxu0 %v2653
    %4152 = vmatpush1.bf16.msra.mxu0 %v2652
    %4153 = vmatprep.subr.bf16.mxu0 %v2659
    %4154 = vmatpush1.bf16.msra.mxu0 %v2658
    %4155 = vmatprep.subr.bf16.mxu0 %v2665
    %4156 = vmatpush1.bf16.msra.mxu0 %v2664
    %4157 = vmatprep.mubr.bf16.mxu0 %v127
    %4158 = vmatmul.mubr.bf16.gmra.mrb[0].mxu0 %v126
    %v4159 = vpop.f32.mrb[0].mxu0
    %v4160 = vadd.f32 %v4089, %v4159
    %v4161 = vpop.f32.mrb[0].mxu0
    %v4162 = vadd.f32 %v4091, %v4161
    %v4163 = vpop.f32.mrb[0].mxu0
    %v4164 = vadd.f32 %v4093, %v4163
    %v4165 = vpop.f32.mrb[0].mxu0
    %v4166 = vadd.f32 %v4095, %v4165
    %4167 = vmatprep.mubr.bf16.mxu0 %v139
    %4168 = vmatmul.mubr.bf16.gmra.mrb[0].mxu0 %v138
    %v4169 = vpop.f32.mrb[0].mxu0
    %v4170 = vadd.f32 %v4099, %v4169
    %v4171 = vpop.f32.mrb[0].mxu0
    %v4172 = vadd.f32 %v4101, %v4171
    %v4173 = vpop.f32.mrb[0].mxu0
    %v4174 = vadd.f32 %v4103, %v4173
    %v4175 = vpop.f32.mrb[0].mxu0
    %v4176 = vadd.f32 %v4105, %v4175
    %4177 = vmatprep.mubr.bf16.mxu0 %v151
    %4178 = vmatmul.mubr.bf16.gmra.mrb[0].mxu0 %v150
    %v4179 = vpop.f32.mrb[0].mxu0
    %v4180 = vadd.f32 %v4109, %v4179
    %v4181 = vpop.f32.mrb[0].mxu0
    %v4182 = vadd.f32 %v4111, %v4181
    %v4183 = vpop.f32.mrb[0].mxu0
    %v4184 = vadd.f32 %v4113, %v4183
    %v4185 = vpop.f32.mrb[0].mxu0
    %v4186 = vadd.f32 %v4115, %v4185
    %4187 = vmatprep.mubr.bf16.mxu0 %v163
    %4188 = vmatmul.mubr.bf16.gmra.mrb[0].mxu0 %v162
    %v4189 = vpop.f32.mrb[0].mxu0
    %v4190 = vadd.f32 %v4119, %v4189
    %v4191 = vpop.f32.mrb[0].mxu0
    %v4192 = vadd.f32 %v4121, %v4191
    %v4193 = vpop.f32.mrb[0].mxu0
    %v4194 = vpop.f32.mrb[0].mxu0
    %4195 = vdwg.mxu0
    %4196 = vmatprep.subr.bf16.mxu0 %v2671
    %4197 = vmatpush1.bf16.msra.mxu0 %v2670
    %4198 = vmatprep.subr.bf16.mxu0 %v2677
    %4199 = vmatpush1.bf16.msra.mxu0 %v2676
    %4200 = vmatprep.subr.bf16.mxu0 %v2683
    %4201 = vmatpush1.bf16.msra.mxu0 %v2682
    %4202 = vmatprep.subr.bf16.mxu0 %v2689
    %4203 = vmatpush1.bf16.msra.mxu0 %v2688
    %4204 = vmatprep.subr.bf16.mxu0 %v2695
    %4205 = vmatpush1.bf16.msra.mxu0 %v2694
    %4206 = vmatprep.subr.bf16.mxu0 %v2701
    %4207 = vmatpush1.bf16.msra.mxu0 %v2700
    %4208 = vmatprep.subr.bf16.mxu0 %v2707
    %4209 = vmatpush1.bf16.msra.mxu0 %v2706
    %4210 = vmatprep.subr.bf16.mxu0 %v2713
    %4211 = vmatpush1.bf16.msra.mxu0 %v2712
    %4212 = vmatprep.subr.bf16.mxu0 %v2719
    %4213 = vmatpush1.bf16.msra.mxu0 %v2718
    %4214 = vmatprep.subr.bf16.mxu0 %v2725
    %4215 = vmatpush1.bf16.msra.mxu0 %v2724
    %4216 = vmatprep.subr.bf16.mxu0 %v2731
    %4217 = vmatpush1.bf16.msra.mxu0 %v2730
    %4218 = vmatprep.subr.bf16.mxu0 %v2737
    %4219 = vmatpush1.bf16.msra.mxu0 %v2736
    %4220 = vmatprep.subr.bf16.mxu0 %v2743
    %4221 = vmatpush1.bf16.msra.mxu0 %v2742
    %4222 = vmatprep.subr.bf16.mxu0 %v2749
    %4223 = vmatpush1.bf16.msra.mxu0 %v2748
    %4224 = vmatprep.subr.bf16.mxu0 %v2755
    %4225 = vmatpush1.bf16.msra.mxu0 %v2754
    %4226 = vmatprep.subr.bf16.mxu0 %v2761
    %4227 = vmatpush1.bf16.msra.mxu0 %v2760
    %4228 = vmatprep.mubr.bf16.mxu0 %v129
    %4229 = vmatmul.mubr.bf16.gmra.mrb[0].mxu0 %v128
    %v4230 = vpop.f32.mrb[0].mxu0
    %v4231 = vadd.f32 %v4160, %v4230
    %v4232 = vpop.f32.mrb[0].mxu0
    %v4233 = vadd.f32 %v4162, %v4232
    %v4234 = vpop.f32.mrb[0].mxu0
    %v4235 = vadd.f32 %v4164, %v4234
    %v4236 = vpop.f32.mrb[0].mxu0
    %v4237 = vadd.f32 %v4166, %v4236
    %4238 = vmatprep.mubr.bf16.mxu0 %v141
    %4239 = vmatmul.mubr.bf16.gmra.mrb[0].mxu0 %v140
    %v4240 = vpop.f32.mrb[0].mxu0
    %v4241 = vadd.f32 %v4170, %v4240
    %v4242 = vpop.f32.mrb[0].mxu0
    %v4243 = vadd.f32 %v4172, %v4242
    %v4244 = vpop.f32.mrb[0].mxu0
    %v4245 = vadd.f32 %v4174, %v4244
    %v4246 = vpop.f32.mrb[0].mxu0
    %v4247 = vadd.f32 %v4176, %v4246
    %4248 = vmatprep.mubr.bf16.mxu0 %v153
    %4249 = vmatmul.mubr.bf16.gmra.mrb[0].mxu0 %v152
    %v4250 = vpop.f32.mrb[0].mxu0
    %v4251 = vadd.f32 %v4180, %v4250
    %v4252 = vpop.f32.mrb[0].mxu0
    %v4253 = vadd.f32 %v4182, %v4252
    %v4254 = vpop.f32.mrb[0].mxu0
    %v4255 = vadd.f32 %v4184, %v4254
    %v4256 = vpop.f32.mrb[0].mxu0
    %v4257 = vadd.f32 %v4186, %v4256
    %4258 = vmatprep.mubr.bf16.mxu0 %v165
    %4259 = vmatmul.mubr.bf16.gmra.mrb[0].mxu0 %v164
    %v4260 = vpop.f32.mrb[0].mxu0
    %v4261 = vadd.f32 %v4190, %v4260
    %v4262 = vpop.f32.mrb[0].mxu0
    %v4263 = vadd.f32 %v4192, %v4262
    %v4264 = vpop.f32.mrb[0].mxu0
    %v4265 = vpop.f32.mrb[0].mxu0
    %4266 = vdwg.mxu0
    %4267 = vmatprep.subr.bf16.mxu0 %v2767
    %4268 = vmatpush1.bf16.msra.mxu0 %v2766
    %4269 = vmatprep.subr.bf16.mxu0 %v2773
    %4270 = vmatpush1.bf16.msra.mxu0 %v2772
    %4271 = vmatprep.subr.bf16.mxu0 %v2779
    %4272 = vmatpush1.bf16.msra.mxu0 %v2778
    %4273 = vmatprep.subr.bf16.mxu0 %v2785
    %4274 = vmatpush1.bf16.msra.mxu0 %v2784
    %4275 = vmatprep.subr.bf16.mxu0 %v2791
    %4276 = vmatpush1.bf16.msra.mxu0 %v2790
    %4277 = vmatprep.subr.bf16.mxu0 %v2797
    %4278 = vmatpush1.bf16.msra.mxu0 %v2796
    %4279 = vmatprep.subr.bf16.mxu0 %v2803
    %4280 = vmatpush1.bf16.msra.mxu0 %v2802
    %4281 = vmatprep.subr.bf16.mxu0 %v2809
    %4282 = vmatpush1.bf16.msra.mxu0 %v2808
    %4283 = vmatprep.subr.bf16.mxu0 %v2815
    %4284 = vmatpush1.bf16.msra.mxu0 %v2814
    %4285 = vmatprep.subr.bf16.mxu0 %v2821
    %4286 = vmatpush1.bf16.msra.mxu0 %v2820
    %4287 = vmatprep.subr.bf16.mxu0 %v2827
    %4288 = vmatpush1.bf16.msra.mxu0 %v2826
    %4289 = vmatprep.subr.bf16.mxu0 %v2833
    %4290 = vmatpush1.bf16.msra.mxu0 %v2832
    %4291 = vmatprep.subr.bf16.mxu0 %v2839
    %4292 = vmatpush1.bf16.msra.mxu0 %v2838
    %4293 = vmatprep.subr.bf16.mxu0 %v2845
    %4294 = vmatpush1.bf16.msra.mxu0 %v2844
    %4295 = vmatprep.subr.bf16.mxu0 %v2851
    %4296 = vmatpush1.bf16.msra.mxu0 %v2850
    %4297 = vmatprep.subr.bf16.mxu0 %v2857
    %4298 = vmatpush1.bf16.msra.mxu0 %v2856
    %4299 = vmatprep.mubr.bf16.mxu0 %v131
    %4300 = vmatmul.mubr.bf16.gmra.mrb[0].mxu0 %v130
    %v4301 = vpop.f32.mrb[0].mxu0
    %v4302 = vadd.f32 %v4231, %v4301
    %v4303 = vpop.f32.mrb[0].mxu0
    %v4304 = vadd.f32 %v4233, %v4303
    %v4305 = vpop.f32.mrb[0].mxu0
    %v4306 = vadd.f32 %v4235, %v4305
    %v4307 = vpop.f32.mrb[0].mxu0
    %v4308 = vadd.f32 %v4237, %v4307
    %4309 = vmatprep.mubr.bf16.mxu0 %v143
    %4310 = vmatmul.mubr.bf16.gmra.mrb[0].mxu0 %v142
    %v4311 = vpop.f32.mrb[0].mxu0
    %v4312 = vadd.f32 %v4241, %v4311
    %v4313 = vpop.f32.mrb[0].mxu0
    %v4314 = vadd.f32 %v4243, %v4313
    %v4315 = vpop.f32.mrb[0].mxu0
    %v4316 = vadd.f32 %v4245, %v4315
    %v4317 = vpop.f32.mrb[0].mxu0
    %v4318 = vadd.f32 %v4247, %v4317
    %4319 = vmatprep.mubr.bf16.mxu0 %v155
    %4320 = vmatmul.mubr.bf16.gmra.mrb[0].mxu0 %v154
    %v4321 = vpop.f32.mrb[0].mxu0
    %v4322 = vadd.f32 %v4251, %v4321
    %v4323 = vpop.f32.mrb[0].mxu0
    %v4324 = vadd.f32 %v4253, %v4323
    %v4325 = vpop.f32.mrb[0].mxu0
    %v4326 = vadd.f32 %v4255, %v4325
    %v4327 = vpop.f32.mrb[0].mxu0
    %v4328 = vadd.f32 %v4257, %v4327
    %4329 = vmatprep.mubr.bf16.mxu0 %v167
    %4330 = vmatmul.mubr.bf16.gmra.mrb[0].mxu0 %v166
    %v4331 = vpop.f32.mrb[0].mxu0
    %v4332 = vadd.f32 %v4261, %v4331
    %v4333 = vpop.f32.mrb[0].mxu0
    %v4334 = vadd.f32 %v4263, %v4333
    %v4335 = vpop.f32.mrb[0].mxu0
    %v4336 = vpop.f32.mrb[0].mxu0
    %4337 = vdwg.mxu0
    %4338 = vmatprep.subr.bf16.mxu0 %v2863
    %4339 = vmatpush1.bf16.msra.mxu0 %v2862
    %4340 = vmatprep.subr.bf16.mxu0 %v2869
    %4341 = vmatpush1.bf16.msra.mxu0 %v2868
    %4342 = vmatprep.subr.bf16.mxu0 %v2875
    %4343 = vmatpush1.bf16.msra.mxu0 %v2874
    %4344 = vmatprep.subr.bf16.mxu0 %v2881
    %4345 = vmatpush1.bf16.msra.mxu0 %v2880
    %4346 = vmatprep.subr.bf16.mxu0 %v2887
    %4347 = vmatpush1.bf16.msra.mxu0 %v2886
    %4348 = vmatprep.subr.bf16.mxu0 %v2893
    %4349 = vmatpush1.bf16.msra.mxu0 %v2892
    %4350 = vmatprep.subr.bf16.mxu0 %v2899
    %4351 = vmatpush1.bf16.msra.mxu0 %v2898
    %4352 = vmatprep.subr.bf16.mxu0 %v2905
    %4353 = vmatpush1.bf16.msra.mxu0 %v2904
    %4354 = vmatprep.subr.bf16.mxu0 %v2911
    %4355 = vmatpush1.bf16.msra.mxu0 %v2910
    %4356 = vmatprep.subr.bf16.mxu0 %v2917
    %4357 = vmatpush1.bf16.msra.mxu0 %v2916
    %4358 = vmatprep.subr.bf16.mxu0 %v2923
    %4359 = vmatpush1.bf16.msra.mxu0 %v2922
    %4360 = vmatprep.subr.bf16.mxu0 %v2929
    %4361 = vmatpush1.bf16.msra.mxu0 %v2928
    %4362 = vmatprep.subr.bf16.mxu0 %v2935
    %4363 = vmatpush1.bf16.msra.mxu0 %v2934
    %4364 = vmatprep.subr.bf16.mxu0 %v2941
    %4365 = vmatpush1.bf16.msra.mxu0 %v2940
    %4366 = vmatprep.subr.bf16.mxu0 %v2947
    %4367 = vmatpush1.bf16.msra.mxu0 %v2946
    %4368 = vmatprep.subr.bf16.mxu0 %v2953
    %4369 = vmatpush1.bf16.msra.mxu0 %v2952
    %4370 = vmatprep.mubr.bf16.mxu0 %v133
    %4371 = vmatmul.mubr.bf16.gmra.mrb[0].mxu0 %v132
    %v4372 = vpop.f32.mrb[0].mxu0
    %v4373 = vadd.f32 %v4302, %v4372
    %v4374 = vpop.f32.mrb[0].mxu0
    %v4375 = vadd.f32 %v4304, %v4374
    %v4376 = vpop.f32.mrb[0].mxu0
    %v4377 = vadd.f32 %v4306, %v4376
    %v4378 = vpop.f32.mrb[0].mxu0
    %v4379 = vadd.f32 %v4308, %v4378
    %4380 = vmatprep.mubr.bf16.mxu0 %v145
    %4381 = vmatmul.mubr.bf16.gmra.mrb[0].mxu0 %v144
    %v4382 = vpop.f32.mrb[0].mxu0
    %v4383 = vadd.f32 %v4312, %v4382
    %v4384 = vpop.f32.mrb[0].mxu0
    %v4385 = vadd.f32 %v4314, %v4384
    %v4386 = vpop.f32.mrb[0].mxu0
    %v4387 = vadd.f32 %v4316, %v4386
    %v4388 = vpop.f32.mrb[0].mxu0
    %v4389 = vadd.f32 %v4318, %v4388
    %4390 = vmatprep.mubr.bf16.mxu0 %v157
    %4391 = vmatmul.mubr.bf16.gmra.mrb[0].mxu0 %v156
    %v4392 = vpop.f32.mrb[0].mxu0
    %v4393 = vadd.f32 %v4322, %v4392
    %v4394 = vpop.f32.mrb[0].mxu0
    %v4395 = vadd.f32 %v4324, %v4394
    %v4396 = vpop.f32.mrb[0].mxu0
    %v4397 = vadd.f32 %v4326, %v4396
    %v4398 = vpop.f32.mrb[0].mxu0
    %v4399 = vadd.f32 %v4328, %v4398
    %4400 = vmatprep.mubr.bf16.mxu0 %v169
    %4401 = vmatmul.mubr.bf16.gmra.mrb[0].mxu0 %v168
    %v4402 = vpop.f32.mrb[0].mxu0
    %v4403 = vadd.f32 %v4332, %v4402
    %v4404 = vpop.f32.mrb[0].mxu0
    %v4405 = vadd.f32 %v4334, %v4404
    %v4406 = vpop.f32.mrb[0].mxu0
    %v4407 = vpop.f32.mrb[0].mxu0
    %4408 = vdwg.mxu0
    %4409 = vmatprep.subr.bf16.mxu0 %v2959
    %4410 = vmatpush1.bf16.msra.mxu0 %v2958
    %4411 = vmatprep.subr.bf16.mxu0 %v2965
    %4412 = vmatpush1.bf16.msra.mxu0 %v2964
    %4413 = vmatprep.subr.bf16.mxu0 %v2971
    %4414 = vmatpush1.bf16.msra.mxu0 %v2970
    %4415 = vmatprep.subr.bf16.mxu0 %v2977
    %4416 = vmatpush1.bf16.msra.mxu0 %v2976
    %4417 = vmatprep.subr.bf16.mxu0 %v2983
    %4418 = vmatpush1.bf16.msra.mxu0 %v2982
    %4419 = vmatprep.subr.bf16.mxu0 %v2989
    %4420 = vmatpush1.bf16.msra.mxu0 %v2988
    %4421 = vmatprep.subr.bf16.mxu0 %v2995
    %4422 = vmatpush1.bf16.msra.mxu0 %v2994
    %4423 = vmatprep.subr.bf16.mxu0 %v3001
    %4424 = vmatpush1.bf16.msra.mxu0 %v3000
    %4425 = vmatprep.subr.bf16.mxu0 %v3007
    %4426 = vmatpush1.bf16.msra.mxu0 %v3006
    %4427 = vmatprep.subr.bf16.mxu0 %v3013
    %4428 = vmatpush1.bf16.msra.mxu0 %v3012
    %4429 = vmatprep.subr.bf16.mxu0 %v3019
    %4430 = vmatpush1.bf16.msra.mxu0 %v3018
    %4431 = vmatprep.subr.bf16.mxu0 %v3025
    %4432 = vmatpush1.bf16.msra.mxu0 %v3024
    %4433 = vmatprep.subr.bf16.mxu0 %v3031
    %4434 = vmatpush1.bf16.msra.mxu0 %v3030
    %4435 = vmatprep.subr.bf16.mxu0 %v3037
    %4436 = vmatpush1.bf16.msra.mxu0 %v3036
    %4437 = vmatprep.subr.bf16.mxu0 %v3043
    %4438 = vmatpush1.bf16.msra.mxu0 %v3042
    %4439 = vmatprep.subr.bf16.mxu0 %v3049
    %4440 = vmatpush1.bf16.msra.mxu0 %v3048
    %4441 = vmatprep.mubr.bf16.mxu0 %v135
    %4442 = vmatmul.mubr.bf16.gmra.mrb[0].mxu0 %v134
    %v4443 = vpop.f32.mrb[0].mxu0
    %v4444 = vadd.f32 %v4373, %v4443
    %v4445 = vpop.f32.mrb[0].mxu0
    %v4446 = vadd.f32 %v4375, %v4445
    %v4447 = vpop.f32.mrb[0].mxu0
    %v4448 = vadd.f32 %v4377, %v4447
    %v4449 = vpop.f32.mrb[0].mxu0
    %v4450 = vadd.f32 %v4379, %v4449
    %4451 = vmatprep.mubr.bf16.mxu0 %v147
    %4452 = vmatmul.mubr.bf16.gmra.mrb[0].mxu0 %v146
    %v4453 = vpop.f32.mrb[0].mxu0
    %v4454 = vadd.f32 %v4383, %v4453
    %v4455 = vpop.f32.mrb[0].mxu0
    %v4456 = vadd.f32 %v4385, %v4455
    %v4457 = vpop.f32.mrb[0].mxu0
    %v4458 = vadd.f32 %v4387, %v4457
    %v4459 = vpop.f32.mrb[0].mxu0
    %v4460 = vadd.f32 %v4389, %v4459
    %4461 = vmatprep.mubr.bf16.mxu0 %v159
    %4462 = vmatmul.mubr.bf16.gmra.mrb[0].mxu0 %v158
    %v4463 = vpop.f32.mrb[0].mxu0
    %v4464 = vadd.f32 %v4393, %v4463
    %v4465 = vpop.f32.mrb[0].mxu0
    %v4466 = vadd.f32 %v4395, %v4465
    %v4467 = vpop.f32.mrb[0].mxu0
    %v4468 = vadd.f32 %v4397, %v4467
    %v4469 = vpop.f32.mrb[0].mxu0
    %v4470 = vadd.f32 %v4399, %v4469
    %4471 = vmatprep.mubr.bf16.mxu0 %v171
    %4472 = vmatmul.mubr.bf16.gmra.mrb[0].mxu0 %v170
    %v4473 = vpop.f32.mrb[0].mxu0
    %v4474 = vadd.f32 %v4403, %v4473
    %v4475 = vpop.f32.mrb[0].mxu0
    %v4476 = vadd.f32 %v4405, %v4475
    %v4477 = vpop.f32.mrb[0].mxu0
    %v4478 = vpop.f32.mrb[0].mxu0
    %4479 = vdwg.mxu0
    %4480 = vmatprep.subr.bf16.mxu0 %v2481
    %4481 = vmatpush1.bf16.msra.mxu0 %v2480
    %4482 = vmatprep.subr.bf16.mxu0 %v2487
    %4483 = vmatpush1.bf16.msra.mxu0 %v2486
    %4484 = vmatprep.subr.bf16.mxu0 %v2493
    %4485 = vmatpush1.bf16.msra.mxu0 %v2492
    %4486 = vmatprep.subr.bf16.mxu0 %v2499
    %4487 = vmatpush1.bf16.msra.mxu0 %v2498
    %4488 = vmatprep.subr.bf16.mxu0 %v2505
    %4489 = vmatpush1.bf16.msra.mxu0 %v2504
    %4490 = vmatprep.subr.bf16.mxu0 %v2511
    %4491 = vmatpush1.bf16.msra.mxu0 %v2510
    %4492 = vmatprep.subr.bf16.mxu0 %v2517
    %4493 = vmatpush1.bf16.msra.mxu0 %v2516
    %4494 = vmatprep.subr.bf16.mxu0 %v2523
    %4495 = vmatpush1.bf16.msra.mxu0 %v2522
    %4496 = vmatprep.subr.bf16.mxu0 %v2529
    %4497 = vmatpush1.bf16.msra.mxu0 %v2528
    %4498 = vmatprep.subr.bf16.mxu0 %v2535
    %4499 = vmatpush1.bf16.msra.mxu0 %v2534
    %4500 = vmatprep.subr.bf16.mxu0 %v2541
    %4501 = vmatpush1.bf16.msra.mxu0 %v2540
    %4502 = vmatprep.subr.bf16.mxu0 %v2547
    %4503 = vmatpush1.bf16.msra.mxu0 %v2546
    %4504 = vmatprep.subr.bf16.mxu0 %v2553
    %4505 = vmatpush1.bf16.msra.mxu0 %v2552
    %4506 = vmatprep.subr.bf16.mxu0 %v2559
    %4507 = vmatpush1.bf16.msra.mxu0 %v2558
    %4508 = vmatprep.subr.bf16.mxu0 %v2565
    %4509 = vmatpush1.bf16.msra.mxu0 %v2564
    %4510 = vmatprep.subr.bf16.mxu0 %v2571
    %4511 = vmatpush1.bf16.msra.mxu0 %v2570
    %4512 = vmatprep.mubr.bf16.mxu0 %v125
    %4513 = vmatmul.mubr.bf16.gmra.mrb[0].mxu0 %v124
    %v4514 = vpop.f32.mrb[0].mxu0
    %v4515 = vadd.f32 0.0, %v4514
    %v4516 = vpop.f32.mrb[0].mxu0
    %v4517 = vadd.f32 0.0, %v4516
    %v4518 = vpop.f32.mrb[0].mxu0
    %v4519 = vadd.f32 0.0, %v4518
    %v4520 = vpop.f32.mrb[0].mxu0
    %v4521 = vadd.f32 0.0, %v4520
    %4522 = vmatprep.mubr.bf16.mxu0 %v137
    %4523 = vmatmul.mubr.bf16.gmra.mrb[0].mxu0 %v136
    %v4524 = vpop.f32.mrb[0].mxu0
    %v4525 = vadd.f32 0.0, %v4524
    %v4526 = vpop.f32.mrb[0].mxu0
    %v4527 = vadd.f32 0.0, %v4526
    %v4528 = vpop.f32.mrb[0].mxu0
    %v4529 = vadd.f32 0.0, %v4528
    %v4530 = vpop.f32.mrb[0].mxu0
    %v4531 = vadd.f32 0.0, %v4530
    %4532 = vmatprep.mubr.bf16.mxu0 %v149
    %4533 = vmatmul.mubr.bf16.gmra.mrb[0].mxu0 %v148
    %v4534 = vpop.f32.mrb[0].mxu0
    %v4535 = vadd.f32 0.0, %v4534
    %v4536 = vpop.f32.mrb[0].mxu0
    %v4537 = vadd.f32 0.0, %v4536
    %v4538 = vpop.f32.mrb[0].mxu0
    %v4539 = vadd.f32 0.0, %v4538
    %v4540 = vpop.f32.mrb[0].mxu0
    %v4541 = vadd.f32 0.0, %v4540
    %4542 = vmatprep.mubr.bf16.mxu0 %v161
    %4543 = vmatmul.mubr.bf16.gmra.mrb[0].mxu0 %v160
    %v4544 = vpop.f32.mrb[0].mxu0
    %v4545 = vadd.f32 0.0, %v4544
    %v4546 = vpop.f32.mrb[0].mxu0
    %v4547 = vadd.f32 0.0, %v4546
    %v4548 = vpop.f32.mrb[0].mxu0
    %v4549 = vpop.f32.mrb[0].mxu0
    %4550 = vdwg.mxu0
    %4551 = vmatprep.subr.bf16.mxu0 %v2577
    %4552 = vmatpush1.bf16.msra.mxu0 %v2576
    %4553 = vmatprep.subr.bf16.mxu0 %v2583
    %4554 = vmatpush1.bf16.msra.mxu0 %v2582
    %4555 = vmatprep.subr.bf16.mxu0 %v2589
    %4556 = vmatpush1.bf16.msra.mxu0 %v2588
    %4557 = vmatprep.subr.bf16.mxu0 %v2595
    %4558 = vmatpush1.bf16.msra.mxu0 %v2594
    %4559 = vmatprep.subr.bf16.mxu0 %v2601
    %4560 = vmatpush1.bf16.msra.mxu0 %v2600
    %4561 = vmatprep.subr.bf16.mxu0 %v2607
    %4562 = vmatpush1.bf16.msra.mxu0 %v2606
    %4563 = vmatprep.subr.bf16.mxu0 %v2613
    %4564 = vmatpush1.bf16.msra.mxu0 %v2612
    %4565 = vmatprep.subr.bf16.mxu0 %v2619
    %4566 = vmatpush1.bf16.msra.mxu0 %v2618
    %4567 = vmatprep.subr.bf16.mxu0 %v2625
    %4568 = vmatpush1.bf16.msra.mxu0 %v2624
    %4569 = vmatprep.subr.bf16.mxu0 %v2631
    %4570 = vmatpush1.bf16.msra.mxu0 %v2630
    %4571 = vmatprep.subr.bf16.mxu0 %v2637
    %4572 = vmatpush1.bf16.msra.mxu0 %v2636
    %4573 = vmatprep.subr.bf16.mxu0 %v2643
    %4574 = vmatpush1.bf16.msra.mxu0 %v2642
    %4575 = vmatprep.subr.bf16.mxu0 %v2649
    %4576 = vmatpush1.bf16.msra.mxu0 %v2648
    %4577 = vmatprep.subr.bf16.mxu0 %v2655
    %4578 = vmatpush1.bf16.msra.mxu0 %v2654
    %4579 = vmatprep.subr.bf16.mxu0 %v2661
    %4580 = vmatpush1.bf16.msra.mxu0 %v2660
    %4581 = vmatprep.subr.bf16.mxu0 %v2667
    %4582 = vmatpush1.bf16.msra.mxu0 %v2666
    %4583 = vmatprep.mubr.bf16.mxu0 %v127
    %4584 = vmatmul.mubr.bf16.gmra.mrb[0].mxu0 %v126
    %v4585 = vpop.f32.mrb[0].mxu0
    %v4586 = vadd.f32 %v4515, %v4585
    %v4587 = vpop.f32.mrb[0].mxu0
    %v4588 = vadd.f32 %v4517, %v4587
    %v4589 = vpop.f32.mrb[0].mxu0
    %v4590 = vadd.f32 %v4519, %v4589
    %v4591 = vpop.f32.mrb[0].mxu0
    %v4592 = vadd.f32 %v4521, %v4591
    %4593 = vmatprep.mubr.bf16.mxu0 %v139
    %4594 = vmatmul.mubr.bf16.gmra.mrb[0].mxu0 %v138
    %v4595 = vpop.f32.mrb[0].mxu0
    %v4596 = vadd.f32 %v4525, %v4595
    %v4597 = vpop.f32.mrb[0].mxu0
    %v4598 = vadd.f32 %v4527, %v4597
    %v4599 = vpop.f32.mrb[0].mxu0
    %v4600 = vadd.f32 %v4529, %v4599
    %v4601 = vpop.f32.mrb[0].mxu0
    %v4602 = vadd.f32 %v4531, %v4601
    %4603 = vmatprep.mubr.bf16.mxu0 %v151
    %4604 = vmatmul.mubr.bf16.gmra.mrb[0].mxu0 %v150
    %v4605 = vpop.f32.mrb[0].mxu0
    %v4606 = vadd.f32 %v4535, %v4605
    %v4607 = vpop.f32.mrb[0].mxu0
    %v4608 = vadd.f32 %v4537, %v4607
    %v4609 = vpop.f32.mrb[0].mxu0
    %v4610 = vadd.f32 %v4539, %v4609
    %v4611 = vpop.f32.mrb[0].mxu0
    %v4612 = vadd.f32 %v4541, %v4611
    %4613 = vmatprep.mubr.bf16.mxu0 %v163
    %4614 = vmatmul.mubr.bf16.gmra.mrb[0].mxu0 %v162
    %v4615 = vpop.f32.mrb[0].mxu0
    %v4616 = vadd.f32 %v4545, %v4615
    %v4617 = vpop.f32.mrb[0].mxu0
    %v4618 = vadd.f32 %v4547, %v4617
    %v4619 = vpop.f32.mrb[0].mxu0
    %v4620 = vpop.f32.mrb[0].mxu0
    %4621 = vdwg.mxu0
    %4622 = vmatprep.subr.bf16.mxu0 %v2673
    %4623 = vmatpush1.bf16.msra.mxu0 %v2672
    %4624 = vmatprep.subr.bf16.mxu0 %v2679
    %4625 = vmatpush1.bf16.msra.mxu0 %v2678
    %4626 = vmatprep.subr.bf16.mxu0 %v2685
    %4627 = vmatpush1.bf16.msra.mxu0 %v2684
    %4628 = vmatprep.subr.bf16.mxu0 %v2691
    %4629 = vmatpush1.bf16.msra.mxu0 %v2690
    %4630 = vmatprep.subr.bf16.mxu0 %v2697
    %4631 = vmatpush1.bf16.msra.mxu0 %v2696
    %4632 = vmatprep.subr.bf16.mxu0 %v2703
    %4633 = vmatpush1.bf16.msra.mxu0 %v2702
    %4634 = vmatprep.subr.bf16.mxu0 %v2709
    %4635 = vmatpush1.bf16.msra.mxu0 %v2708
    %4636 = vmatprep.subr.bf16.mxu0 %v2715
    %4637 = vmatpush1.bf16.msra.mxu0 %v2714
    %4638 = vmatprep.subr.bf16.mxu0 %v2721
    %4639 = vmatpush1.bf16.msra.mxu0 %v2720
    %4640 = vmatprep.subr.bf16.mxu0 %v2727
    %4641 = vmatpush1.bf16.msra.mxu0 %v2726
    %4642 = vmatprep.subr.bf16.mxu0 %v2733
    %4643 = vmatpush1.bf16.msra.mxu0 %v2732
    %4644 = vmatprep.subr.bf16.mxu0 %v2739
    %4645 = vmatpush1.bf16.msra.mxu0 %v2738
    %4646 = vmatprep.subr.bf16.mxu0 %v2745
    %4647 = vmatpush1.bf16.msra.mxu0 %v2744
    %4648 = vmatprep.subr.bf16.mxu0 %v2751
    %4649 = vmatpush1.bf16.msra.mxu0 %v2750
    %4650 = vmatprep.subr.bf16.mxu0 %v2757
    %4651 = vmatpush1.bf16.msra.mxu0 %v2756
    %4652 = vmatprep.subr.bf16.mxu0 %v2763
    %4653 = vmatpush1.bf16.msra.mxu0 %v2762
    %4654 = vmatprep.mubr.bf16.mxu0 %v129
    %4655 = vmatmul.mubr.bf16.gmra.mrb[0].mxu0 %v128
    %v4656 = vpop.f32.mrb[0].mxu0
    %v4657 = vadd.f32 %v4586, %v4656
    %v4658 = vpop.f32.mrb[0].mxu0
    %v4659 = vadd.f32 %v4588, %v4658
    %v4660 = vpop.f32.mrb[0].mxu0
    %v4661 = vadd.f32 %v4590, %v4660
    %v4662 = vpop.f32.mrb[0].mxu0
    %v4663 = vadd.f32 %v4592, %v4662
    %4664 = vmatprep.mubr.bf16.mxu0 %v141
    %4665 = vmatmul.mubr.bf16.gmra.mrb[0].mxu0 %v140
    %v4666 = vpop.f32.mrb[0].mxu0
    %v4667 = vadd.f32 %v4596, %v4666
    %v4668 = vpop.f32.mrb[0].mxu0
    %v4669 = vadd.f32 %v4598, %v4668
    %v4670 = vpop.f32.mrb[0].mxu0
    %v4671 = vadd.f32 %v4600, %v4670
    %v4672 = vpop.f32.mrb[0].mxu0
    %v4673 = vadd.f32 %v4602, %v4672
    %4674 = vmatprep.mubr.bf16.mxu0 %v153
    %4675 = vmatmul.mubr.bf16.gmra.mrb[0].mxu0 %v152
    %v4676 = vpop.f32.mrb[0].mxu0
    %v4677 = vadd.f32 %v4606, %v4676
    %v4678 = vpop.f32.mrb[0].mxu0
    %v4679 = vadd.f32 %v4608, %v4678
    %v4680 = vpop.f32.mrb[0].mxu0
    %v4681 = vadd.f32 %v4610, %v4680
    %v4682 = vpop.f32.mrb[0].mxu0
    %v4683 = vadd.f32 %v4612, %v4682
    %4684 = vmatprep.mubr.bf16.mxu0 %v165
    %4685 = vmatmul.mubr.bf16.gmra.mrb[0].mxu0 %v164
    %v4686 = vpop.f32.mrb[0].mxu0
    %v4687 = vadd.f32 %v4616, %v4686
    %v4688 = vpop.f32.mrb[0].mxu0
    %v4689 = vadd.f32 %v4618, %v4688
    %v4690 = vpop.f32.mrb[0].mxu0
    %v4691 = vpop.f32.mrb[0].mxu0
    %4692 = vdwg.mxu0
    %4693 = vmatprep.subr.bf16.mxu0 %v2769
    %4694 = vmatpush1.bf16.msra.mxu0 %v2768
    %4695 = vmatprep.subr.bf16.mxu0 %v2775
    %4696 = vmatpush1.bf16.msra.mxu0 %v2774
    %4697 = vmatprep.subr.bf16.mxu0 %v2781
    %4698 = vmatpush1.bf16.msra.mxu0 %v2780
    %4699 = vmatprep.subr.bf16.mxu0 %v2787
    %4700 = vmatpush1.bf16.msra.mxu0 %v2786
    %4701 = vmatprep.subr.bf16.mxu0 %v2793
    %4702 = vmatpush1.bf16.msra.mxu0 %v2792
    %4703 = vmatprep.subr.bf16.mxu0 %v2799
    %4704 = vmatpush1.bf16.msra.mxu0 %v2798
    %4705 = vmatprep.subr.bf16.mxu0 %v2805
    %4706 = vmatpush1.bf16.msra.mxu0 %v2804
    %4707 = vmatprep.subr.bf16.mxu0 %v2811
    %4708 = vmatpush1.bf16.msra.mxu0 %v2810
    %4709 = vmatprep.subr.bf16.mxu0 %v2817
    %4710 = vmatpush1.bf16.msra.mxu0 %v2816
    %4711 = vmatprep.subr.bf16.mxu0 %v2823
    %4712 = vmatpush1.bf16.msra.mxu0 %v2822
    %4713 = vmatprep.subr.bf16.mxu0 %v2829
    %4714 = vmatpush1.bf16.msra.mxu0 %v2828
    %4715 = vmatprep.subr.bf16.mxu0 %v2835
    %4716 = vmatpush1.bf16.msra.mxu0 %v2834
    %4717 = vmatprep.subr.bf16.mxu0 %v2841
    %4718 = vmatpush1.bf16.msra.mxu0 %v2840
    %4719 = vmatprep.subr.bf16.mxu0 %v2847
    %4720 = vmatpush1.bf16.msra.mxu0 %v2846
    %4721 = vmatprep.subr.bf16.mxu0 %v2853
    %4722 = vmatpush1.bf16.msra.mxu0 %v2852
    %4723 = vmatprep.subr.bf16.mxu0 %v2859
    %4724 = vmatpush1.bf16.msra.mxu0 %v2858
    %4725 = vmatprep.mubr.bf16.mxu0 %v131
    %4726 = vmatmul.mubr.bf16.gmra.mrb[0].mxu0 %v130
    %v4727 = vpop.f32.mrb[0].mxu0
    %v4728 = vadd.f32 %v4657, %v4727
    %v4729 = vpop.f32.mrb[0].mxu0
    %v4730 = vadd.f32 %v4659, %v4729
    %v4731 = vpop.f32.mrb[0].mxu0
    %v4732 = vadd.f32 %v4661, %v4731
    %v4733 = vpop.f32.mrb[0].mxu0
    %v4734 = vadd.f32 %v4663, %v4733
    %4735 = vmatprep.mubr.bf16.mxu0 %v143
    %4736 = vmatmul.mubr.bf16.gmra.mrb[0].mxu0 %v142
    %v4737 = vpop.f32.mrb[0].mxu0
    %v4738 = vadd.f32 %v4667, %v4737
    %v4739 = vpop.f32.mrb[0].mxu0
    %v4740 = vadd.f32 %v4669, %v4739
    %v4741 = vpop.f32.mrb[0].mxu0
    %v4742 = vadd.f32 %v4671, %v4741
    %v4743 = vpop.f32.mrb[0].mxu0
    %v4744 = vadd.f32 %v4673, %v4743
    %4745 = vmatprep.mubr.bf16.mxu0 %v155
    %4746 = vmatmul.mubr.bf16.gmra.mrb[0].mxu0 %v154
    %v4747 = vpop.f32.mrb[0].mxu0
    %v4748 = vadd.f32 %v4677, %v4747
    %v4749 = vpop.f32.mrb[0].mxu0
    %v4750 = vadd.f32 %v4679, %v4749
    %v4751 = vpop.f32.mrb[0].mxu0
    %v4752 = vadd.f32 %v4681, %v4751
    %v4753 = vpop.f32.mrb[0].mxu0
    %v4754 = vadd.f32 %v4683, %v4753
    %4755 = vmatprep.mubr.bf16.mxu0 %v167
    %4756 = vmatmul.mubr.bf16.gmra.mrb[0].mxu0 %v166
    %v4757 = vpop.f32.mrb[0].mxu0
    %v4758 = vadd.f32 %v4687, %v4757
    %v4759 = vpop.f32.mrb[0].mxu0
    %v4760 = vadd.f32 %v4689, %v4759
    %v4761 = vpop.f32.mrb[0].mxu0
    %v4762 = vpop.f32.mrb[0].mxu0
    %4763 = vdwg.mxu0
    %4764 = vmatprep.subr.bf16.mxu0 %v2865
    %4765 = vmatpush1.bf16.msra.mxu0 %v2864
    %4766 = vmatprep.subr.bf16.mxu0 %v2871
    %4767 = vmatpush1.bf16.msra.mxu0 %v2870
    %4768 = vmatprep.subr.bf16.mxu0 %v2877
    %4769 = vmatpush1.bf16.msra.mxu0 %v2876
    %4770 = vmatprep.subr.bf16.mxu0 %v2883
    %4771 = vmatpush1.bf16.msra.mxu0 %v2882
    %4772 = vmatprep.subr.bf16.mxu0 %v2889
    %4773 = vmatpush1.bf16.msra.mxu0 %v2888
    %4774 = vmatprep.subr.bf16.mxu0 %v2895
    %4775 = vmatpush1.bf16.msra.mxu0 %v2894
    %4776 = vmatprep.subr.bf16.mxu0 %v2901
    %4777 = vmatpush1.bf16.msra.mxu0 %v2900
    %4778 = vmatprep.subr.bf16.mxu0 %v2907
    %4779 = vmatpush1.bf16.msra.mxu0 %v2906
    %4780 = vmatprep.subr.bf16.mxu0 %v2913
    %4781 = vmatpush1.bf16.msra.mxu0 %v2912
    %4782 = vmatprep.subr.bf16.mxu0 %v2919
    %4783 = vmatpush1.bf16.msra.mxu0 %v2918
    %4784 = vmatprep.subr.bf16.mxu0 %v2925
    %4785 = vmatpush1.bf16.msra.mxu0 %v2924
    %4786 = vmatprep.subr.bf16.mxu0 %v2931
    %4787 = vmatpush1.bf16.msra.mxu0 %v2930
    %4788 = vmatprep.subr.bf16.mxu0 %v2937
    %4789 = vmatpush1.bf16.msra.mxu0 %v2936
    %4790 = vmatprep.subr.bf16.mxu0 %v2943
    %4791 = vmatpush1.bf16.msra.mxu0 %v2942
    %4792 = vmatprep.subr.bf16.mxu0 %v2949
    %4793 = vmatpush1.bf16.msra.mxu0 %v2948
    %4794 = vmatprep.subr.bf16.mxu0 %v2955
    %4795 = vmatpush1.bf16.msra.mxu0 %v2954
    %4796 = vmatprep.mubr.bf16.mxu0 %v133
    %4797 = vmatmul.mubr.bf16.gmra.mrb[0].mxu0 %v132
    %v4798 = vpop.f32.mrb[0].mxu0
    %v4799 = vadd.f32 %v4728, %v4798
    %v4800 = vpop.f32.mrb[0].mxu0
    %v4801 = vadd.f32 %v4730, %v4800
    %v4802 = vpop.f32.mrb[0].mxu0
    %v4803 = vadd.f32 %v4732, %v4802
    %v4804 = vpop.f32.mrb[0].mxu0
    %v4805 = vadd.f32 %v4734, %v4804
    %4806 = vmatprep.mubr.bf16.mxu0 %v145
    %4807 = vmatmul.mubr.bf16.gmra.mrb[0].mxu0 %v144
    %v4808 = vpop.f32.mrb[0].mxu0
    %v4809 = vadd.f32 %v4738, %v4808
    %v4810 = vpop.f32.mrb[0].mxu0
    %v4811 = vadd.f32 %v4740, %v4810
    %v4812 = vpop.f32.mrb[0].mxu0
    %v4813 = vadd.f32 %v4742, %v4812
    %v4814 = vpop.f32.mrb[0].mxu0
    %v4815 = vadd.f32 %v4744, %v4814
    %4816 = vmatprep.mubr.bf16.mxu0 %v157
    %4817 = vmatmul.mubr.bf16.gmra.mrb[0].mxu0 %v156
    %v4818 = vpop.f32.mrb[0].mxu0
    %v4819 = vadd.f32 %v4748, %v4818
    %v4820 = vpop.f32.mrb[0].mxu0
    %v4821 = vadd.f32 %v4750, %v4820
    %v4822 = vpop.f32.mrb[0].mxu0
    %v4823 = vadd.f32 %v4752, %v4822
    %v4824 = vpop.f32.mrb[0].mxu0
    %v4825 = vadd.f32 %v4754, %v4824
    %4826 = vmatprep.mubr.bf16.mxu0 %v169
    %4827 = vmatmul.mubr.bf16.gmra.mrb[0].mxu0 %v168
    %v4828 = vpop.f32.mrb[0].mxu0
    %v4829 = vadd.f32 %v4758, %v4828
    %v4830 = vpop.f32.mrb[0].mxu0
    %v4831 = vadd.f32 %v4760, %v4830
    %v4832 = vpop.f32.mrb[0].mxu0
    %v4833 = vpop.f32.mrb[0].mxu0
    %4834 = vdwg.mxu0
    %4835 = vmatprep.subr.bf16.mxu0 %v2961
    %4836 = vmatpush1.bf16.msra.mxu0 %v2960
    %4837 = vmatprep.subr.bf16.mxu0 %v2967
    %4838 = vmatpush1.bf16.msra.mxu0 %v2966
    %4839 = vmatprep.subr.bf16.mxu0 %v2973
    %4840 = vmatpush1.bf16.msra.mxu0 %v2972
    %4841 = vmatprep.subr.bf16.mxu0 %v2979
    %4842 = vmatpush1.bf16.msra.mxu0 %v2978
    %4843 = vmatprep.subr.bf16.mxu0 %v2985
    %4844 = vmatpush1.bf16.msra.mxu0 %v2984
    %4845 = vmatprep.subr.bf16.mxu0 %v2991
    %4846 = vmatpush1.bf16.msra.mxu0 %v2990
    %4847 = vmatprep.subr.bf16.mxu0 %v2997
    %4848 = vmatpush1.bf16.msra.mxu0 %v2996
    %4849 = vmatprep.subr.bf16.mxu0 %v3003
    %4850 = vmatpush1.bf16.msra.mxu0 %v3002
    %4851 = vmatprep.subr.bf16.mxu0 %v3009
    %4852 = vmatpush1.bf16.msra.mxu0 %v3008
    %4853 = vmatprep.subr.bf16.mxu0 %v3015
    %4854 = vmatpush1.bf16.msra.mxu0 %v3014
    %4855 = vmatprep.subr.bf16.mxu0 %v3021
    %4856 = vmatpush1.bf16.msra.mxu0 %v3020
    %4857 = vmatprep.subr.bf16.mxu0 %v3027
    %4858 = vmatpush1.bf16.msra.mxu0 %v3026
    %4859 = vmatprep.subr.bf16.mxu0 %v3033
    %4860 = vmatpush1.bf16.msra.mxu0 %v3032
    %4861 = vmatprep.subr.bf16.mxu0 %v3039
    %4862 = vmatpush1.bf16.msra.mxu0 %v3038
    %4863 = vmatprep.subr.bf16.mxu0 %v3045
    %4864 = vmatpush1.bf16.msra.mxu0 %v3044
    %4865 = vmatprep.subr.bf16.mxu0 %v3051
    %4866 = vmatpush1.bf16.msra.mxu0 %v3050
    %4867 = vmatprep.mubr.bf16.mxu0 %v135
    %4868 = vmatmul.mubr.bf16.gmra.mrb[0].mxu0 %v134
    %v4869 = vpop.f32.mrb[0].mxu0
    %v4870 = vadd.f32 %v4799, %v4869
    %v4871 = vpop.f32.mrb[0].mxu0
    %v4872 = vadd.f32 %v4801, %v4871
    %v4873 = vpop.f32.mrb[0].mxu0
    %v4874 = vadd.f32 %v4803, %v4873
    %v4875 = vpop.f32.mrb[0].mxu0
    %v4876 = vadd.f32 %v4805, %v4875
    %4877 = vmatprep.mubr.bf16.mxu0 %v147
    %4878 = vmatmul.mubr.bf16.gmra.mrb[0].mxu0 %v146
    %v4879 = vpop.f32.mrb[0].mxu0
    %v4880 = vadd.f32 %v4809, %v4879
    %v4881 = vpop.f32.mrb[0].mxu0
    %v4882 = vadd.f32 %v4811, %v4881
    %v4883 = vpop.f32.mrb[0].mxu0
    %v4884 = vadd.f32 %v4813, %v4883
    %v4885 = vpop.f32.mrb[0].mxu0
    %v4886 = vadd.f32 %v4815, %v4885
    %4887 = vmatprep.mubr.bf16.mxu0 %v159
    %4888 = vmatmul.mubr.bf16.gmra.mrb[0].mxu0 %v158
    %v4889 = vpop.f32.mrb[0].mxu0
    %v4890 = vadd.f32 %v4819, %v4889
    %v4891 = vpop.f32.mrb[0].mxu0
    %v4892 = vadd.f32 %v4821, %v4891
    %v4893 = vpop.f32.mrb[0].mxu0
    %v4894 = vadd.f32 %v4823, %v4893
    %v4895 = vpop.f32.mrb[0].mxu0
    %v4896 = vadd.f32 %v4825, %v4895
    %4897 = vmatprep.mubr.bf16.mxu0 %v171
    %4898 = vmatmul.mubr.bf16.gmra.mrb[0].mxu0 %v170
    %v4899 = vpop.f32.mrb[0].mxu0
    %v4900 = vadd.f32 %v4829, %v4899
    %v4901 = vpop.f32.mrb[0].mxu0
    %v4902 = vadd.f32 %v4831, %v4901
    %v4903 = vpop.f32.mrb[0].mxu0
    %v4904 = vpop.f32.mrb[0].mxu0
    %4905 = vdwg.mxu0
    %4906 = vst [vmem:[#allocation7] sm:$0xff] %v4018
    %4907 = vst [vmem:[#allocation7 + $0x8] sm:$0xff] %v4020
    %4908 = vst [vmem:[#allocation7 + $0x10] sm:$0xff] %v4444
    %4909 = vst [vmem:[#allocation7 + $0x18] sm:$0xff] %v4446
    %4910 = vst [vmem:[#allocation7 + $0x20] sm:$0xff] %v4870
    %4911 = vst [vmem:[#allocation7 + $0x28] sm:$0xff] %v4872
    %4912 = vst [vmem:[#allocation7 + $0x30] sm:$0xff] %v4022
    %4913 = vst [vmem:[#allocation7 + $0x38] sm:$0xff] %v4024
    %4914 = vst [vmem:[#allocation7 + $0x40] sm:$0xff] %v4448
    %4915 = vst [vmem:[#allocation7 + $0x48] sm:$0xff] %v4450
    %4916 = vst [vmem:[#allocation7 + $0x50] sm:$0xff] %v4874
    %4917 = vst [vmem:[#allocation7 + $0x58] sm:$0xff] %v4876
    %4918 = vst [vmem:[#allocation7 + $0x60] sm:$0xff] %v4028
    %4919 = vst [vmem:[#allocation7 + $0x68] sm:$0xff] %v4030
    %4920 = vst [vmem:[#allocation7 + $0x70] sm:$0xff] %v4454
    %4921 = vst [vmem:[#allocation7 + $0x78] sm:$0xff] %v4456
    %4922 = vst [vmem:[#allocation7 + $0x80] sm:$0xff] %v4880
    %4923 = vst [vmem:[#allocation7 + $0x88] sm:$0xff] %v4882
    %4924 = vst [vmem:[#allocation7 + $0x90] sm:$0xff] %v4032
    %4925 = vst [vmem:[#allocation7 + $0x98] sm:$0xff] %v4034
    %4926 = vst [vmem:[#allocation7 + $0xa0] sm:$0xff] %v4458
    %4927 = vst [vmem:[#allocation7 + $0xa8] sm:$0xff] %v4460
    %4928 = vst [vmem:[#allocation7 + $0xb0] sm:$0xff] %v4884
    %4929 = vst [vmem:[#allocation7 + $0xb8] sm:$0xff] %v4886
    %4930 = vst [vmem:[#allocation7 + $0xc0] sm:$0xff] %v4038
    %4931 = vst [vmem:[#allocation7 + $0xc8] sm:$0xff] %v4040
    %4932 = vst [vmem:[#allocation7 + $0xd0] sm:$0xff] %v4464
    %4933 = vst [vmem:[#allocation7 + $0xd8] sm:$0xff] %v4466
    %4934 = vst [vmem:[#allocation7 + $0xe0] sm:$0xff] %v4890
    %4935 = vst [vmem:[#allocation7 + $0xe8] sm:$0xff] %v4892
    %4936 = vst [vmem:[#allocation7 + $0xf0] sm:$0xff] %v4042
    %4937 = vst [vmem:[#allocation7 + $0xf8] sm:$0xff] %v4044
    %4938 = vst [vmem:[#allocation7 + $0x100] sm:$0xff] %v4468
    %4939 = vst [vmem:[#allocation7 + $0x108] sm:$0xff] %v4470
    %4940 = vst [vmem:[#allocation7 + $0x110] sm:$0xff] %v4894
    %4941 = vst [vmem:[#allocation7 + $0x118] sm:$0xff] %v4896
    %4942 = vst [vmem:[#allocation7 + $0x120] sm:$0x1] %v4048
    %4943 = vst [vmem:[#allocation7 + $0x128] sm:$0x1] %v4050
    %4944 = vst [vmem:[#allocation7 + $0x130] sm:$0x1] %v4474
    %4945 = vst [vmem:[#allocation7 + $0x138] sm:$0x1] %v4476
    %4946 = vst [vmem:[#allocation7 + $0x140] sm:$0x1] %v4900
    %4947 = vst [vmem:[#allocation7 + $0x148] sm:$0x1] %v4902
    // Predicated region
    $region18: #{tpu_custom_call.1} parent=1 // pred_check
      _
    $region19: #{tpu_custom_call.1} parent=1 // pred_check_branch
      %4949 = sbr.rel (0) target = $region21
    $region20: #{tpu_custom_call.1} parent=1 // pred_region
      %s4951 = ssub.s32 5376, 5376
      %4952 = vsyncadd [#allocation4], %s4951
      %s4953 = sshll.u32 [#allocation7], 4
      %s4954 = int_to_ptr.vmem [resolvable:$true] %s4953
      %4959 = dma.vmem_to_hbm [thread:$0]  %s4954, 5376, %s2, [#allocation4], 768, 768, 48
    $region21: #{tpu_custom_call.1} parent=1 // pred_fallthru
      _
    // Predicated region
    $region22: #{tpu_custom_call.1} parent=1 // pred_check
      _
    $region23: #{tpu_custom_call.1} parent=1 // pred_check_branch
      %4961 = sbr.rel (0) target = $region25
    $region24: #{tpu_custom_call.1} parent=1 // pred_region
      %4962 = dma.done [#allocation4], 5376
    $region25: #{tpu_custom_call.1} parent=1 // pred_fallthru
      _
    %4963 = vsyncpa [#allocation3], 1
    %4964 = vsyncpa [#allocation6], 1
    %4965 = vsyncpa [#allocation4], 1

</llo_original>
